<compile_context>
chip_gen: v5e
topology: v5e:2x2
jax: 0.10.0
libtpu: 0.0.40
codegen_flags: <defaults>
</compile_context>

<pallas_src>
import functools

import jax
import jax.numpy as jnp
from jax import lax
from jax.experimental import pallas as pl
from jax.experimental.pallas import tpu as pltpu


def _lstm_chunk_kernel(x_ref,     # VMEM (Tc, Bt, H)  f32 : embedded inputs, time-major
                       wih_ref,   # VMEM (H, 4*Hg)        : W_ih^T, gate-padded (resident)
                       whh_ref,   # VMEM (Hg, 4*Hg)       : W_hh^T, gate-padded (resident)
                       b_ref,     # VMEM (1, 4*Hg)    f32 : b_ih + b_hh, gate-padded
                       out_ref,   # VMEM (Tc, Bt, Hg) f32 : per-step hidden states (streamed)
                       hn_ref,    # VMEM (Bt, Hg)     f32 : final h
                       cn_ref,    # VMEM (Bt, Hg)     f32 : final c
                       h_sc,      # scratch VMEM (Bt, Hg) f32 (persists across time chunks)
                       c_sc,      # scratch VMEM (Bt, Hg) f32
                       xw_sc,     # scratch VMEM (Tc*Bt, 4*Hg) f32 : hoisted input projection
                       *, seq_len, mxu_dtype):
    tc, bt, h_in = x_ref.shape
    hg = hn_ref.shape[1]                      # lane-aligned per-gate width (multiple of 128)
    t_chunk = pl.program_id(1)

    @pl.when(t_chunk == 0)
    def _init():
        h_sc[...] = jnp.zeros_like(h_sc)
        c_sc[...] = jnp.zeros_like(c_sc)

    # --- Hoisted input projection + bias for the whole chunk: one MXU-friendly matmul ---
    x2d = x_ref[...].reshape(tc * bt, h_in).astype(mxu_dtype)
    xw_sc[...] = (jnp.dot(x2d, wih_ref[...], preferred_element_type=jnp.float32)
                  + b_ref[...])

    chunk_start = t_chunk * tc

    def step(t, carry):
        h_prev = h_sc[...]
        c_prev = c_sc[...]
        row = pl.multiple_of(t * bt, bt)
        # Per-step work: only the recurrent projection (PyTorch gate order: i, f, g, o).
        gates = xw_sc[pl.ds(row, bt), :] + jnp.dot(
            h_prev.astype(mxu_dtype), whh_ref[...],
            preferred_element_type=jnp.float32)                      # (bt, 4*hg)
        i_g = jax.nn.sigmoid(gates[:, 0 * hg:1 * hg])
        f_g = jax.nn.sigmoid(gates[:, 1 * hg:2 * hg])
        g_g = jnp.tanh(gates[:, 2 * hg:3 * hg])
        o_g = jax.nn.sigmoid(gates[:, 3 * hg:4 * hg])
        c_new = f_g * c_prev + i_g * g_g
        h_new = o_g * jnp.tanh(c_new)
        # Freeze the state on padded tail steps so h_n / c_n stay correct.
        valid = (chunk_start + t) < seq_len
        h_sc[...] = jnp.where(valid, h_new, h_prev)
        c_sc[...] = jnp.where(valid, c_new, c_prev)
        out_ref[t] = h_new.astype(out_ref.dtype)                     # lane-dense (bt, hg) store
        return carry

    lax.fori_loop(0, tc, step, 0, unroll=(tc <= 32))

    @pl.when(t_chunk == pl.num_programs(1) - 1)
    def _final():
        hn_ref[...] = h_sc[...]
        cn_ref[...] = c_sc[...]


def _round_up(x, m):
    return (x + m - 1) // m * m


@functools.partial(jax.jit, static_argnames=("hidden_dim", "mxu_dtype"))
def encoder_forward(state, emb, w_ih, w_hh, b_ih, b_hh, *, hidden_dim,
                    mxu_dtype=jnp.float32):
    """state: (B, T) int token ids.
    Returns (context_vector (B, T, H), (h_n (1, B, H), c_n (1, B, H)))."""
    B, T = state.shape
    H = hidden_dim
    HG = _round_up(H, 128)              # lane-aligned per-gate stride
    BT = min(_round_up(B, 8), 64)       # batch tile (sublane quantum aligned)
    BP = _round_up(B, BT)               # padded batch
    TC = min(T, 64)                     # time steps per grid chunk
    TP = _round_up(T, TC)               # padded sequence length

    # ---- Embedding lookup + dropout (eval mode = identity), outside the recurrence ----
    x = jnp.take(emb.astype(jnp.float32), state.astype(jnp.int32), axis=0)    # (B, T, H)
    # TODO(synk): training-mode stochastic dropout (pltpu.prng_*) intentionally not applied.

    x_tm = jnp.transpose(x, (1, 0, 2))                                        # (T, B, H)
    x_tm = jnp.pad(x_tm, ((0, TP - T), (0, BP - B), (0, 0)))                  # (TP, BP, H)

    # ---- Gate-padded, pre-transposed weights: 128-lane-aligned gate blocks ----
    def gate_pad_t(w):                   # (4H, H) -> (H, 4*HG), gate order (i, f, g, o)
        w4 = w.reshape(4, H, H)
        w4 = jnp.pad(w4, ((0, 0), (0, HG - H), (0, 0)))
        return jnp.transpose(w4, (2, 0, 1)).reshape(H, 4 * HG)

    wih4 = gate_pad_t(w_ih).astype(mxu_dtype)                                  # (H, 4HG)
    whh4 = jnp.pad(gate_pad_t(w_hh), ((0, HG - H), (0, 0))).astype(mxu_dtype)  # (HG, 4HG)
    b4 = jnp.pad((b_ih + b_hh).reshape(4, H), ((0, 0), (0, HG - H)))
    b4 = b4.reshape(1, 4 * HG).astype(jnp.float32)

    kernel = functools.partial(_lstm_chunk_kernel, seq_len=T, mxu_dtype=mxu_dtype)

    out_tm, h_n, c_n = pl.pallas_call(
        kernel,
        grid=(BP // BT, TP // TC),
        in_specs=[
            pl.BlockSpec((TC, BT, H), lambda b, t: (t, b, 0)),    # x chunk (time-major)
            pl.BlockSpec((H, 4 * HG), lambda b, t: (0, 0)),       # W_ih^T, VMEM resident
            pl.BlockSpec((HG, 4 * HG), lambda b, t: (0, 0)),      # W_hh^T, VMEM resident
            pl.BlockSpec((1, 4 * HG), lambda b, t: (0, 0)),       # bias, VMEM resident
        ],
        out_specs=(
            pl.BlockSpec((TC, BT, HG), lambda b, t: (t, b, 0)),   # streamed hidden states
            pl.BlockSpec((BT, HG), lambda b, t: (b, 0)),          # h_n (written at last chunk)
            pl.BlockSpec((BT, HG), lambda b, t: (b, 0)),          # c_n
        ),
        out_shape=(
            jax.ShapeDtypeStruct((TP, BP, HG), jnp.float32),
            jax.ShapeDtypeStruct((BP, HG), jnp.float32),
            jax.ShapeDtypeStruct((BP, HG), jnp.float32),
        ),
        scratch_shapes=[
            pltpu.VMEM((BT, HG), jnp.float32),              # h state (persists over chunks)
            pltpu.VMEM((BT, HG), jnp.float32),              # c state
            pltpu.VMEM((TC * BT, 4 * HG), jnp.float32),     # hoisted input projection
        ],
        compiler_params=pltpu.CompilerParams(
            dimension_semantics=("parallel", "arbitrary"),
            vmem_limit_bytes=32 * 1024 * 1024,
        ),
    )(x_tm, wih4, whh4, b4)

    # Batch-first output; transpose + un-pad slice fuse into a single XLA copy.
    context_vector = jnp.transpose(out_tm[:T, :B, :H], (1, 0, 2))   # (B, T, H)
    hidden = (h_n[:B, :H][None], c_n[:B, :H][None])                 # each (1, B, H)
    return context_vector, hidden


def _reference_forward(state, emb, w_ih, w_hh, b_ih, b_hh):
    """Pure-JAX f32 reference (eval-mode dropout) for correctness checking."""
    x = jnp.take(emb, state, axis=0)                    # (B, T, H)
    B, T, H = x.shape
    b = b_ih + b_hh

    def cell(carry, x_t):
        h, c = carry
        gates = x_t @ w_ih.T + h @ w_hh.T + b
        i = jax.nn.sigmoid(gates[:, 0 * H:1 * H])
        f = jax.nn.sigmoid(gates[:, 1 * H:2 * H])
        g = jnp.tanh(gates[:, 2 * H:3 * H])
        o = jax.nn.sigmoid(gates[:, 3 * H:4 * H])
        c = f * c + i * g
        h = o * jnp.tanh(c)
        return (h, c), h

    h0 = jnp.zeros((B, H), jnp.float32)
    c0 = jnp.zeros((B, H), jnp.float32)
    (h_n, c_n), seq = lax.scan(cell, (h0, c0), jnp.transpose(x, (1, 0, 2)))
    return jnp.transpose(seq, (1, 0, 2)), (h_n[None], c_n[None])


if __name__ == "__main__":
    # Small shapes consistent with the module: Encoder(input_dim=V, hidden_dim=H).
    V = 16          # vocab size (input_dim)
    H = 32          # hidden_dim
    B = 2           # batch
    T = 8           # sequence length

    key = jax.random.PRNGKey(0)
    k_emb, k_wih, k_whh, k_bih, k_bhh, k_state = jax.random.split(key, 6)

    # Parameter init mirroring PyTorch defaults:
    #   nn.Embedding -> N(0, 1);  nn.LSTM -> U(-1/sqrt(H), 1/sqrt(H)), gate order (i, f, g, o).
    bound = 1.0 / jnp.sqrt(jnp.float32(H))
    emb = jax.random.normal(k_emb, (V, H), jnp.float32)
    w_ih = jax.random.uniform(k_wih, (4 * H, H), jnp.float32, -bound, bound)
    w_hh = jax.random.uniform(k_whh, (4 * H, H), jnp.float32, -bound, bound)
    b_ih = jax.random.uniform(k_bih, (4 * H,), jnp.float32, -bound, bound)
    b_hh = jax.random.uniform(k_bhh, (4 * H,), jnp.float32, -bound, bound)

    state = jax.random.randint(k_state, (B, T), 0, V, jnp.int32)

    # f32 (exact module semantics) path.
    ctx, (h_n, c_n) = encoder_forward(state, emb, w_ih, w_hh, b_ih, b_hh, hidden_dim=H)
    jax.block_until_ready((ctx, h_n, c_n))

    ctx_ref, (h_ref, c_ref) = _reference_forward(state, emb, w_ih, w_hh, b_ih, b_hh)
    assert ctx.shape == (B, T, H) and h_n.shape == (1, B, H) and c_n.shape == (1, B, H)
    assert jnp.allclose(ctx, ctx_ref, atol=1e-3, rtol=1e-3)
    assert jnp.allclose(h_n, h_ref, atol=1e-3, rtol=1e-3)
    assert jnp.allclose(c_n, c_ref, atol=1e-3, rtol=1e-3)

    # bf16 MXU-operand path (recommended on v6e/v7x); f32 accumulation / gate math.
    ctx_bf16, _ = encoder_forward(state, emb, w_ih, w_hh, b_ih, b_hh,
                                  hidden_dim=H, mxu_dtype=jnp.bfloat16)
    jax.block_until_ready(ctx_bf16)
    assert jnp.allclose(ctx_bf16, ctx_ref, atol=1e-1, rtol=1e-1)

    print("KERNEL_OK")
</pallas_src>

<mosaic_0001>
module attributes {stable_mosaic.version = 11 : i64} {
  func.func @_lstm_chunk_kernel(%arg0: i32, %arg1: i32, %arg2: memref<8x8x32xf32, #tpu.memory_space<vmem>>, %arg3: memref<32x512xf32, #tpu.memory_space<vmem>>, %arg4: memref<128x512xf32, #tpu.memory_space<vmem>>, %arg5: memref<1x512xf32, #tpu.memory_space<vmem>>, %arg6: memref<8x8x128xf32, #tpu.memory_space<vmem>>, %arg7: memref<8x128xf32, #tpu.memory_space<vmem>>, %arg8: memref<8x128xf32, #tpu.memory_space<vmem>>, %arg9: memref<8x128xf32, #tpu.memory_space<vmem>>, %arg10: memref<8x128xf32, #tpu.memory_space<vmem>>, %arg11: memref<64x512xf32, #tpu.memory_space<vmem>>) attributes {dimension_semantics = [#tpu.dimension_semantics<parallel>, #tpu.dimension_semantics<arbitrary>], iteration_bounds = array<i64: 1, 1>, scalar_prefetch = 0 : i64, scratch_operands = 3 : i64, tpu.core_type = #tpu.core_type<tc>, window_params = [{transform_indices = @transform_0, window_bounds = array<i64: 8, 8, 32>}, {pipeline_mode = #tpu.pipeline_mode<synchronous>, transform_indices = @transform_1, window_bounds = array<i64: 32, 512>}, {pipeline_mode = #tpu.pipeline_mode<synchronous>, transform_indices = @transform_2, window_bounds = array<i64: 128, 512>}, {pipeline_mode = #tpu.pipeline_mode<synchronous>, transform_indices = @transform_3, window_bounds = array<i64: 1, 512>}, {transform_indices = @transform_4, window_bounds = array<i64: 8, 8, 128>}, {transform_indices = @transform_5, window_bounds = array<i64: 8, 128>}, {transform_indices = @transform_6, window_bounds = array<i64: 8, 128>}]} {
    %c0_i32 = arith.constant 0 : i32
    %0 = arith.cmpi eq, %arg1, %c0_i32 : i32
    %1 = arith.extui %0 : i1 to i32
    %c0_i32_0 = arith.constant 0 : i32
    %2 = arith.cmpi ne, %1, %c0_i32_0 : i32
    scf.if %2 {
      %cst_165 = arith.constant 0.000000e+00 : f32
      %367 = vector.broadcast %cst_165 : f32 to vector<8x128xf32>
      %c0_166 = arith.constant 0 : index
      %c0_167 = arith.constant 0 : index
      %368 = vector.load %arg9[%c0_166, %c0_167] : memref<8x128xf32, #tpu.memory_space<vmem>>, vector<8x128xf32>
      tpu.vector_store %arg9[%c0_166, %c0_167], %367 {strides = array<i32>} : memref<8x128xf32, #tpu.memory_space<vmem>>, vector<8x128xf32>,
      %cst_168 = arith.constant 0.000000e+00 : f32
      %369 = vector.broadcast %cst_168 : f32 to vector<8x128xf32>
      %c0_169 = arith.constant 0 : index
      %c0_170 = arith.constant 0 : index
      %370 = vector.load %arg10[%c0_169, %c0_170] : memref<8x128xf32, #tpu.memory_space<vmem>>, vector<8x128xf32>
      tpu.vector_store %arg10[%c0_169, %c0_170], %369 {strides = array<i32>} : memref<8x128xf32, #tpu.memory_space<vmem>>, vector<8x128xf32>,
    } else {
    }
    %c0 = arith.constant 0 : index
    %c0_1 = arith.constant 0 : index
    %c0_2 = arith.constant 0 : index
    %3 = vector.load %arg2[%c0, %c0_1, %c0_2] : memref<8x8x32xf32, #tpu.memory_space<vmem>>, vector<8x8x32xf32>
    %4 = vector.shape_cast %3 : vector<8x8x32xf32> to vector<64x32xf32>
    %c0_3 = arith.constant 0 : index
    %c0_4 = arith.constant 0 : index
    %5 = vector.load %arg3[%c0_3, %c0_4] : memref<32x512xf32, #tpu.memory_space<vmem>>, vector<32x512xf32>
    %cst = arith.constant dense<0.000000e+00> : vector<64x512xf32>
    %6 = tpu.matmul %4, %5, %cst {dimension_numbers = #tpu.dot_dimension_numbers<[1], [0], [0], [1], [0, 0, 1, 1], [], []>} : vector<64x32xf32>, vector<32x512xf32>, vector<64x512xf32> -> vector<64x512xf32>
    %c0_5 = arith.constant 0 : index
    %c0_6 = arith.constant 0 : index
    %7 = vector.load %arg5[%c0_5, %c0_6] : memref<1x512xf32, #tpu.memory_space<vmem>>, vector<1x512xf32>
    %8 = vector.broadcast %7 : vector<1x512xf32> to vector<64x512xf32>
    %9 = arith.addf %6, %8 : vector<64x512xf32>
    %c0_7 = arith.constant 0 : index
    %c0_8 = arith.constant 0 : index
    %10 = vector.load %arg11[%c0_7, %c0_8] : memref<64x512xf32, #tpu.memory_space<vmem>>, vector<64x512xf32>
    tpu.vector_store %arg11[%c0_7, %c0_8], %9 {strides = array<i32>} : memref<64x512xf32, #tpu.memory_space<vmem>>, vector<64x512xf32>,
    %c8_i32 = arith.constant 8 : i32
    %11 = arith.muli %arg1, %c8_i32 : i32
    %c0_i32_9 = arith.constant 0 : i32
    %c0_10 = arith.constant 0 : index
    %c0_11 = arith.constant 0 : index
    %12 = vector.load %arg9[%c0_10, %c0_11] : memref<8x128xf32, #tpu.memory_space<vmem>>, vector<8x128xf32>
    %c0_12 = arith.constant 0 : index
    %c0_13 = arith.constant 0 : index
    %13 = vector.load %arg10[%c0_12, %c0_13] : memref<8x128xf32, #tpu.memory_space<vmem>>, vector<8x128xf32>
    %c8_i32_14 = arith.constant 8 : i32
    %14 = arith.muli %c0_i32_9, %c8_i32_14 : i32
    %15 = tpu.assume_multiple %14, 8 : i32
    %16 = arith.index_cast %15 : i32 to index
    %c0_15 = arith.constant 0 : index
    %17 = vector.load %arg11[%16, %c0_15] : memref<64x512xf32, #tpu.memory_space<vmem>>, vector<8x512xf32>
    %c0_16 = arith.constant 0 : index
    %c0_17 = arith.constant 0 : index
    %18 = vector.load %arg4[%c0_16, %c0_17] : memref<128x512xf32, #tpu.memory_space<vmem>>, vector<128x512xf32>
    %cst_18 = arith.constant dense<0.000000e+00> : vector<8x512xf32>
    %19 = tpu.matmul %12, %18, %cst_18 {dimension_numbers = #tpu.dot_dimension_numbers<[1], [0], [0], [1], [0, 0, 1, 1], [], []>} : vector<8x128xf32>, vector<128x512xf32>, vector<8x512xf32> -> vector<8x512xf32>
    %20 = arith.addf %17, %19 : vector<8x512xf32>
    %21 = vector.extract_strided_slice %20 {offsets = [0, 0], sizes = [8, 128], strides = [1, 1]} : vector<8x512xf32> to vector<8x128xf32>
    %22 = arith.negf %21 : vector<8x128xf32>
    %23 = math.exp %22 : vector<8x128xf32>
    %cst_19 = arith.constant 1.000000e+00 : f32
    %24 = vector.broadcast %cst_19 : f32 to vector<8x128xf32>
    %25 = arith.addf %24, %23 : vector<8x128xf32>
    %26 = arith.divf %24, %25 : vector<8x128xf32>
    %27 = vector.extract_strided_slice %20 {offsets = [0, 128], sizes = [8, 128], strides = [1, 1]} : vector<8x512xf32> to vector<8x128xf32>
    %28 = arith.negf %27 : vector<8x128xf32>
    %29 = math.exp %28 : vector<8x128xf32>
    %cst_20 = arith.constant 1.000000e+00 : f32
    %30 = vector.broadcast %cst_20 : f32 to vector<8x128xf32>
    %31 = arith.addf %30, %29 : vector<8x128xf32>
    %32 = arith.divf %30, %31 : vector<8x128xf32>
    %33 = vector.extract_strided_slice %20 {offsets = [0, 256], sizes = [8, 128], strides = [1, 1]} : vector<8x512xf32> to vector<8x128xf32>
    %34 = math.tanh %33 : vector<8x128xf32>
    %35 = vector.extract_strided_slice %20 {offsets = [0, 384], sizes = [8, 128], strides = [1, 1]} : vector<8x512xf32> to vector<8x128xf32>
    %36 = arith.negf %35 : vector<8x128xf32>
    %37 = math.exp %36 : vector<8x128xf32>
    %cst_21 = arith.constant 1.000000e+00 : f32
    %38 = vector.broadcast %cst_21 : f32 to vector<8x128xf32>
    %39 = arith.addf %38, %37 : vector<8x128xf32>
    %40 = arith.divf %38, %39 : vector<8x128xf32>
    %41 = arith.mulf %32, %13 : vector<8x128xf32>
    %42 = arith.mulf %26, %34 : vector<8x128xf32>
    %43 = arith.addf %41, %42 : vector<8x128xf32>
    %44 = math.tanh %43 : vector<8x128xf32>
    %45 = arith.mulf %40, %44 : vector<8x128xf32>
    %46 = arith.addi %11, %c0_i32_9 : i32
    %c8_i32_22 = arith.constant 8 : i32
    %47 = arith.cmpi slt, %46, %c8_i32_22 : i32
    %48 = arith.select %47, %45, %12 : vector<8x128xf32>
    %c0_23 = arith.constant 0 : index
    %c0_24 = arith.constant 0 : index
    %49 = vector.load %arg9[%c0_23, %c0_24] : memref<8x128xf32, #tpu.memory_space<vmem>>, vector<8x128xf32>
    tpu.vector_store %arg9[%c0_23, %c0_24], %48 {strides = array<i32>} : memref<8x128xf32, #tpu.memory_space<vmem>>, vector<8x128xf32>,
    %50 = arith.select %47, %43, %13 : vector<8x128xf32>
    %c0_25 = arith.constant 0 : index
    %c0_26 = arith.constant 0 : index
    %51 = vector.load %arg10[%c0_25, %c0_26] : memref<8x128xf32, #tpu.memory_space<vmem>>, vector<8x128xf32>
    tpu.vector_store %arg10[%c0_25, %c0_26], %50 {strides = array<i32>} : memref<8x128xf32, #tpu.memory_space<vmem>>, vector<8x128xf32>,
    %52 = arith.index_cast %c0_i32_9 : i32 to index
    %c0_27 = arith.constant 0 : index
    %c0_28 = arith.constant 0 : index
    %53 = vector.load %arg6[%52, %c0_27, %c0_28] : memref<8x8x128xf32, #tpu.memory_space<vmem>>, vector<1x8x128xf32>
    %54 = vector.shape_cast %53 : vector<1x8x128xf32> to vector<8x128xf32>
    %55 = vector.shape_cast %45 : vector<8x128xf32> to vector<1x8x128xf32>
    tpu.vector_store %arg6[%52, %c0_27, %c0_28], %55 {strides = array<i32>} : memref<8x8x128xf32, #tpu.memory_space<vmem>>, vector<1x8x128xf32>,
    %c1_i32 = arith.constant 1 : i32
    %c0_29 = arith.constant 0 : index
    %c0_30 = arith.constant 0 : index
    %56 = vector.load %arg9[%c0_29, %c0_30] : memref<8x128xf32, #tpu.memory_space<vmem>>, vector<8x128xf32>
    %c0_31 = arith.constant 0 : index
    %c0_32 = arith.constant 0 : index
    %57 = vector.load %arg10[%c0_31, %c0_32] : memref<8x128xf32, #tpu.memory_space<vmem>>, vector<8x128xf32>
    %c8_i32_33 = arith.constant 8 : i32
    %58 = arith.muli %c1_i32, %c8_i32_33 : i32
    %59 = tpu.assume_multiple %58, 8 : i32
    %60 = arith.index_cast %59 : i32 to index
    %c0_34 = arith.constant 0 : index
    %61 = vector.load %arg11[%60, %c0_34] : memref<64x512xf32, #tpu.memory_space<vmem>>, vector<8x512xf32>
    %c0_35 = arith.constant 0 : index
    %c0_36 = arith.constant 0 : index
    %62 = vector.load %arg4[%c0_35, %c0_36] : memref<128x512xf32, #tpu.memory_space<vmem>>, vector<128x512xf32>
    %cst_37 = arith.constant dense<0.000000e+00> : vector<8x512xf32>
    %63 = tpu.matmul %56, %62, %cst_37 {dimension_numbers = #tpu.dot_dimension_numbers<[1], [0], [0], [1], [0, 0, 1, 1], [], []>} : vector<8x128xf32>, vector<128x512xf32>, vector<8x512xf32> -> vector<8x512xf32>
    %64 = arith.addf %61, %63 : vector<8x512xf32>
    %65 = vector.extract_strided_slice %64 {offsets = [0, 0], sizes = [8, 128], strides = [1, 1]} : vector<8x512xf32> to vector<8x128xf32>
    %66 = arith.negf %65 : vector<8x128xf32>
    %67 = math.exp %66 : vector<8x128xf32>
    %cst_38 = arith.constant 1.000000e+00 : f32
    %68 = vector.broadcast %cst_38 : f32 to vector<8x128xf32>
    %69 = arith.addf %68, %67 : vector<8x128xf32>
    %70 = arith.divf %68, %69 : vector<8x128xf32>
    %71 = vector.extract_strided_slice %64 {offsets = [0, 128], sizes = [8, 128], strides = [1, 1]} : vector<8x512xf32> to vector<8x128xf32>
    %72 = arith.negf %71 : vector<8x128xf32>
    %73 = math.exp %72 : vector<8x128xf32>
    %cst_39 = arith.constant 1.000000e+00 : f32
    %74 = vector.broadcast %cst_39 : f32 to vector<8x128xf32>
    %75 = arith.addf %74, %73 : vector<8x128xf32>
    %76 = arith.divf %74, %75 : vector<8x128xf32>
    %77 = vector.extract_strided_slice %64 {offsets = [0, 256], sizes = [8, 128], strides = [1, 1]} : vector<8x512xf32> to vector<8x128xf32>
    %78 = math.tanh %77 : vector<8x128xf32>
    %79 = vector.extract_strided_slice %64 {offsets = [0, 384], sizes = [8, 128], strides = [1, 1]} : vector<8x512xf32> to vector<8x128xf32>
    %80 = arith.negf %79 : vector<8x128xf32>
    %81 = math.exp %80 : vector<8x128xf32>
    %cst_40 = arith.constant 1.000000e+00 : f32
    %82 = vector.broadcast %cst_40 : f32 to vector<8x128xf32>
    %83 = arith.addf %82, %81 : vector<8x128xf32>
    %84 = arith.divf %82, %83 : vector<8x128xf32>
    %85 = arith.mulf %76, %57 : vector<8x128xf32>
    %86 = arith.mulf %70, %78 : vector<8x128xf32>
    %87 = arith.addf %85, %86 : vector<8x128xf32>
    %88 = math.tanh %87 : vector<8x128xf32>
    %89 = arith.mulf %84, %88 : vector<8x128xf32>
    %90 = arith.addi %11, %c1_i32 : i32
    %c8_i32_41 = arith.constant 8 : i32
    %91 = arith.cmpi slt, %90, %c8_i32_41 : i32
    %92 = arith.select %91, %89, %56 : vector<8x128xf32>
    %c0_42 = arith.constant 0 : index
    %c0_43 = arith.constant 0 : index
    %93 = vector.load %arg9[%c0_42, %c0_43] : memref<8x128xf32, #tpu.memory_space<vmem>>, vector<8x128xf32>
    tpu.vector_store %arg9[%c0_42, %c0_43], %92 {strides = array<i32>} : memref<8x128xf32, #tpu.memory_space<vmem>>, vector<8x128xf32>,
    %94 = arith.select %91, %87, %57 : vector<8x128xf32>
    %c0_44 = arith.constant 0 : index
    %c0_45 = arith.constant 0 : index
    %95 = vector.load %arg10[%c0_44, %c0_45] : memref<8x128xf32, #tpu.memory_space<vmem>>, vector<8x128xf32>
    tpu.vector_store %arg10[%c0_44, %c0_45], %94 {strides = array<i32>} : memref<8x128xf32, #tpu.memory_space<vmem>>, vector<8x128xf32>,
    %96 = arith.index_cast %c1_i32 : i32 to index
    %c0_46 = arith.constant 0 : index
    %c0_47 = arith.constant 0 : index
    %97 = vector.load %arg6[%96, %c0_46, %c0_47] : memref<8x8x128xf32, #tpu.memory_space<vmem>>, vector<1x8x128xf32>
    %98 = vector.shape_cast %97 : vector<1x8x128xf32> to vector<8x128xf32>
    %99 = vector.shape_cast %89 : vector<8x128xf32> to vector<1x8x128xf32>
    tpu.vector_store %arg6[%96, %c0_46, %c0_47], %99 {strides = array<i32>} : memref<8x8x128xf32, #tpu.memory_space<vmem>>, vector<1x8x128xf32>,
    %c2_i32 = arith.constant 2 : i32
    %c0_48 = arith.constant 0 : index
    %c0_49 = arith.constant 0 : index
    %100 = vector.load %arg9[%c0_48, %c0_49] : memref<8x128xf32, #tpu.memory_space<vmem>>, vector<8x128xf32>
    %c0_50 = arith.constant 0 : index
    %c0_51 = arith.constant 0 : index
    %101 = vector.load %arg10[%c0_50, %c0_51] : memref<8x128xf32, #tpu.memory_space<vmem>>, vector<8x128xf32>
    %c8_i32_52 = arith.constant 8 : i32
    %102 = arith.muli %c2_i32, %c8_i32_52 : i32
    %103 = tpu.assume_multiple %102, 8 : i32
    %104 = arith.index_cast %103 : i32 to index
    %c0_53 = arith.constant 0 : index
    %105 = vector.load %arg11[%104, %c0_53] : memref<64x512xf32, #tpu.memory_space<vmem>>, vector<8x512xf32>
    %c0_54 = arith.constant 0 : index
    %c0_55 = arith.constant 0 : index
    %106 = vector.load %arg4[%c0_54, %c0_55] : memref<128x512xf32, #tpu.memory_space<vmem>>, vector<128x512xf32>
    %cst_56 = arith.constant dense<0.000000e+00> : vector<8x512xf32>
    %107 = tpu.matmul %100, %106, %cst_56 {dimension_numbers = #tpu.dot_dimension_numbers<[1], [0], [0], [1], [0, 0, 1, 1], [], []>} : vector<8x128xf32>, vector<128x512xf32>, vector<8x512xf32> -> vector<8x512xf32>
    %108 = arith.addf %105, %107 : vector<8x512xf32>
    %109 = vector.extract_strided_slice %108 {offsets = [0, 0], sizes = [8, 128], strides = [1, 1]} : vector<8x512xf32> to vector<8x128xf32>
    %110 = arith.negf %109 : vector<8x128xf32>
    %111 = math.exp %110 : vector<8x128xf32>
    %cst_57 = arith.constant 1.000000e+00 : f32
    %112 = vector.broadcast %cst_57 : f32 to vector<8x128xf32>
    %113 = arith.addf %112, %111 : vector<8x128xf32>
    %114 = arith.divf %112, %113 : vector<8x128xf32>
    %115 = vector.extract_strided_slice %108 {offsets = [0, 128], sizes = [8, 128], strides = [1, 1]} : vector<8x512xf32> to vector<8x128xf32>
    %116 = arith.negf %115 : vector<8x128xf32>
    %117 = math.exp %116 : vector<8x128xf32>
    %cst_58 = arith.constant 1.000000e+00 : f32
    %118 = vector.broadcast %cst_58 : f32 to vector<8x128xf32>
    %119 = arith.addf %118, %117 : vector<8x128xf32>
    %120 = arith.divf %118, %119 : vector<8x128xf32>
    %121 = vector.extract_strided_slice %108 {offsets = [0, 256], sizes = [8, 128], strides = [1, 1]} : vector<8x512xf32> to vector<8x128xf32>
    %122 = math.tanh %121 : vector<8x128xf32>
    %123 = vector.extract_strided_slice %108 {offsets = [0, 384], sizes = [8, 128], strides = [1, 1]} : vector<8x512xf32> to vector<8x128xf32>
    %124 = arith.negf %123 : vector<8x128xf32>
    %125 = math.exp %124 : vector<8x128xf32>
    %cst_59 = arith.constant 1.000000e+00 : f32
    %126 = vector.broadcast %cst_59 : f32 to vector<8x128xf32>
    %127 = arith.addf %126, %125 : vector<8x128xf32>
    %128 = arith.divf %126, %127 : vector<8x128xf32>
    %129 = arith.mulf %120, %101 : vector<8x128xf32>
    %130 = arith.mulf %114, %122 : vector<8x128xf32>
    %131 = arith.addf %129, %130 : vector<8x128xf32>
    %132 = math.tanh %131 : vector<8x128xf32>
    %133 = arith.mulf %128, %132 : vector<8x128xf32>
    %134 = arith.addi %11, %c2_i32 : i32
    %c8_i32_60 = arith.constant 8 : i32
    %135 = arith.cmpi slt, %134, %c8_i32_60 : i32
    %136 = arith.select %135, %133, %100 : vector<8x128xf32>
    %c0_61 = arith.constant 0 : index
    %c0_62 = arith.constant 0 : index
    %137 = vector.load %arg9[%c0_61, %c0_62] : memref<8x128xf32, #tpu.memory_space<vmem>>, vector<8x128xf32>
    tpu.vector_store %arg9[%c0_61, %c0_62], %136 {strides = array<i32>} : memref<8x128xf32, #tpu.memory_space<vmem>>, vector<8x128xf32>,
    %138 = arith.select %135, %131, %101 : vector<8x128xf32>
    %c0_63 = arith.constant 0 : index
    %c0_64 = arith.constant 0 : index
    %139 = vector.load %arg10[%c0_63, %c0_64] : memref<8x128xf32, #tpu.memory_space<vmem>>, vector<8x128xf32>
    tpu.vector_store %arg10[%c0_63, %c0_64], %138 {strides = array<i32>} : memref<8x128xf32, #tpu.memory_space<vmem>>, vector<8x128xf32>,
    %140 = arith.index_cast %c2_i32 : i32 to index
    %c0_65 = arith.constant 0 : index
    %c0_66 = arith.constant 0 : index
    %141 = vector.load %arg6[%140, %c0_65, %c0_66] : memref<8x8x128xf32, #tpu.memory_space<vmem>>, vector<1x8x128xf32>
    %142 = vector.shape_cast %141 : vector<1x8x128xf32> to vector<8x128xf32>
    %143 = vector.shape_cast %133 : vector<8x128xf32> to vector<1x8x128xf32>
    tpu.vector_store %arg6[%140, %c0_65, %c0_66], %143 {strides = array<i32>} : memref<8x8x128xf32, #tpu.memory_space<vmem>>, vector<1x8x128xf32>,
    %c3_i32 = arith.constant 3 : i32
    %c0_67 = arith.constant 0 : index
    %c0_68 = arith.constant 0 : index
    %144 = vector.load %arg9[%c0_67, %c0_68] : memref<8x128xf32, #tpu.memory_space<vmem>>, vector<8x128xf32>
    %c0_69 = arith.constant 0 : index
    %c0_70 = arith.constant 0 : index
    %145 = vector.load %arg10[%c0_69, %c0_70] : memref<8x128xf32, #tpu.memory_space<vmem>>, vector<8x128xf32>
    %c8_i32_71 = arith.constant 8 : i32
    %146 = arith.muli %c3_i32, %c8_i32_71 : i32
    %147 = tpu.assume_multiple %146, 8 : i32
    %148 = arith.index_cast %147 : i32 to index
    %c0_72 = arith.constant 0 : index
    %149 = vector.load %arg11[%148, %c0_72] : memref<64x512xf32, #tpu.memory_space<vmem>>, vector<8x512xf32>
    %c0_73 = arith.constant 0 : index
    %c0_74 = arith.constant 0 : index
    %150 = vector.load %arg4[%c0_73, %c0_74] : memref<128x512xf32, #tpu.memory_space<vmem>>, vector<128x512xf32>
    %cst_75 = arith.constant dense<0.000000e+00> : vector<8x512xf32>
    %151 = tpu.matmul %144, %150, %cst_75 {dimension_numbers = #tpu.dot_dimension_numbers<[1], [0], [0], [1], [0, 0, 1, 1], [], []>} : vector<8x128xf32>, vector<128x512xf32>, vector<8x512xf32> -> vector<8x512xf32>
    %152 = arith.addf %149, %151 : vector<8x512xf32>
    %153 = vector.extract_strided_slice %152 {offsets = [0, 0], sizes = [8, 128], strides = [1, 1]} : vector<8x512xf32> to vector<8x128xf32>
    %154 = arith.negf %153 : vector<8x128xf32>
    %155 = math.exp %154 : vector<8x128xf32>
    %cst_76 = arith.constant 1.000000e+00 : f32
    %156 = vector.broadcast %cst_76 : f32 to vector<8x128xf32>
    %157 = arith.addf %156, %155 : vector<8x128xf32>
    %158 = arith.divf %156, %157 : vector<8x128xf32>
    %159 = vector.extract_strided_slice %152 {offsets = [0, 128], sizes = [8, 128], strides = [1, 1]} : vector<8x512xf32> to vector<8x128xf32>
    %160 = arith.negf %159 : vector<8x128xf32>
    %161 = math.exp %160 : vector<8x128xf32>
    %cst_77 = arith.constant 1.000000e+00 : f32
    %162 = vector.broadcast %cst_77 : f32 to vector<8x128xf32>
    %163 = arith.addf %162, %161 : vector<8x128xf32>
    %164 = arith.divf %162, %163 : vector<8x128xf32>
    %165 = vector.extract_strided_slice %152 {offsets = [0, 256], sizes = [8, 128], strides = [1, 1]} : vector<8x512xf32> to vector<8x128xf32>
    %166 = math.tanh %165 : vector<8x128xf32>
    %167 = vector.extract_strided_slice %152 {offsets = [0, 384], sizes = [8, 128], strides = [1, 1]} : vector<8x512xf32> to vector<8x128xf32>
    %168 = arith.negf %167 : vector<8x128xf32>
    %169 = math.exp %168 : vector<8x128xf32>
    %cst_78 = arith.constant 1.000000e+00 : f32
    %170 = vector.broadcast %cst_78 : f32 to vector<8x128xf32>
    %171 = arith.addf %170, %169 : vector<8x128xf32>
    %172 = arith.divf %170, %171 : vector<8x128xf32>
    %173 = arith.mulf %164, %145 : vector<8x128xf32>
    %174 = arith.mulf %158, %166 : vector<8x128xf32>
    %175 = arith.addf %173, %174 : vector<8x128xf32>
    %176 = math.tanh %175 : vector<8x128xf32>
    %177 = arith.mulf %172, %176 : vector<8x128xf32>
    %178 = arith.addi %11, %c3_i32 : i32
    %c8_i32_79 = arith.constant 8 : i32
    %179 = arith.cmpi slt, %178, %c8_i32_79 : i32
    %180 = arith.select %179, %177, %144 : vector<8x128xf32>
    %c0_80 = arith.constant 0 : index
    %c0_81 = arith.constant 0 : index
    %181 = vector.load %arg9[%c0_80, %c0_81] : memref<8x128xf32, #tpu.memory_space<vmem>>, vector<8x128xf32>
    tpu.vector_store %arg9[%c0_80, %c0_81], %180 {strides = array<i32>} : memref<8x128xf32, #tpu.memory_space<vmem>>, vector<8x128xf32>,
    %182 = arith.select %179, %175, %145 : vector<8x128xf32>
    %c0_82 = arith.constant 0 : index
    %c0_83 = arith.constant 0 : index
    %183 = vector.load %arg10[%c0_82, %c0_83] : memref<8x128xf32, #tpu.memory_space<vmem>>, vector<8x128xf32>
    tpu.vector_store %arg10[%c0_82, %c0_83], %182 {strides = array<i32>} : memref<8x128xf32, #tpu.memory_space<vmem>>, vector<8x128xf32>,
    %184 = arith.index_cast %c3_i32 : i32 to index
    %c0_84 = arith.constant 0 : index
    %c0_85 = arith.constant 0 : index
    %185 = vector.load %arg6[%184, %c0_84, %c0_85] : memref<8x8x128xf32, #tpu.memory_space<vmem>>, vector<1x8x128xf32>
    %186 = vector.shape_cast %185 : vector<1x8x128xf32> to vector<8x128xf32>
    %187 = vector.shape_cast %177 : vector<8x128xf32> to vector<1x8x128xf32>
    tpu.vector_store %arg6[%184, %c0_84, %c0_85], %187 {strides = array<i32>} : memref<8x8x128xf32, #tpu.memory_space<vmem>>, vector<1x8x128xf32>,
    %c4_i32 = arith.constant 4 : i32
    %c0_86 = arith.constant 0 : index
    %c0_87 = arith.constant 0 : index
    %188 = vector.load %arg9[%c0_86, %c0_87] : memref<8x128xf32, #tpu.memory_space<vmem>>, vector<8x128xf32>
    %c0_88 = arith.constant 0 : index
    %c0_89 = arith.constant 0 : index
    %189 = vector.load %arg10[%c0_88, %c0_89] : memref<8x128xf32, #tpu.memory_space<vmem>>, vector<8x128xf32>
    %c8_i32_90 = arith.constant 8 : i32
    %190 = arith.muli %c4_i32, %c8_i32_90 : i32
    %191 = tpu.assume_multiple %190, 8 : i32
    %192 = arith.index_cast %191 : i32 to index
    %c0_91 = arith.constant 0 : index
    %193 = vector.load %arg11[%192, %c0_91] : memref<64x512xf32, #tpu.memory_space<vmem>>, vector<8x512xf32>
    %c0_92 = arith.constant 0 : index
    %c0_93 = arith.constant 0 : index
    %194 = vector.load %arg4[%c0_92, %c0_93] : memref<128x512xf32, #tpu.memory_space<vmem>>, vector<128x512xf32>
    %cst_94 = arith.constant dense<0.000000e+00> : vector<8x512xf32>
    %195 = tpu.matmul %188, %194, %cst_94 {dimension_numbers = #tpu.dot_dimension_numbers<[1], [0], [0], [1], [0, 0, 1, 1], [], []>} : vector<8x128xf32>, vector<128x512xf32>, vector<8x512xf32> -> vector<8x512xf32>
    %196 = arith.addf %193, %195 : vector<8x512xf32>
    %197 = vector.extract_strided_slice %196 {offsets = [0, 0], sizes = [8, 128], strides = [1, 1]} : vector<8x512xf32> to vector<8x128xf32>
    %198 = arith.negf %197 : vector<8x128xf32>
    %199 = math.exp %198 : vector<8x128xf32>
    %cst_95 = arith.constant 1.000000e+00 : f32
    %200 = vector.broadcast %cst_95 : f32 to vector<8x128xf32>
    %201 = arith.addf %200, %199 : vector<8x128xf32>
    %202 = arith.divf %200, %201 : vector<8x128xf32>
    %203 = vector.extract_strided_slice %196 {offsets = [0, 128], sizes = [8, 128], strides = [1, 1]} : vector<8x512xf32> to vector<8x128xf32>
    %204 = arith.negf %203 : vector<8x128xf32>
    %205 = math.exp %204 : vector<8x128xf32>
    %cst_96 = arith.constant 1.000000e+00 : f32
    %206 = vector.broadcast %cst_96 : f32 to vector<8x128xf32>
    %207 = arith.addf %206, %205 : vector<8x128xf32>
    %208 = arith.divf %206, %207 : vector<8x128xf32>
    %209 = vector.extract_strided_slice %196 {offsets = [0, 256], sizes = [8, 128], strides = [1, 1]} : vector<8x512xf32> to vector<8x128xf32>
    %210 = math.tanh %209 : vector<8x128xf32>
    %211 = vector.extract_strided_slice %196 {offsets = [0, 384], sizes = [8, 128], strides = [1, 1]} : vector<8x512xf32> to vector<8x128xf32>
    %212 = arith.negf %211 : vector<8x128xf32>
    %213 = math.exp %212 : vector<8x128xf32>
    %cst_97 = arith.constant 1.000000e+00 : f32
    %214 = vector.broadcast %cst_97 : f32 to vector<8x128xf32>
    %215 = arith.addf %214, %213 : vector<8x128xf32>
    %216 = arith.divf %214, %215 : vector<8x128xf32>
    %217 = arith.mulf %208, %189 : vector<8x128xf32>
    %218 = arith.mulf %202, %210 : vector<8x128xf32>
    %219 = arith.addf %217, %218 : vector<8x128xf32>
    %220 = math.tanh %219 : vector<8x128xf32>
    %221 = arith.mulf %216, %220 : vector<8x128xf32>
    %222 = arith.addi %11, %c4_i32 : i32
    %c8_i32_98 = arith.constant 8 : i32
    %223 = arith.cmpi slt, %222, %c8_i32_98 : i32
    %224 = arith.select %223, %221, %188 : vector<8x128xf32>
    %c0_99 = arith.constant 0 : index
    %c0_100 = arith.constant 0 : index
    %225 = vector.load %arg9[%c0_99, %c0_100] : memref<8x128xf32, #tpu.memory_space<vmem>>, vector<8x128xf32>
    tpu.vector_store %arg9[%c0_99, %c0_100], %224 {strides = array<i32>} : memref<8x128xf32, #tpu.memory_space<vmem>>, vector<8x128xf32>,
    %226 = arith.select %223, %219, %189 : vector<8x128xf32>
    %c0_101 = arith.constant 0 : index
    %c0_102 = arith.constant 0 : index
    %227 = vector.load %arg10[%c0_101, %c0_102] : memref<8x128xf32, #tpu.memory_space<vmem>>, vector<8x128xf32>
    tpu.vector_store %arg10[%c0_101, %c0_102], %226 {strides = array<i32>} : memref<8x128xf32, #tpu.memory_space<vmem>>, vector<8x128xf32>,
    %228 = arith.index_cast %c4_i32 : i32 to index
    %c0_103 = arith.constant 0 : index
    %c0_104 = arith.constant 0 : index
    %229 = vector.load %arg6[%228, %c0_103, %c0_104] : memref<8x8x128xf32, #tpu.memory_space<vmem>>, vector<1x8x128xf32>
    %230 = vector.shape_cast %229 : vector<1x8x128xf32> to vector<8x128xf32>
    %231 = vector.shape_cast %221 : vector<8x128xf32> to vector<1x8x128xf32>
    tpu.vector_store %arg6[%228, %c0_103, %c0_104], %231 {strides = array<i32>} : memref<8x8x128xf32, #tpu.memory_space<vmem>>, vector<1x8x128xf32>,
    %c5_i32 = arith.constant 5 : i32
    %c0_105 = arith.constant 0 : index
    %c0_106 = arith.constant 0 : index
    %232 = vector.load %arg9[%c0_105, %c0_106] : memref<8x128xf32, #tpu.memory_space<vmem>>, vector<8x128xf32>
    %c0_107 = arith.constant 0 : index
    %c0_108 = arith.constant 0 : index
    %233 = vector.load %arg10[%c0_107, %c0_108] : memref<8x128xf32, #tpu.memory_space<vmem>>, vector<8x128xf32>
    %c8_i32_109 = arith.constant 8 : i32
    %234 = arith.muli %c5_i32, %c8_i32_109 : i32
    %235 = tpu.assume_multiple %234, 8 : i32
    %236 = arith.index_cast %235 : i32 to index
    %c0_110 = arith.constant 0 : index
    %237 = vector.load %arg11[%236, %c0_110] : memref<64x512xf32, #tpu.memory_space<vmem>>, vector<8x512xf32>
    %c0_111 = arith.constant 0 : index
    %c0_112 = arith.constant 0 : index
    %238 = vector.load %arg4[%c0_111, %c0_112] : memref<128x512xf32, #tpu.memory_space<vmem>>, vector<128x512xf32>
    %cst_113 = arith.constant dense<0.000000e+00> : vector<8x512xf32>
    %239 = tpu.matmul %232, %238, %cst_113 {dimension_numbers = #tpu.dot_dimension_numbers<[1], [0], [0], [1], [0, 0, 1, 1], [], []>} : vector<8x128xf32>, vector<128x512xf32>, vector<8x512xf32> -> vector<8x512xf32>
    %240 = arith.addf %237, %239 : vector<8x512xf32>
    %241 = vector.extract_strided_slice %240 {offsets = [0, 0], sizes = [8, 128], strides = [1, 1]} : vector<8x512xf32> to vector<8x128xf32>
    %242 = arith.negf %241 : vector<8x128xf32>
    %243 = math.exp %242 : vector<8x128xf32>
    %cst_114 = arith.constant 1.000000e+00 : f32
    %244 = vector.broadcast %cst_114 : f32 to vector<8x128xf32>
    %245 = arith.addf %244, %243 : vector<8x128xf32>
    %246 = arith.divf %244, %245 : vector<8x128xf32>
    %247 = vector.extract_strided_slice %240 {offsets = [0, 128], sizes = [8, 128], strides = [1, 1]} : vector<8x512xf32> to vector<8x128xf32>
    %248 = arith.negf %247 : vector<8x128xf32>
    %249 = math.exp %248 : vector<8x128xf32>
    %cst_115 = arith.constant 1.000000e+00 : f32
    %250 = vector.broadcast %cst_115 : f32 to vector<8x128xf32>
    %251 = arith.addf %250, %249 : vector<8x128xf32>
    %252 = arith.divf %250, %251 : vector<8x128xf32>
    %253 = vector.extract_strided_slice %240 {offsets = [0, 256], sizes = [8, 128], strides = [1, 1]} : vector<8x512xf32> to vector<8x128xf32>
    %254 = math.tanh %253 : vector<8x128xf32>
    %255 = vector.extract_strided_slice %240 {offsets = [0, 384], sizes = [8, 128], strides = [1, 1]} : vector<8x512xf32> to vector<8x128xf32>
    %256 = arith.negf %255 : vector<8x128xf32>
    %257 = math.exp %256 : vector<8x128xf32>
    %cst_116 = arith.constant 1.000000e+00 : f32
    %258 = vector.broadcast %cst_116 : f32 to vector<8x128xf32>
    %259 = arith.addf %258, %257 : vector<8x128xf32>
    %260 = arith.divf %258, %259 : vector<8x128xf32>
    %261 = arith.mulf %252, %233 : vector<8x128xf32>
    %262 = arith.mulf %246, %254 : vector<8x128xf32>
    %263 = arith.addf %261, %262 : vector<8x128xf32>
    %264 = math.tanh %263 : vector<8x128xf32>
    %265 = arith.mulf %260, %264 : vector<8x128xf32>
    %266 = arith.addi %11, %c5_i32 : i32
    %c8_i32_117 = arith.constant 8 : i32
    %267 = arith.cmpi slt, %266, %c8_i32_117 : i32
    %268 = arith.select %267, %265, %232 : vector<8x128xf32>
    %c0_118 = arith.constant 0 : index
    %c0_119 = arith.constant 0 : index
    %269 = vector.load %arg9[%c0_118, %c0_119] : memref<8x128xf32, #tpu.memory_space<vmem>>, vector<8x128xf32>
    tpu.vector_store %arg9[%c0_118, %c0_119], %268 {strides = array<i32>} : memref<8x128xf32, #tpu.memory_space<vmem>>, vector<8x128xf32>,
    %270 = arith.select %267, %263, %233 : vector<8x128xf32>
    %c0_120 = arith.constant 0 : index
    %c0_121 = arith.constant 0 : index
    %271 = vector.load %arg10[%c0_120, %c0_121] : memref<8x128xf32, #tpu.memory_space<vmem>>, vector<8x128xf32>
    tpu.vector_store %arg10[%c0_120, %c0_121], %270 {strides = array<i32>} : memref<8x128xf32, #tpu.memory_space<vmem>>, vector<8x128xf32>,
    %272 = arith.index_cast %c5_i32 : i32 to index
    %c0_122 = arith.constant 0 : index
    %c0_123 = arith.constant 0 : index
    %273 = vector.load %arg6[%272, %c0_122, %c0_123] : memref<8x8x128xf32, #tpu.memory_space<vmem>>, vector<1x8x128xf32>
    %274 = vector.shape_cast %273 : vector<1x8x128xf32> to vector<8x128xf32>
    %275 = vector.shape_cast %265 : vector<8x128xf32> to vector<1x8x128xf32>
    tpu.vector_store %arg6[%272, %c0_122, %c0_123], %275 {strides = array<i32>} : memref<8x8x128xf32, #tpu.memory_space<vmem>>, vector<1x8x128xf32>,
    %c6_i32 = arith.constant 6 : i32
    %c0_124 = arith.constant 0 : index
    %c0_125 = arith.constant 0 : index
    %276 = vector.load %arg9[%c0_124, %c0_125] : memref<8x128xf32, #tpu.memory_space<vmem>>, vector<8x128xf32>
    %c0_126 = arith.constant 0 : index
    %c0_127 = arith.constant 0 : index
    %277 = vector.load %arg10[%c0_126, %c0_127] : memref<8x128xf32, #tpu.memory_space<vmem>>, vector<8x128xf32>
    %c8_i32_128 = arith.constant 8 : i32
    %278 = arith.muli %c6_i32, %c8_i32_128 : i32
    %279 = tpu.assume_multiple %278, 8 : i32
    %280 = arith.index_cast %279 : i32 to index
    %c0_129 = arith.constant 0 : index
    %281 = vector.load %arg11[%280, %c0_129] : memref<64x512xf32, #tpu.memory_space<vmem>>, vector<8x512xf32>
    %c0_130 = arith.constant 0 : index
    %c0_131 = arith.constant 0 : index
    %282 = vector.load %arg4[%c0_130, %c0_131] : memref<128x512xf32, #tpu.memory_space<vmem>>, vector<128x512xf32>
    %cst_132 = arith.constant dense<0.000000e+00> : vector<8x512xf32>
    %283 = tpu.matmul %276, %282, %cst_132 {dimension_numbers = #tpu.dot_dimension_numbers<[1], [0], [0], [1], [0, 0, 1, 1], [], []>} : vector<8x128xf32>, vector<128x512xf32>, vector<8x512xf32> -> vector<8x512xf32>
    %284 = arith.addf %281, %283 : vector<8x512xf32>
    %285 = vector.extract_strided_slice %284 {offsets = [0, 0], sizes = [8, 128], strides = [1, 1]} : vector<8x512xf32> to vector<8x128xf32>
    %286 = arith.negf %285 : vector<8x128xf32>
    %287 = math.exp %286 : vector<8x128xf32>
    %cst_133 = arith.constant 1.000000e+00 : f32
    %288 = vector.broadcast %cst_133 : f32 to vector<8x128xf32>
    %289 = arith.addf %288, %287 : vector<8x128xf32>
    %290 = arith.divf %288, %289 : vector<8x128xf32>
    %291 = vector.extract_strided_slice %284 {offsets = [0, 128], sizes = [8, 128], strides = [1, 1]} : vector<8x512xf32> to vector<8x128xf32>
    %292 = arith.negf %291 : vector<8x128xf32>
    %293 = math.exp %292 : vector<8x128xf32>
    %cst_134 = arith.constant 1.000000e+00 : f32
    %294 = vector.broadcast %cst_134 : f32 to vector<8x128xf32>
    %295 = arith.addf %294, %293 : vector<8x128xf32>
    %296 = arith.divf %294, %295 : vector<8x128xf32>
    %297 = vector.extract_strided_slice %284 {offsets = [0, 256], sizes = [8, 128], strides = [1, 1]} : vector<8x512xf32> to vector<8x128xf32>
    %298 = math.tanh %297 : vector<8x128xf32>
    %299 = vector.extract_strided_slice %284 {offsets = [0, 384], sizes = [8, 128], strides = [1, 1]} : vector<8x512xf32> to vector<8x128xf32>
    %300 = arith.negf %299 : vector<8x128xf32>
    %301 = math.exp %300 : vector<8x128xf32>
    %cst_135 = arith.constant 1.000000e+00 : f32
    %302 = vector.broadcast %cst_135 : f32 to vector<8x128xf32>
    %303 = arith.addf %302, %301 : vector<8x128xf32>
    %304 = arith.divf %302, %303 : vector<8x128xf32>
    %305 = arith.mulf %296, %277 : vector<8x128xf32>
    %306 = arith.mulf %290, %298 : vector<8x128xf32>
    %307 = arith.addf %305, %306 : vector<8x128xf32>
    %308 = math.tanh %307 : vector<8x128xf32>
    %309 = arith.mulf %304, %308 : vector<8x128xf32>
    %310 = arith.addi %11, %c6_i32 : i32
    %c8_i32_136 = arith.constant 8 : i32
    %311 = arith.cmpi slt, %310, %c8_i32_136 : i32
    %312 = arith.select %311, %309, %276 : vector<8x128xf32>
    %c0_137 = arith.constant 0 : index
    %c0_138 = arith.constant 0 : index
    %313 = vector.load %arg9[%c0_137, %c0_138] : memref<8x128xf32, #tpu.memory_space<vmem>>, vector<8x128xf32>
    tpu.vector_store %arg9[%c0_137, %c0_138], %312 {strides = array<i32>} : memref<8x128xf32, #tpu.memory_space<vmem>>, vector<8x128xf32>,
    %314 = arith.select %311, %307, %277 : vector<8x128xf32>
    %c0_139 = arith.constant 0 : index
    %c0_140 = arith.constant 0 : index
    %315 = vector.load %arg10[%c0_139, %c0_140] : memref<8x128xf32, #tpu.memory_space<vmem>>, vector<8x128xf32>
    tpu.vector_store %arg10[%c0_139, %c0_140], %314 {strides = array<i32>} : memref<8x128xf32, #tpu.memory_space<vmem>>, vector<8x128xf32>,
    %316 = arith.index_cast %c6_i32 : i32 to index
    %c0_141 = arith.constant 0 : index
    %c0_142 = arith.constant 0 : index
    %317 = vector.load %arg6[%316, %c0_141, %c0_142] : memref<8x8x128xf32, #tpu.memory_space<vmem>>, vector<1x8x128xf32>
    %318 = vector.shape_cast %317 : vector<1x8x128xf32> to vector<8x128xf32>
    %319 = vector.shape_cast %309 : vector<8x128xf32> to vector<1x8x128xf32>
    tpu.vector_store %arg6[%316, %c0_141, %c0_142], %319 {strides = array<i32>} : memref<8x8x128xf32, #tpu.memory_space<vmem>>, vector<1x8x128xf32>,
    %c7_i32 = arith.constant 7 : i32
    %c0_143 = arith.constant 0 : index
    %c0_144 = arith.constant 0 : index
    %320 = vector.load %arg9[%c0_143, %c0_144] : memref<8x128xf32, #tpu.memory_space<vmem>>, vector<8x128xf32>
    %c0_145 = arith.constant 0 : index
    %c0_146 = arith.constant 0 : index
    %321 = vector.load %arg10[%c0_145, %c0_146] : memref<8x128xf32, #tpu.memory_space<vmem>>, vector<8x128xf32>
    %c8_i32_147 = arith.constant 8 : i32
    %322 = arith.muli %c7_i32, %c8_i32_147 : i32
    %323 = tpu.assume_multiple %322, 8 : i32
    %324 = arith.index_cast %323 : i32 to index
    %c0_148 = arith.constant 0 : index
    %325 = vector.load %arg11[%324, %c0_148] : memref<64x512xf32, #tpu.memory_space<vmem>>, vector<8x512xf32>
    %c0_149 = arith.constant 0 : index
    %c0_150 = arith.constant 0 : index
    %326 = vector.load %arg4[%c0_149, %c0_150] : memref<128x512xf32, #tpu.memory_space<vmem>>, vector<128x512xf32>
    %cst_151 = arith.constant dense<0.000000e+00> : vector<8x512xf32>
    %327 = tpu.matmul %320, %326, %cst_151 {dimension_numbers = #tpu.dot_dimension_numbers<[1], [0], [0], [1], [0, 0, 1, 1], [], []>} : vector<8x128xf32>, vector<128x512xf32>, vector<8x512xf32> -> vector<8x512xf32>
    %328 = arith.addf %325, %327 : vector<8x512xf32>
    %329 = vector.extract_strided_slice %328 {offsets = [0, 0], sizes = [8, 128], strides = [1, 1]} : vector<8x512xf32> to vector<8x128xf32>
    %330 = arith.negf %329 : vector<8x128xf32>
    %331 = math.exp %330 : vector<8x128xf32>
    %cst_152 = arith.constant 1.000000e+00 : f32
    %332 = vector.broadcast %cst_152 : f32 to vector<8x128xf32>
    %333 = arith.addf %332, %331 : vector<8x128xf32>
    %334 = arith.divf %332, %333 : vector<8x128xf32>
    %335 = vector.extract_strided_slice %328 {offsets = [0, 128], sizes = [8, 128], strides = [1, 1]} : vector<8x512xf32> to vector<8x128xf32>
    %336 = arith.negf %335 : vector<8x128xf32>
    %337 = math.exp %336 : vector<8x128xf32>
    %cst_153 = arith.constant 1.000000e+00 : f32
    %338 = vector.broadcast %cst_153 : f32 to vector<8x128xf32>
    %339 = arith.addf %338, %337 : vector<8x128xf32>
    %340 = arith.divf %338, %339 : vector<8x128xf32>
    %341 = vector.extract_strided_slice %328 {offsets = [0, 256], sizes = [8, 128], strides = [1, 1]} : vector<8x512xf32> to vector<8x128xf32>
    %342 = math.tanh %341 : vector<8x128xf32>
    %343 = vector.extract_strided_slice %328 {offsets = [0, 384], sizes = [8, 128], strides = [1, 1]} : vector<8x512xf32> to vector<8x128xf32>
    %344 = arith.negf %343 : vector<8x128xf32>
    %345 = math.exp %344 : vector<8x128xf32>
    %cst_154 = arith.constant 1.000000e+00 : f32
    %346 = vector.broadcast %cst_154 : f32 to vector<8x128xf32>
    %347 = arith.addf %346, %345 : vector<8x128xf32>
    %348 = arith.divf %346, %347 : vector<8x128xf32>
    %349 = arith.mulf %340, %321 : vector<8x128xf32>
    %350 = arith.mulf %334, %342 : vector<8x128xf32>
    %351 = arith.addf %349, %350 : vector<8x128xf32>
    %352 = math.tanh %351 : vector<8x128xf32>
    %353 = arith.mulf %348, %352 : vector<8x128xf32>
    %354 = arith.addi %11, %c7_i32 : i32
    %c8_i32_155 = arith.constant 8 : i32
    %355 = arith.cmpi slt, %354, %c8_i32_155 : i32
    %356 = arith.select %355, %353, %320 : vector<8x128xf32>
    %c0_156 = arith.constant 0 : index
    %c0_157 = arith.constant 0 : index
    %357 = vector.load %arg9[%c0_156, %c0_157] : memref<8x128xf32, #tpu.memory_space<vmem>>, vector<8x128xf32>
    tpu.vector_store %arg9[%c0_156, %c0_157], %356 {strides = array<i32>} : memref<8x128xf32, #tpu.memory_space<vmem>>, vector<8x128xf32>,
    %358 = arith.select %355, %351, %321 : vector<8x128xf32>
    %c0_158 = arith.constant 0 : index
    %c0_159 = arith.constant 0 : index
    %359 = vector.load %arg10[%c0_158, %c0_159] : memref<8x128xf32, #tpu.memory_space<vmem>>, vector<8x128xf32>
    tpu.vector_store %arg10[%c0_158, %c0_159], %358 {strides = array<i32>} : memref<8x128xf32, #tpu.memory_space<vmem>>, vector<8x128xf32>,
    %360 = arith.index_cast %c7_i32 : i32 to index
    %c0_160 = arith.constant 0 : index
    %c0_161 = arith.constant 0 : index
    %361 = vector.load %arg6[%360, %c0_160, %c0_161] : memref<8x8x128xf32, #tpu.memory_space<vmem>>, vector<1x8x128xf32>
    %362 = vector.shape_cast %361 : vector<1x8x128xf32> to vector<8x128xf32>
    %363 = vector.shape_cast %353 : vector<8x128xf32> to vector<1x8x128xf32>
    tpu.vector_store %arg6[%360, %c0_160, %c0_161], %363 {strides = array<i32>} : memref<8x8x128xf32, #tpu.memory_space<vmem>>, vector<1x8x128xf32>,
    %c8_i32_162 = arith.constant 8 : i32
    %c0_i32_163 = arith.constant 0 : i32
    %364 = arith.cmpi eq, %arg1, %c0_i32_163 : i32
    %365 = arith.extui %364 : i1 to i32
    %c0_i32_164 = arith.constant 0 : i32
    %366 = arith.cmpi ne, %365, %c0_i32_164 : i32
    scf.if %366 {
      %c0_165 = arith.constant 0 : index
      %c0_166 = arith.constant 0 : index
      %367 = vector.load %arg9[%c0_165, %c0_166] : memref<8x128xf32, #tpu.memory_space<vmem>>, vector<8x128xf32>
      %c0_167 = arith.constant 0 : index
      %c0_168 = arith.constant 0 : index
      %368 = vector.load %arg7[%c0_167, %c0_168] : memref<8x128xf32, #tpu.memory_space<vmem>>, vector<8x128xf32>
      tpu.vector_store %arg7[%c0_167, %c0_168], %367 {strides = array<i32>} : memref<8x128xf32, #tpu.memory_space<vmem>>, vector<8x128xf32>,
      %c0_169 = arith.constant 0 : index
      %c0_170 = arith.constant 0 : index
      %369 = vector.load %arg10[%c0_169, %c0_170] : memref<8x128xf32, #tpu.memory_space<vmem>>, vector<8x128xf32>
      %c0_171 = arith.constant 0 : index
      %c0_172 = arith.constant 0 : index
      %370 = vector.load %arg8[%c0_171, %c0_172] : memref<8x128xf32, #tpu.memory_space<vmem>>, vector<8x128xf32>
      tpu.vector_store %arg8[%c0_171, %c0_172], %369 {strides = array<i32>} : memref<8x128xf32, #tpu.memory_space<vmem>>, vector<8x128xf32>,
    } else {
    }
    return
  }
  func.func @transform_0(%arg0: i32, %arg1: i32) -> (i32, i32, i32) {
    %c0_i32 = arith.constant 0 : i32
    %c0_i32_0 = arith.constant 0 : i32
    return %arg1, %arg0, %c0_i32 : i32, i32, i32
  }
  func.func @transform_1(%arg0: i32, %arg1: i32) -> (i32, i32) {
    %c0_i32 = arith.constant 0 : i32
    %c0_i32_0 = arith.constant 0 : i32
    %c0_i32_1 = arith.constant 0 : i32
    return %c0_i32, %c0_i32_0 : i32, i32
  }
  func.func @transform_2(%arg0: i32, %arg1: i32) -> (i32, i32) {
    %c0_i32 = arith.constant 0 : i32
    %c0_i32_0 = arith.constant 0 : i32
    %c0_i32_1 = arith.constant 0 : i32
    return %c0_i32, %c0_i32_0 : i32, i32
  }
  func.func @transform_3(%arg0: i32, %arg1: i32) -> (i32, i32) {
    %c0_i32 = arith.constant 0 : i32
    %c0_i32_0 = arith.constant 0 : i32
    %c0_i32_1 = arith.constant 0 : i32
    return %c0_i32, %c0_i32_0 : i32, i32
  }
  func.func @transform_4(%arg0: i32, %arg1: i32) -> (i32, i32, i32) {
    %c0_i32 = arith.constant 0 : i32
    %c0_i32_0 = arith.constant 0 : i32
    return %arg1, %arg0, %c0_i32 : i32, i32, i32
  }
  func.func @transform_5(%arg0: i32, %arg1: i32) -> (i32, i32) {
    %c0_i32 = arith.constant 0 : i32
    %c0_i32_0 = arith.constant 0 : i32
    return %arg0, %c0_i32 : i32, i32
  }
  func.func @transform_6(%arg0: i32, %arg1: i32) -> (i32, i32) {
    %c0_i32 = arith.constant 0 : i32
    %c0_i32_0 = arith.constant 0 : i32
    return %arg0, %c0_i32 : i32, i32
  }
}

</mosaic_0001>

<llo_original>
// kernel: encoder_forward.1
$region0: #{encoder_forward.1}
  #allocation0 [shape = 'u32[]', space=smem, size = 0x4, offset = 0x4, fixed_abs, tag = 'smem constant byte address 0x4 - core index']
  #allocation1 [shape = 'u32[72,128]{1,0:T(1,128)}', space=vmem, size = 0x9000, scoped, tag = 'internal scratch']
  #allocation2 [shape = 'f32[8,128]{1,0:T(8,128)}', space=vmem, size = 0x1000, scoped, tag = 'scratch operand']
  #allocation3 [shape = 'f32[8,128]{1,0:T(8,128)}', space=vmem, size = 0x1000, scoped, tag = 'scratch operand']
  #allocation4 [shape = 'f32[64,512]{1,0:T(8,128)}', space=vmem, size = 0x20000, scoped, tag = 'scratch operand']
  %s0 = inlined_call_operand.vmem [shape: f32[8,8,32], index: 0, kind: input, shape index: {}]
  %s1 = inlined_call_operand.vmem [shape: f32[32,512], index: 1, kind: input, shape index: {}]
  %s2 = inlined_call_operand.vmem [shape: f32[128,512], index: 2, kind: input, shape index: {}]
  %s3 = inlined_call_operand.vmem [shape: f32[1,512], index: 3, kind: input, shape index: {}]
  %s4 = inlined_call_operand.vmem [shape: f32[8,8,128], index: 4, kind: output, shape index: {0}]
  %s5 = inlined_call_operand.vmem [shape: f32[8,128], index: 5, kind: output, shape index: {1}]
  %s6 = inlined_call_operand.vmem [shape: f32[8,128], index: 6, kind: output, shape index: {2}]
  %7 = xla_tuple %s4, %s5, %s6
  %s8 = sld [smem:[#allocation0]]
  $region50: #{encoder_forward.1} parent=0
    _
  %s10 = ssub.s32 1, %s8
  %s11 = scalar_select 0, %s10, %s8
  // Predicated region
  $region2: #{encoder_forward.1} parent=0 // pred_check
    _
  $region3: #{encoder_forward.1} parent=0 // pred_check_branch
    %13 = sbr.rel (0) target = $region5
  $region4: #{encoder_forward.1} parent=0 // pred_region
    _
  $region5: #{encoder_forward.1} parent=0 // pred_fallthru
    _
  // Predicated region
  $region6: #{encoder_forward.1} parent=0 // pred_check
    _
  $region7: #{encoder_forward.1} parent=0 // pred_check_branch
    %15 = sbr.rel (0) target = $region9
  $region8: #{encoder_forward.1} parent=0 // pred_region
    _
  $region9: #{encoder_forward.1} parent=0 // pred_fallthru
    _
  // Predicated region
  $region10: #{encoder_forward.1} parent=0 // pred_check
    _
  $region11: #{encoder_forward.1} parent=0 // pred_check_branch
    %17 = sbr.rel (0) target = $region13
  $region12: #{encoder_forward.1} parent=0 // pred_region
    _
  $region13: #{encoder_forward.1} parent=0 // pred_fallthru
    _
  // Predicated region
  $region14: #{encoder_forward.1} parent=0 // pred_check
    _
  $region15: #{encoder_forward.1} parent=0 // pred_check_branch
    %19 = sbr.rel (0) target = $region17
  $region16: #{encoder_forward.1} parent=0 // pred_region
    _
  $region17: #{encoder_forward.1} parent=0 // pred_fallthru
    _
  %p20 = scmp.eq.s32.totalorder 0, 0
  // Predicated region
  $region18: #{encoder_forward.1} parent=0 // pred_check
    %p21 = pneg %p20
  $region19: #{encoder_forward.1} parent=0 // pred_check_branch
    %23 = sbr.rel (%p21) target = $region21
  $region20: #{encoder_forward.1} parent=0 // pred_region
    %24 = vst [vmem:[#allocation2] sm:$0xff] 0.0
    %25 = vst [vmem:[#allocation3] sm:$0xff] 0.0
  $region21: #{encoder_forward.1} parent=0 // pred_fallthru
    _
  %v26 = vld [vmem:[%s0] sm:$0xff]
  %v27 = vld [vmem:[%s0 + $0x8] sm:$0xff]
  %v28 = vld [vmem:[%s0 + $0x10] sm:$0xff]
  %v29 = vld [vmem:[%s0 + $0x18] sm:$0xff]
  %v30 = vld [vmem:[%s0 + $0x20] sm:$0xff]
  %v31 = vld [vmem:[%s0 + $0x28] sm:$0xff]
  %v32 = vld [vmem:[%s0 + $0x30] sm:$0xff]
  %v33 = vld [vmem:[%s0 + $0x38] sm:$0xff]
  %v34 = vld [vmem:[%s1] sm:$0xff]
  %v35 = vld [vmem:[%s1 + $0x8] sm:$0xff]
  %v36 = vld [vmem:[%s1 + $0x10] sm:$0xff]
  %v37 = vld [vmem:[%s1 + $0x18] sm:$0xff]
  %v38 = vld [vmem:[%s1 + $0x20] sm:$0xff]
  %v39 = vld [vmem:[%s1 + $0x28] sm:$0xff]
  %v40 = vld [vmem:[%s1 + $0x30] sm:$0xff]
  %v41 = vld [vmem:[%s1 + $0x38] sm:$0xff]
  %v42 = vld [vmem:[%s1 + $0x40] sm:$0xff]
  %v43 = vld [vmem:[%s1 + $0x48] sm:$0xff]
  %v44 = vld [vmem:[%s1 + $0x50] sm:$0xff]
  %v45 = vld [vmem:[%s1 + $0x58] sm:$0xff]
  %v46 = vld [vmem:[%s1 + $0x60] sm:$0xff]
  %v47 = vld [vmem:[%s1 + $0x68] sm:$0xff]
  %v48 = vld [vmem:[%s1 + $0x70] sm:$0xff]
  %v49 = vld [vmem:[%s1 + $0x78] sm:$0xff]
  %v50 = vld [vmem:[%s3] sm:$0xf]
  %v52 = vperm.slane %v50, 0
  %v53 = vperm.slane %v50, 1
  %v54 = vperm.slane %v50, 2
  %v55 = vperm.slane %v50, 3
  %vm60 = vcmask 261120
  %v62 = vsel %vm60, %v26, 0
  %v65 = vsel %vm60, %v27, 0
  %v68 = vsel %vm60, %v28, 0
  %v71 = vsel %vm60, %v29, 0
  %v74 = vsel %vm60, %v30, 0
  %v77 = vsel %vm60, %v31, 0
  %v80 = vsel %vm60, %v32, 0
  %v83 = vsel %vm60, %v33, 0
  %85 = vmatpush.msra.mxu0 0.0
  %86 = vmatpush.msra.mxu0 0.0
  %87 = vmatpush.msra.mxu0 0.0
  %88 = vmatpush.msra.mxu0 0.0
  %89 = vmatpush.msra.mxu0 0.0
  %90 = vmatpush.msra.mxu0 0.0
  %91 = vmatpush.msra.mxu0 0.0
  %92 = vmatpush.msra.mxu0 0.0
  %93 = vmatpush.msra.mxu0 0.0
  %94 = vmatpush.msra.mxu0 0.0
  %95 = vmatpush.msra.mxu0 0.0
  %96 = vmatpush.msra.mxu0 0.0
  %97 = vmatpush.msra.mxu0 %v46
  %98 = vmatpush.msra.mxu0 %v42
  %99 = vmatpush.msra.mxu0 %v38
  %100 = vmatpush.msra.mxu0 %v34
  %101 = vmatmul.f32.gmra.mxu0 %v62
  %v102 = vpop.f32.mrf.mxu0
  %v103 = vadd.f32 %v52, %v102
  %104 = vmatmul.f32.gmra.mxu0 %v65
  %v105 = vpop.f32.mrf.mxu0
  %v106 = vadd.f32 %v52, %v105
  %107 = vmatmul.f32.gmra.mxu0 %v68
  %v108 = vpop.f32.mrf.mxu0
  %v109 = vadd.f32 %v52, %v108
  %110 = vmatmul.f32.gmra.mxu0 %v71
  %v111 = vpop.f32.mrf.mxu0
  %v112 = vadd.f32 %v52, %v111
  %113 = vmatmul.f32.gmra.mxu0 %v74
  %v114 = vpop.f32.mrf.mxu0
  %v115 = vadd.f32 %v52, %v114
  %116 = vmatmul.f32.gmra.mxu0 %v77
  %v117 = vpop.f32.mrf.mxu0
  %v118 = vadd.f32 %v52, %v117
  %119 = vmatmul.f32.gmra.mxu0 %v80
  %v120 = vpop.f32.mrf.mxu0
  %v121 = vadd.f32 %v52, %v120
  %122 = vmatmul.f32.gmra.mxu0 %v83
  %v123 = vpop.f32.mrf.mxu0
  %v124 = vadd.f32 %v52, %v123
  %125 = vdwg.mxu0
  %126 = vmatpush.msra.mxu0 0.0
  %127 = vmatpush.msra.mxu0 0.0
  %128 = vmatpush.msra.mxu0 0.0
  %129 = vmatpush.msra.mxu0 0.0
  %130 = vmatpush.msra.mxu0 0.0
  %131 = vmatpush.msra.mxu0 0.0
  %132 = vmatpush.msra.mxu0 0.0
  %133 = vmatpush.msra.mxu0 0.0
  %134 = vmatpush.msra.mxu0 0.0
  %135 = vmatpush.msra.mxu0 0.0
  %136 = vmatpush.msra.mxu0 0.0
  %137 = vmatpush.msra.mxu0 0.0
  %138 = vmatpush.msra.mxu0 %v47
  %139 = vmatpush.msra.mxu0 %v43
  %140 = vmatpush.msra.mxu0 %v39
  %141 = vmatpush.msra.mxu0 %v35
  %142 = vmatmul.f32.gmra.mxu0 %v62
  %v143 = vpop.f32.mrf.mxu0
  %v144 = vadd.f32 %v53, %v143
  %145 = vmatmul.f32.gmra.mxu0 %v65
  %v146 = vpop.f32.mrf.mxu0
  %v147 = vadd.f32 %v53, %v146
  %148 = vmatmul.f32.gmra.mxu0 %v68
  %v149 = vpop.f32.mrf.mxu0
  %v150 = vadd.f32 %v53, %v149
  %151 = vmatmul.f32.gmra.mxu0 %v71
  %v152 = vpop.f32.mrf.mxu0
  %v153 = vadd.f32 %v53, %v152
  %154 = vmatmul.f32.gmra.mxu0 %v74
  %v155 = vpop.f32.mrf.mxu0
  %v156 = vadd.f32 %v53, %v155
  %157 = vmatmul.f32.gmra.mxu0 %v77
  %v158 = vpop.f32.mrf.mxu0
  %v159 = vadd.f32 %v53, %v158
  %160 = vmatmul.f32.gmra.mxu0 %v80
  %v161 = vpop.f32.mrf.mxu0
  %v162 = vadd.f32 %v53, %v161
  %163 = vmatmul.f32.gmra.mxu0 %v83
  %v164 = vpop.f32.mrf.mxu0
  %v165 = vadd.f32 %v53, %v164
  %166 = vdwg.mxu0
  %167 = vmatpush.msra.mxu0 0.0
  %168 = vmatpush.msra.mxu0 0.0
  %169 = vmatpush.msra.mxu0 0.0
  %170 = vmatpush.msra.mxu0 0.0
  %171 = vmatpush.msra.mxu0 0.0
  %172 = vmatpush.msra.mxu0 0.0
  %173 = vmatpush.msra.mxu0 0.0
  %174 = vmatpush.msra.mxu0 0.0
  %175 = vmatpush.msra.mxu0 0.0
  %176 = vmatpush.msra.mxu0 0.0
  %177 = vmatpush.msra.mxu0 0.0
  %178 = vmatpush.msra.mxu0 0.0
  %179 = vmatpush.msra.mxu0 %v48
  %180 = vmatpush.msra.mxu0 %v44
  %181 = vmatpush.msra.mxu0 %v40
  %182 = vmatpush.msra.mxu0 %v36
  %183 = vmatmul.f32.gmra.mxu0 %v62
  %v184 = vpop.f32.mrf.mxu0
  %v185 = vadd.f32 %v54, %v184
  %186 = vmatmul.f32.gmra.mxu0 %v65
  %v187 = vpop.f32.mrf.mxu0
  %v188 = vadd.f32 %v54, %v187
  %189 = vmatmul.f32.gmra.mxu0 %v68
  %v190 = vpop.f32.mrf.mxu0
  %v191 = vadd.f32 %v54, %v190
  %192 = vmatmul.f32.gmra.mxu0 %v71
  %v193 = vpop.f32.mrf.mxu0
  %v194 = vadd.f32 %v54, %v193
  %195 = vmatmul.f32.gmra.mxu0 %v74
  %v196 = vpop.f32.mrf.mxu0
  %v197 = vadd.f32 %v54, %v196
  %198 = vmatmul.f32.gmra.mxu0 %v77
  %v199 = vpop.f32.mrf.mxu0
  %v200 = vadd.f32 %v54, %v199
  %201 = vmatmul.f32.gmra.mxu0 %v80
  %v202 = vpop.f32.mrf.mxu0
  %v203 = vadd.f32 %v54, %v202
  %204 = vmatmul.f32.gmra.mxu0 %v83
  %v205 = vpop.f32.mrf.mxu0
  %v206 = vadd.f32 %v54, %v205
  %207 = vdwg.mxu0
  %208 = vmatpush.msra.mxu0 0.0
  %209 = vmatpush.msra.mxu0 0.0
  %210 = vmatpush.msra.mxu0 0.0
  %211 = vmatpush.msra.mxu0 0.0
  %212 = vmatpush.msra.mxu0 0.0
  %213 = vmatpush.msra.mxu0 0.0
  %214 = vmatpush.msra.mxu0 0.0
  %215 = vmatpush.msra.mxu0 0.0
  %216 = vmatpush.msra.mxu0 0.0
  %217 = vmatpush.msra.mxu0 0.0
  %218 = vmatpush.msra.mxu0 0.0
  %219 = vmatpush.msra.mxu0 0.0
  %220 = vmatpush.msra.mxu0 %v49
  %221 = vmatpush.msra.mxu0 %v45
  %222 = vmatpush.msra.mxu0 %v41
  %223 = vmatpush.msra.mxu0 %v37
  %224 = vmatmul.f32.gmra.mxu0 %v62
  %v225 = vpop.f32.mrf.mxu0
  %v226 = vadd.f32 %v55, %v225
  %227 = vmatmul.f32.gmra.mxu0 %v65
  %v228 = vpop.f32.mrf.mxu0
  %v229 = vadd.f32 %v55, %v228
  %230 = vmatmul.f32.gmra.mxu0 %v68
  %v231 = vpop.f32.mrf.mxu0
  %v232 = vadd.f32 %v55, %v231
  %233 = vmatmul.f32.gmra.mxu0 %v71
  %v234 = vpop.f32.mrf.mxu0
  %v235 = vadd.f32 %v55, %v234
  %236 = vmatmul.f32.gmra.mxu0 %v74
  %v237 = vpop.f32.mrf.mxu0
  %v238 = vadd.f32 %v55, %v237
  %239 = vmatmul.f32.gmra.mxu0 %v77
  %v240 = vpop.f32.mrf.mxu0
  %v241 = vadd.f32 %v55, %v240
  %242 = vmatmul.f32.gmra.mxu0 %v80
  %v243 = vpop.f32.mrf.mxu0
  %v244 = vadd.f32 %v55, %v243
  %245 = vmatmul.f32.gmra.mxu0 %v83
  %v246 = vpop.f32.mrf.mxu0
  %v247 = vadd.f32 %v55, %v246
  %248 = vdwg.mxu0
  %249 = vst [vmem:[#allocation4] sm:$0xff] %v103
  %250 = vst [vmem:[#allocation4 + $0x8] sm:$0xff] %v144
  %251 = vst [vmem:[#allocation4 + $0x10] sm:$0xff] %v185
  %252 = vst [vmem:[#allocation4 + $0x18] sm:$0xff] %v226
  %253 = vst [vmem:[#allocation4 + $0x20] sm:$0xff] %v106
  %254 = vst [vmem:[#allocation4 + $0x28] sm:$0xff] %v147
  %255 = vst [vmem:[#allocation4 + $0x30] sm:$0xff] %v188
  %256 = vst [vmem:[#allocation4 + $0x38] sm:$0xff] %v229
  %257 = vst [vmem:[#allocation4 + $0x40] sm:$0xff] %v109
  %258 = vst [vmem:[#allocation4 + $0x48] sm:$0xff] %v150
  %259 = vst [vmem:[#allocation4 + $0x50] sm:$0xff] %v191
  %260 = vst [vmem:[#allocation4 + $0x58] sm:$0xff] %v232
  %261 = vst [vmem:[#allocation4 + $0x60] sm:$0xff] %v112
  %262 = vst [vmem:[#allocation4 + $0x68] sm:$0xff] %v153
  %263 = vst [vmem:[#allocation4 + $0x70] sm:$0xff] %v194
  %264 = vst [vmem:[#allocation4 + $0x78] sm:$0xff] %v235
  %265 = vst [vmem:[#allocation4 + $0x80] sm:$0xff] %v115
  %266 = vst [vmem:[#allocation4 + $0x88] sm:$0xff] %v156
  %267 = vst [vmem:[#allocation4 + $0x90] sm:$0xff] %v197
  %268 = vst [vmem:[#allocation4 + $0x98] sm:$0xff] %v238
  %269 = vst [vmem:[#allocation4 + $0xa0] sm:$0xff] %v118
  %270 = vst [vmem:[#allocation4 + $0xa8] sm:$0xff] %v159
  %271 = vst [vmem:[#allocation4 + $0xb0] sm:$0xff] %v200
  %272 = vst [vmem:[#allocation4 + $0xb8] sm:$0xff] %v241
  %273 = vst [vmem:[#allocation4 + $0xc0] sm:$0xff] %v121
  %274 = vst [vmem:[#allocation4 + $0xc8] sm:$0xff] %v162
  %275 = vst [vmem:[#allocation4 + $0xd0] sm:$0xff] %v203
  %276 = vst [vmem:[#allocation4 + $0xd8] sm:$0xff] %v244
  %277 = vst [vmem:[#allocation4 + $0xe0] sm:$0xff] %v124
  %278 = vst [vmem:[#allocation4 + $0xe8] sm:$0xff] %v165
  %279 = vst [vmem:[#allocation4 + $0xf0] sm:$0xff] %v206
  %280 = vst [vmem:[#allocation4 + $0xf8] sm:$0xff] %v247
  %s281 = smul.u32 0, 8
  %v282 = vld [vmem:[#allocation2] sm:$0xff]
  %v283 = vld [vmem:[#allocation3] sm:$0xff]
  %s284 = smul.u32 0, 4
  %s285 = smul.addr %s284, 8
  %s286 = scalar_lea.vmem [#allocation4], %s285
  %v287 = vld [vmem:[%s286] sm:$0xff]
  %v288 = vld [vmem:[%s286 + $0x8] sm:$0xff]
  %v289 = vld [vmem:[%s286 + $0x10] sm:$0xff]
  %v290 = vld [vmem:[%s286 + $0x18] sm:$0xff]
  %v291 = vld [vmem:[%s2] sm:$0xff]
  %v292 = vld [vmem:[%s2 + $0x8] sm:$0xff]
  %v293 = vld [vmem:[%s2 + $0x10] sm:$0xff]
  %v294 = vld [vmem:[%s2 + $0x18] sm:$0xff]
  %v295 = vld [vmem:[%s2 + $0x20] sm:$0xff]
  %v296 = vld [vmem:[%s2 + $0x28] sm:$0xff]
  %v297 = vld [vmem:[%s2 + $0x30] sm:$0xff]
  %v298 = vld [vmem:[%s2 + $0x38] sm:$0xff]
  %v299 = vld [vmem:[%s2 + $0x40] sm:$0xff]
  %v300 = vld [vmem:[%s2 + $0x48] sm:$0xff]
  %v301 = vld [vmem:[%s2 + $0x50] sm:$0xff]
  %v302 = vld [vmem:[%s2 + $0x58] sm:$0xff]
  %v303 = vld [vmem:[%s2 + $0x60] sm:$0xff]
  %v304 = vld [vmem:[%s2 + $0x68] sm:$0xff]
  %v305 = vld [vmem:[%s2 + $0x70] sm:$0xff]
  %v306 = vld [vmem:[%s2 + $0x78] sm:$0xff]
  %v307 = vld [vmem:[%s2 + $0x80] sm:$0xff]
  %v308 = vld [vmem:[%s2 + $0x88] sm:$0xff]
  %v309 = vld [vmem:[%s2 + $0x90] sm:$0xff]
  %v310 = vld [vmem:[%s2 + $0x98] sm:$0xff]
  %v311 = vld [vmem:[%s2 + $0xa0] sm:$0xff]
  %v312 = vld [vmem:[%s2 + $0xa8] sm:$0xff]
  %v313 = vld [vmem:[%s2 + $0xb0] sm:$0xff]
  %v314 = vld [vmem:[%s2 + $0xb8] sm:$0xff]
  %v315 = vld [vmem:[%s2 + $0xc0] sm:$0xff]
  %v316 = vld [vmem:[%s2 + $0xc8] sm:$0xff]
  %v317 = vld [vmem:[%s2 + $0xd0] sm:$0xff]
  %v318 = vld [vmem:[%s2 + $0xd8] sm:$0xff]
  %v319 = vld [vmem:[%s2 + $0xe0] sm:$0xff]
  %v320 = vld [vmem:[%s2 + $0xe8] sm:$0xff]
  %v321 = vld [vmem:[%s2 + $0xf0] sm:$0xff]
  %v322 = vld [vmem:[%s2 + $0xf8] sm:$0xff]
  %v323 = vld [vmem:[%s2 + $0x100] sm:$0xff]
  %v324 = vld [vmem:[%s2 + $0x108] sm:$0xff]
  %v325 = vld [vmem:[%s2 + $0x110] sm:$0xff]
  %v326 = vld [vmem:[%s2 + $0x118] sm:$0xff]
  %v327 = vld [vmem:[%s2 + $0x120] sm:$0xff]
  %v328 = vld [vmem:[%s2 + $0x128] sm:$0xff]
  %v329 = vld [vmem:[%s2 + $0x130] sm:$0xff]
  %v330 = vld [vmem:[%s2 + $0x138] sm:$0xff]
  %v331 = vld [vmem:[%s2 + $0x140] sm:$0xff]
  %v332 = vld [vmem:[%s2 + $0x148] sm:$0xff]
  %v333 = vld [vmem:[%s2 + $0x150] sm:$0xff]
  %v334 = vld [vmem:[%s2 + $0x158] sm:$0xff]
  %v335 = vld [vmem:[%s2 + $0x160] sm:$0xff]
  %v336 = vld [vmem:[%s2 + $0x168] sm:$0xff]
  %v337 = vld [vmem:[%s2 + $0x170] sm:$0xff]
  %v338 = vld [vmem:[%s2 + $0x178] sm:$0xff]
  %v339 = vld [vmem:[%s2 + $0x180] sm:$0xff]
  %v340 = vld [vmem:[%s2 + $0x188] sm:$0xff]
  %v341 = vld [vmem:[%s2 + $0x190] sm:$0xff]
  %v342 = vld [vmem:[%s2 + $0x198] sm:$0xff]
  %v343 = vld [vmem:[%s2 + $0x1a0] sm:$0xff]
  %v344 = vld [vmem:[%s2 + $0x1a8] sm:$0xff]
  %v345 = vld [vmem:[%s2 + $0x1b0] sm:$0xff]
  %v346 = vld [vmem:[%s2 + $0x1b8] sm:$0xff]
  %v347 = vld [vmem:[%s2 + $0x1c0] sm:$0xff]
  %v348 = vld [vmem:[%s2 + $0x1c8] sm:$0xff]
  %v349 = vld [vmem:[%s2 + $0x1d0] sm:$0xff]
  %v350 = vld [vmem:[%s2 + $0x1d8] sm:$0xff]
  %v351 = vld [vmem:[%s2 + $0x1e0] sm:$0xff]
  %v352 = vld [vmem:[%s2 + $0x1e8] sm:$0xff]
  %v353 = vld [vmem:[%s2 + $0x1f0] sm:$0xff]
  %v354 = vld [vmem:[%s2 + $0x1f8] sm:$0xff]
  %355 = vmatpush.msra.mxu0 %v351
  %356 = vmatpush.msra.mxu0 %v347
  %357 = vmatpush.msra.mxu0 %v343
  %358 = vmatpush.msra.mxu0 %v339
  %359 = vmatpush.msra.mxu0 %v335
  %360 = vmatpush.msra.mxu0 %v331
  %361 = vmatpush.msra.mxu0 %v327
  %362 = vmatpush.msra.mxu0 %v323
  %363 = vmatpush.msra.mxu0 %v319
  %364 = vmatpush.msra.mxu0 %v315
  %365 = vmatpush.msra.mxu0 %v311
  %366 = vmatpush.msra.mxu0 %v307
  %367 = vmatpush.msra.mxu0 %v303
  %368 = vmatpush.msra.mxu0 %v299
  %369 = vmatpush.msra.mxu0 %v295
  %370 = vmatpush.msra.mxu0 %v291
  %371 = vmatmul.f32.gmra.mxu0 %v282
  %v372 = vpop.f32.mrf.mxu0
  %v373 = vadd.f32 0.0, %v372
  %374 = vdwg.mxu0
  %375 = vmatpush.msra.mxu0 %v352
  %376 = vmatpush.msra.mxu0 %v348
  %377 = vmatpush.msra.mxu0 %v344
  %378 = vmatpush.msra.mxu0 %v340
  %379 = vmatpush.msra.mxu0 %v336
  %380 = vmatpush.msra.mxu0 %v332
  %381 = vmatpush.msra.mxu0 %v328
  %382 = vmatpush.msra.mxu0 %v324
  %383 = vmatpush.msra.mxu0 %v320
  %384 = vmatpush.msra.mxu0 %v316
  %385 = vmatpush.msra.mxu0 %v312
  %386 = vmatpush.msra.mxu0 %v308
  %387 = vmatpush.msra.mxu0 %v304
  %388 = vmatpush.msra.mxu0 %v300
  %389 = vmatpush.msra.mxu0 %v296
  %390 = vmatpush.msra.mxu0 %v292
  %391 = vmatmul.f32.gmra.mxu0 %v282
  %v392 = vpop.f32.mrf.mxu0
  %v393 = vadd.f32 0.0, %v392
  %394 = vdwg.mxu0
  %395 = vmatpush.msra.mxu0 %v353
  %396 = vmatpush.msra.mxu0 %v349
  %397 = vmatpush.msra.mxu0 %v345
  %398 = vmatpush.msra.mxu0 %v341
  %399 = vmatpush.msra.mxu0 %v337
  %400 = vmatpush.msra.mxu0 %v333
  %401 = vmatpush.msra.mxu0 %v329
  %402 = vmatpush.msra.mxu0 %v325
  %403 = vmatpush.msra.mxu0 %v321
  %404 = vmatpush.msra.mxu0 %v317
  %405 = vmatpush.msra.mxu0 %v313
  %406 = vmatpush.msra.mxu0 %v309
  %407 = vmatpush.msra.mxu0 %v305
  %408 = vmatpush.msra.mxu0 %v301
  %409 = vmatpush.msra.mxu0 %v297
  %410 = vmatpush.msra.mxu0 %v293
  %411 = vmatmul.f32.gmra.mxu0 %v282
  %v412 = vpop.f32.mrf.mxu0
  %v413 = vadd.f32 0.0, %v412
  %414 = vdwg.mxu0
  %415 = vmatpush.msra.mxu0 %v354
  %416 = vmatpush.msra.mxu0 %v350
  %417 = vmatpush.msra.mxu0 %v346
  %418 = vmatpush.msra.mxu0 %v342
  %419 = vmatpush.msra.mxu0 %v338
  %420 = vmatpush.msra.mxu0 %v334
  %421 = vmatpush.msra.mxu0 %v330
  %422 = vmatpush.msra.mxu0 %v326
  %423 = vmatpush.msra.mxu0 %v322
  %424 = vmatpush.msra.mxu0 %v318
  %425 = vmatpush.msra.mxu0 %v314
  %426 = vmatpush.msra.mxu0 %v310
  %427 = vmatpush.msra.mxu0 %v306
  %428 = vmatpush.msra.mxu0 %v302
  %429 = vmatpush.msra.mxu0 %v298
  %430 = vmatpush.msra.mxu0 %v294
  %431 = vmatmul.f32.gmra.mxu0 %v282
  %v432 = vpop.f32.mrf.mxu0
  %v433 = vadd.f32 0.0, %v432
  %434 = vdwg.mxu0
  %v435 = vadd.f32 %v287, %v373
  %v436 = vadd.f32 %v288, %v393
  %v437 = vadd.f32 %v289, %v413
  %v438 = vadd.f32 %v290, %v433
  %v439 = vxor.u32 %v435, 2147483648
  %v440 = vmul.f32 %v439, 1.442695
  %v441 = vpow.pop %v440
  %v442 = vadd.f32 %v441, 1.0
  %v443 = vrcp.pop %v442
  %v444 = vmul.f32 %v442, %v443
  %v445 = vsub.f32 1.0, %v444
  %v446 = vmul.f32 %v443, %v445
  %v447 = vadd.f32 %v443, %v446
  %vm448 = vweird.f32 %v442
  %vm449 = vweird.f32 %v443
  %vm450 = vmor %vm448, %vm449
  %v451 = vsel %vm450, %v443, %v447
  %v452 = vand.u32 2147483647, %v442
  %vm453 = vcmp.eq.f32.partialorder %v452, 8.507059e+37
  %v454 = vand.u32 %v442, 2147483648
  %v455 = vor.u32 1.1754944e-38, %v454
  %v456 = vsel %vm453, %v455, %v451
  %v457 = vmul.f32 1.0, %v456
  %v458 = vxor.u32 %v436, 2147483648
  %v459 = vmul.f32 %v458, 1.442695
  %v460 = vpow.pop %v459
  %v461 = vadd.f32 %v460, 1.0
  %v462 = vrcp.pop %v461
  %v463 = vmul.f32 %v461, %v462
  %v464 = vsub.f32 1.0, %v463
  %v465 = vmul.f32 %v462, %v464
  %v466 = vadd.f32 %v462, %v465
  %vm467 = vweird.f32 %v461
  %vm468 = vweird.f32 %v462
  %vm469 = vmor %vm467, %vm468
  %v470 = vsel %vm469, %v462, %v466
  %v471 = vand.u32 2147483647, %v461
  %vm472 = vcmp.eq.f32.partialorder %v471, 8.507059e+37
  %v473 = vand.u32 %v461, 2147483648
  %v474 = vor.u32 1.1754944e-38, %v473
  %v475 = vsel %vm472, %v474, %v470
  %v476 = vmul.f32 1.0, %v475
  %v477 = vtanh.pop %v437
  %v478 = vxor.u32 %v438, 2147483648
  %v479 = vmul.f32 %v478, 1.442695
  %v480 = vpow.pop %v479
  %v481 = vadd.f32 %v480, 1.0
  %v482 = vrcp.pop %v481
  %v483 = vmul.f32 %v481, %v482
  %v484 = vsub.f32 1.0, %v483
  %v485 = vmul.f32 %v482, %v484
  %v486 = vadd.f32 %v482, %v485
  %vm487 = vweird.f32 %v481
  %vm488 = vweird.f32 %v482
  %vm489 = vmor %vm487, %vm488
  %v490 = vsel %vm489, %v482, %v486
  %v491 = vand.u32 2147483647, %v481
  %vm492 = vcmp.eq.f32.partialorder %v491, 8.507059e+37
  %v493 = vand.u32 %v481, 2147483648
  %v494 = vor.u32 1.1754944e-38, %v493
  %v495 = vsel %vm492, %v494, %v490
  %v496 = vmul.f32 1.0, %v495
  %v497 = vmul.f32 %v476, %v283
  %v498 = vmul.f32 %v457, %v477
  %v499 = vadd.f32 %v497, %v498
  %v500 = vtanh.pop %v499
  %v501 = vmul.f32 %v496, %v500
  %p502 = scmp.lt.s32.totalorder %s281, 8
  %s503 = scalar_select %p502, 1, 0
  %v504 = vstv %s503
  %vm505 = vcmp.eq.s32.totalorder %v504, 1
  %v506 = vsel %vm505, %v501, %v282
  %507 = vst [vmem:[#allocation2] sm:$0xff] %v506
  %v508 = vsel %vm505, %v499, %v283
  %509 = vst [vmem:[#allocation3] sm:$0xff] %v508
  %510 = vst [vmem:[%s4] sm:$0xff] %v501
  %v511 = vld [vmem:[#allocation2] sm:$0xff]
  %v512 = vld [vmem:[#allocation3] sm:$0xff]
  %s513 = smul.u32 1, 4
  %s514 = smul.addr %s513, 8
  %s515 = scalar_lea.vmem [#allocation4], %s514
  %v516 = vld [vmem:[%s515] sm:$0xff]
  %v517 = vld [vmem:[%s515 + $0x8] sm:$0xff]
  %v518 = vld [vmem:[%s515 + $0x10] sm:$0xff]
  %v519 = vld [vmem:[%s515 + $0x18] sm:$0xff]
  %v520 = vld [vmem:[%s2] sm:$0xff]
  %v521 = vld [vmem:[%s2 + $0x8] sm:$0xff]
  %v522 = vld [vmem:[%s2 + $0x10] sm:$0xff]
  %v523 = vld [vmem:[%s2 + $0x18] sm:$0xff]
  %v524 = vld [vmem:[%s2 + $0x20] sm:$0xff]
  %v525 = vld [vmem:[%s2 + $0x28] sm:$0xff]
  %v526 = vld [vmem:[%s2 + $0x30] sm:$0xff]
  %v527 = vld [vmem:[%s2 + $0x38] sm:$0xff]
  %v528 = vld [vmem:[%s2 + $0x40] sm:$0xff]
  %v529 = vld [vmem:[%s2 + $0x48] sm:$0xff]
  %v530 = vld [vmem:[%s2 + $0x50] sm:$0xff]
  %v531 = vld [vmem:[%s2 + $0x58] sm:$0xff]
  %v532 = vld [vmem:[%s2 + $0x60] sm:$0xff]
  %v533 = vld [vmem:[%s2 + $0x68] sm:$0xff]
  %v534 = vld [vmem:[%s2 + $0x70] sm:$0xff]
  %v535 = vld [vmem:[%s2 + $0x78] sm:$0xff]
  %v536 = vld [vmem:[%s2 + $0x80] sm:$0xff]
  %v537 = vld [vmem:[%s2 + $0x88] sm:$0xff]
  %v538 = vld [vmem:[%s2 + $0x90] sm:$0xff]
  %v539 = vld [vmem:[%s2 + $0x98] sm:$0xff]
  %v540 = vld [vmem:[%s2 + $0xa0] sm:$0xff]
  %v541 = vld [vmem:[%s2 + $0xa8] sm:$0xff]
  %v542 = vld [vmem:[%s2 + $0xb0] sm:$0xff]
  %v543 = vld [vmem:[%s2 + $0xb8] sm:$0xff]
  %v544 = vld [vmem:[%s2 + $0xc0] sm:$0xff]
  %v545 = vld [vmem:[%s2 + $0xc8] sm:$0xff]
  %v546 = vld [vmem:[%s2 + $0xd0] sm:$0xff]
  %v547 = vld [vmem:[%s2 + $0xd8] sm:$0xff]
  %v548 = vld [vmem:[%s2 + $0xe0] sm:$0xff]
  %v549 = vld [vmem:[%s2 + $0xe8] sm:$0xff]
  %v550 = vld [vmem:[%s2 + $0xf0] sm:$0xff]
  %v551 = vld [vmem:[%s2 + $0xf8] sm:$0xff]
  %v552 = vld [vmem:[%s2 + $0x100] sm:$0xff]
  %v553 = vld [vmem:[%s2 + $0x108] sm:$0xff]
  %v554 = vld [vmem:[%s2 + $0x110] sm:$0xff]
  %v555 = vld [vmem:[%s2 + $0x118] sm:$0xff]
  %v556 = vld [vmem:[%s2 + $0x120] sm:$0xff]
  %v557 = vld [vmem:[%s2 + $0x128] sm:$0xff]
  %v558 = vld [vmem:[%s2 + $0x130] sm:$0xff]
  %v559 = vld [vmem:[%s2 + $0x138] sm:$0xff]
  %v560 = vld [vmem:[%s2 + $0x140] sm:$0xff]
  %v561 = vld [vmem:[%s2 + $0x148] sm:$0xff]
  %v562 = vld [vmem:[%s2 + $0x150] sm:$0xff]
  %v563 = vld [vmem:[%s2 + $0x158] sm:$0xff]
  %v564 = vld [vmem:[%s2 + $0x160] sm:$0xff]
  %v565 = vld [vmem:[%s2 + $0x168] sm:$0xff]
  %v566 = vld [vmem:[%s2 + $0x170] sm:$0xff]
  %v567 = vld [vmem:[%s2 + $0x178] sm:$0xff]
  %v568 = vld [vmem:[%s2 + $0x180] sm:$0xff]
  %v569 = vld [vmem:[%s2 + $0x188] sm:$0xff]
  %v570 = vld [vmem:[%s2 + $0x190] sm:$0xff]
  %v571 = vld [vmem:[%s2 + $0x198] sm:$0xff]
  %v572 = vld [vmem:[%s2 + $0x1a0] sm:$0xff]
  %v573 = vld [vmem:[%s2 + $0x1a8] sm:$0xff]
  %v574 = vld [vmem:[%s2 + $0x1b0] sm:$0xff]
  %v575 = vld [vmem:[%s2 + $0x1b8] sm:$0xff]
  %v576 = vld [vmem:[%s2 + $0x1c0] sm:$0xff]
  %v577 = vld [vmem:[%s2 + $0x1c8] sm:$0xff]
  %v578 = vld [vmem:[%s2 + $0x1d0] sm:$0xff]
  %v579 = vld [vmem:[%s2 + $0x1d8] sm:$0xff]
  %v580 = vld [vmem:[%s2 + $0x1e0] sm:$0xff]
  %v581 = vld [vmem:[%s2 + $0x1e8] sm:$0xff]
  %v582 = vld [vmem:[%s2 + $0x1f0] sm:$0xff]
  %v583 = vld [vmem:[%s2 + $0x1f8] sm:$0xff]
  %584 = vmatpush.msra.mxu0 %v580
  %585 = vmatpush.msra.mxu0 %v576
  %586 = vmatpush.msra.mxu0 %v572
  %587 = vmatpush.msra.mxu0 %v568
  %588 = vmatpush.msra.mxu0 %v564
  %589 = vmatpush.msra.mxu0 %v560
  %590 = vmatpush.msra.mxu0 %v556
  %591 = vmatpush.msra.mxu0 %v552
  %592 = vmatpush.msra.mxu0 %v548
  %593 = vmatpush.msra.mxu0 %v544
  %594 = vmatpush.msra.mxu0 %v540
  %595 = vmatpush.msra.mxu0 %v536
  %596 = vmatpush.msra.mxu0 %v532
  %597 = vmatpush.msra.mxu0 %v528
  %598 = vmatpush.msra.mxu0 %v524
  %599 = vmatpush.msra.mxu0 %v520
  %600 = vmatmul.f32.gmra.mxu0 %v511
  %v601 = vpop.f32.mrf.mxu0
  %v602 = vadd.f32 0.0, %v601
  %603 = vdwg.mxu0
  %604 = vmatpush.msra.mxu0 %v581
  %605 = vmatpush.msra.mxu0 %v577
  %606 = vmatpush.msra.mxu0 %v573
  %607 = vmatpush.msra.mxu0 %v569
  %608 = vmatpush.msra.mxu0 %v565
  %609 = vmatpush.msra.mxu0 %v561
  %610 = vmatpush.msra.mxu0 %v557
  %611 = vmatpush.msra.mxu0 %v553
  %612 = vmatpush.msra.mxu0 %v549
  %613 = vmatpush.msra.mxu0 %v545
  %614 = vmatpush.msra.mxu0 %v541
  %615 = vmatpush.msra.mxu0 %v537
  %616 = vmatpush.msra.mxu0 %v533
  %617 = vmatpush.msra.mxu0 %v529
  %618 = vmatpush.msra.mxu0 %v525
  %619 = vmatpush.msra.mxu0 %v521
  %620 = vmatmul.f32.gmra.mxu0 %v511
  %v621 = vpop.f32.mrf.mxu0
  %v622 = vadd.f32 0.0, %v621
  %623 = vdwg.mxu0
  %624 = vmatpush.msra.mxu0 %v582
  %625 = vmatpush.msra.mxu0 %v578
  %626 = vmatpush.msra.mxu0 %v574
  %627 = vmatpush.msra.mxu0 %v570
  %628 = vmatpush.msra.mxu0 %v566
  %629 = vmatpush.msra.mxu0 %v562
  %630 = vmatpush.msra.mxu0 %v558
  %631 = vmatpush.msra.mxu0 %v554
  %632 = vmatpush.msra.mxu0 %v550
  %633 = vmatpush.msra.mxu0 %v546
  %634 = vmatpush.msra.mxu0 %v542
  %635 = vmatpush.msra.mxu0 %v538
  %636 = vmatpush.msra.mxu0 %v534
  %637 = vmatpush.msra.mxu0 %v530
  %638 = vmatpush.msra.mxu0 %v526
  %639 = vmatpush.msra.mxu0 %v522
  %640 = vmatmul.f32.gmra.mxu0 %v511
  %v641 = vpop.f32.mrf.mxu0
  %v642 = vadd.f32 0.0, %v641
  %643 = vdwg.mxu0
  %644 = vmatpush.msra.mxu0 %v583
  %645 = vmatpush.msra.mxu0 %v579
  %646 = vmatpush.msra.mxu0 %v575
  %647 = vmatpush.msra.mxu0 %v571
  %648 = vmatpush.msra.mxu0 %v567
  %649 = vmatpush.msra.mxu0 %v563
  %650 = vmatpush.msra.mxu0 %v559
  %651 = vmatpush.msra.mxu0 %v555
  %652 = vmatpush.msra.mxu0 %v551
  %653 = vmatpush.msra.mxu0 %v547
  %654 = vmatpush.msra.mxu0 %v543
  %655 = vmatpush.msra.mxu0 %v539
  %656 = vmatpush.msra.mxu0 %v535
  %657 = vmatpush.msra.mxu0 %v531
  %658 = vmatpush.msra.mxu0 %v527
  %659 = vmatpush.msra.mxu0 %v523
  %660 = vmatmul.f32.gmra.mxu0 %v511
  %v661 = vpop.f32.mrf.mxu0
  %v662 = vadd.f32 0.0, %v661
  %663 = vdwg.mxu0
  %v664 = vadd.f32 %v516, %v602
  %v665 = vadd.f32 %v517, %v622
  %v666 = vadd.f32 %v518, %v642
  %v667 = vadd.f32 %v519, %v662
  %v668 = vxor.u32 %v664, 2147483648
  %v669 = vmul.f32 %v668, 1.442695
  %v670 = vpow.pop %v669
  %v671 = vadd.f32 %v670, 1.0
  %v672 = vrcp.pop %v671
  %v673 = vmul.f32 %v671, %v672
  %v674 = vsub.f32 1.0, %v673
  %v675 = vmul.f32 %v672, %v674
  %v676 = vadd.f32 %v672, %v675
  %vm677 = vweird.f32 %v671
  %vm678 = vweird.f32 %v672
  %vm679 = vmor %vm677, %vm678
  %v680 = vsel %vm679, %v672, %v676
  %v681 = vand.u32 2147483647, %v671
  %vm682 = vcmp.eq.f32.partialorder %v681, 8.507059e+37
  %v683 = vand.u32 %v671, 2147483648
  %v684 = vor.u32 1.1754944e-38, %v683
  %v685 = vsel %vm682, %v684, %v680
  %v686 = vmul.f32 1.0, %v685
  %v687 = vxor.u32 %v665, 2147483648
  %v688 = vmul.f32 %v687, 1.442695
  %v689 = vpow.pop %v688
  %v690 = vadd.f32 %v689, 1.0
  %v691 = vrcp.pop %v690
  %v692 = vmul.f32 %v690, %v691
  %v693 = vsub.f32 1.0, %v692
  %v694 = vmul.f32 %v691, %v693
  %v695 = vadd.f32 %v691, %v694
  %vm696 = vweird.f32 %v690
  %vm697 = vweird.f32 %v691
  %vm698 = vmor %vm696, %vm697
  %v699 = vsel %vm698, %v691, %v695
  %v700 = vand.u32 2147483647, %v690
  %vm701 = vcmp.eq.f32.partialorder %v700, 8.507059e+37
  %v702 = vand.u32 %v690, 2147483648
  %v703 = vor.u32 1.1754944e-38, %v702
  %v704 = vsel %vm701, %v703, %v699
  %v705 = vmul.f32 1.0, %v704
  %v706 = vtanh.pop %v666
  %v707 = vxor.u32 %v667, 2147483648
  %v708 = vmul.f32 %v707, 1.442695
  %v709 = vpow.pop %v708
  %v710 = vadd.f32 %v709, 1.0
  %v711 = vrcp.pop %v710
  %v712 = vmul.f32 %v710, %v711
  %v713 = vsub.f32 1.0, %v712
  %v714 = vmul.f32 %v711, %v713
  %v715 = vadd.f32 %v711, %v714
  %vm716 = vweird.f32 %v710
  %vm717 = vweird.f32 %v711
  %vm718 = vmor %vm716, %vm717
  %v719 = vsel %vm718, %v711, %v715
  %v720 = vand.u32 2147483647, %v710
  %vm721 = vcmp.eq.f32.partialorder %v720, 8.507059e+37
  %v722 = vand.u32 %v710, 2147483648
  %v723 = vor.u32 1.1754944e-38, %v722
  %v724 = vsel %vm721, %v723, %v719
  %v725 = vmul.f32 1.0, %v724
  %v726 = vmul.f32 %v705, %v512
  %v727 = vmul.f32 %v686, %v706
  %v728 = vadd.f32 %v726, %v727
  %v729 = vtanh.pop %v728
  %v730 = vmul.f32 %v725, %v729
  %s731 = sadd.s32 %s281, 1
  %p732 = scmp.lt.s32.totalorder %s731, 8
  %s733 = scalar_select %p732, 1, 0
  %v734 = vstv %s733
  %vm735 = vcmp.eq.s32.totalorder %v734, 1
  %v736 = vsel %vm735, %v730, %v511
  %737 = vst [vmem:[#allocation2] sm:$0xff] %v736
  %v738 = vsel %vm735, %v728, %v512
  %739 = vst [vmem:[#allocation3] sm:$0xff] %v738
  %s740 = scalar_lea.vmem %s4, 8
  %741 = vst [vmem:[%s740] sm:$0xff] %v730
  %v742 = vld [vmem:[#allocation2] sm:$0xff]
  %v743 = vld [vmem:[#allocation3] sm:$0xff]
  %s744 = smul.u32 2, 4
  %s745 = smul.addr %s744, 8
  %s746 = scalar_lea.vmem [#allocation4], %s745
  %v747 = vld [vmem:[%s746] sm:$0xff]
  %v748 = vld [vmem:[%s746 + $0x8] sm:$0xff]
  %v749 = vld [vmem:[%s746 + $0x10] sm:$0xff]
  %v750 = vld [vmem:[%s746 + $0x18] sm:$0xff]
  %v751 = vld [vmem:[%s2] sm:$0xff]
  %v752 = vld [vmem:[%s2 + $0x8] sm:$0xff]
  %v753 = vld [vmem:[%s2 + $0x10] sm:$0xff]
  %v754 = vld [vmem:[%s2 + $0x18] sm:$0xff]
  %v755 = vld [vmem:[%s2 + $0x20] sm:$0xff]
  %v756 = vld [vmem:[%s2 + $0x28] sm:$0xff]
  %v757 = vld [vmem:[%s2 + $0x30] sm:$0xff]
  %v758 = vld [vmem:[%s2 + $0x38] sm:$0xff]
  %v759 = vld [vmem:[%s2 + $0x40] sm:$0xff]
  %v760 = vld [vmem:[%s2 + $0x48] sm:$0xff]
  %v761 = vld [vmem:[%s2 + $0x50] sm:$0xff]
  %v762 = vld [vmem:[%s2 + $0x58] sm:$0xff]
  %v763 = vld [vmem:[%s2 + $0x60] sm:$0xff]
  %v764 = vld [vmem:[%s2 + $0x68] sm:$0xff]
  %v765 = vld [vmem:[%s2 + $0x70] sm:$0xff]
  %v766 = vld [vmem:[%s2 + $0x78] sm:$0xff]
  %v767 = vld [vmem:[%s2 + $0x80] sm:$0xff]
  %v768 = vld [vmem:[%s2 + $0x88] sm:$0xff]
  %v769 = vld [vmem:[%s2 + $0x90] sm:$0xff]
  %v770 = vld [vmem:[%s2 + $0x98] sm:$0xff]
  %v771 = vld [vmem:[%s2 + $0xa0] sm:$0xff]
  %v772 = vld [vmem:[%s2 + $0xa8] sm:$0xff]
  %v773 = vld [vmem:[%s2 + $0xb0] sm:$0xff]
  %v774 = vld [vmem:[%s2 + $0xb8] sm:$0xff]
  %v775 = vld [vmem:[%s2 + $0xc0] sm:$0xff]
  %v776 = vld [vmem:[%s2 + $0xc8] sm:$0xff]
  %v777 = vld [vmem:[%s2 + $0xd0] sm:$0xff]
  %v778 = vld [vmem:[%s2 + $0xd8] sm:$0xff]
  %v779 = vld [vmem:[%s2 + $0xe0] sm:$0xff]
  %v780 = vld [vmem:[%s2 + $0xe8] sm:$0xff]
  %v781 = vld [vmem:[%s2 + $0xf0] sm:$0xff]
  %v782 = vld [vmem:[%s2 + $0xf8] sm:$0xff]
  %v783 = vld [vmem:[%s2 + $0x100] sm:$0xff]
  %v784 = vld [vmem:[%s2 + $0x108] sm:$0xff]
  %v785 = vld [vmem:[%s2 + $0x110] sm:$0xff]
  %v786 = vld [vmem:[%s2 + $0x118] sm:$0xff]
  %v787 = vld [vmem:[%s2 + $0x120] sm:$0xff]
  %v788 = vld [vmem:[%s2 + $0x128] sm:$0xff]
  %v789 = vld [vmem:[%s2 + $0x130] sm:$0xff]
  %v790 = vld [vmem:[%s2 + $0x138] sm:$0xff]
  %v791 = vld [vmem:[%s2 + $0x140] sm:$0xff]
  %v792 = vld [vmem:[%s2 + $0x148] sm:$0xff]
  %v793 = vld [vmem:[%s2 + $0x150] sm:$0xff]
  %v794 = vld [vmem:[%s2 + $0x158] sm:$0xff]
  %v795 = vld [vmem:[%s2 + $0x160] sm:$0xff]
  %v796 = vld [vmem:[%s2 + $0x168] sm:$0xff]
  %v797 = vld [vmem:[%s2 + $0x170] sm:$0xff]
  %v798 = vld [vmem:[%s2 + $0x178] sm:$0xff]
  %v799 = vld [vmem:[%s2 + $0x180] sm:$0xff]
  %v800 = vld [vmem:[%s2 + $0x188] sm:$0xff]
  %v801 = vld [vmem:[%s2 + $0x190] sm:$0xff]
  %v802 = vld [vmem:[%s2 + $0x198] sm:$0xff]
  %v803 = vld [vmem:[%s2 + $0x1a0] sm:$0xff]
  %v804 = vld [vmem:[%s2 + $0x1a8] sm:$0xff]
  %v805 = vld [vmem:[%s2 + $0x1b0] sm:$0xff]
  %v806 = vld [vmem:[%s2 + $0x1b8] sm:$0xff]
  %v807 = vld [vmem:[%s2 + $0x1c0] sm:$0xff]
  %v808 = vld [vmem:[%s2 + $0x1c8] sm:$0xff]
  %v809 = vld [vmem:[%s2 + $0x1d0] sm:$0xff]
  %v810 = vld [vmem:[%s2 + $0x1d8] sm:$0xff]
  %v811 = vld [vmem:[%s2 + $0x1e0] sm:$0xff]
  %v812 = vld [vmem:[%s2 + $0x1e8] sm:$0xff]
  %v813 = vld [vmem:[%s2 + $0x1f0] sm:$0xff]
  %v814 = vld [vmem:[%s2 + $0x1f8] sm:$0xff]
  %815 = vmatpush.msra.mxu0 %v811
  %816 = vmatpush.msra.mxu0 %v807
  %817 = vmatpush.msra.mxu0 %v803
  %818 = vmatpush.msra.mxu0 %v799
  %819 = vmatpush.msra.mxu0 %v795
  %820 = vmatpush.msra.mxu0 %v791
  %821 = vmatpush.msra.mxu0 %v787
  %822 = vmatpush.msra.mxu0 %v783
  %823 = vmatpush.msra.mxu0 %v779
  %824 = vmatpush.msra.mxu0 %v775
  %825 = vmatpush.msra.mxu0 %v771
  %826 = vmatpush.msra.mxu0 %v767
  %827 = vmatpush.msra.mxu0 %v763
  %828 = vmatpush.msra.mxu0 %v759
  %829 = vmatpush.msra.mxu0 %v755
  %830 = vmatpush.msra.mxu0 %v751
  %831 = vmatmul.f32.gmra.mxu0 %v742
  %v832 = vpop.f32.mrf.mxu0
  %v833 = vadd.f32 0.0, %v832
  %834 = vdwg.mxu0
  %835 = vmatpush.msra.mxu0 %v812
  %836 = vmatpush.msra.mxu0 %v808
  %837 = vmatpush.msra.mxu0 %v804
  %838 = vmatpush.msra.mxu0 %v800
  %839 = vmatpush.msra.mxu0 %v796
  %840 = vmatpush.msra.mxu0 %v792
  %841 = vmatpush.msra.mxu0 %v788
  %842 = vmatpush.msra.mxu0 %v784
  %843 = vmatpush.msra.mxu0 %v780
  %844 = vmatpush.msra.mxu0 %v776
  %845 = vmatpush.msra.mxu0 %v772
  %846 = vmatpush.msra.mxu0 %v768
  %847 = vmatpush.msra.mxu0 %v764
  %848 = vmatpush.msra.mxu0 %v760
  %849 = vmatpush.msra.mxu0 %v756
  %850 = vmatpush.msra.mxu0 %v752
  %851 = vmatmul.f32.gmra.mxu0 %v742
  %v852 = vpop.f32.mrf.mxu0
  %v853 = vadd.f32 0.0, %v852
  %854 = vdwg.mxu0
  %855 = vmatpush.msra.mxu0 %v813
  %856 = vmatpush.msra.mxu0 %v809
  %857 = vmatpush.msra.mxu0 %v805
  %858 = vmatpush.msra.mxu0 %v801
  %859 = vmatpush.msra.mxu0 %v797
  %860 = vmatpush.msra.mxu0 %v793
  %861 = vmatpush.msra.mxu0 %v789
  %862 = vmatpush.msra.mxu0 %v785
  %863 = vmatpush.msra.mxu0 %v781
  %864 = vmatpush.msra.mxu0 %v777
  %865 = vmatpush.msra.mxu0 %v773
  %866 = vmatpush.msra.mxu0 %v769
  %867 = vmatpush.msra.mxu0 %v765
  %868 = vmatpush.msra.mxu0 %v761
  %869 = vmatpush.msra.mxu0 %v757
  %870 = vmatpush.msra.mxu0 %v753
  %871 = vmatmul.f32.gmra.mxu0 %v742
  %v872 = vpop.f32.mrf.mxu0
  %v873 = vadd.f32 0.0, %v872
  %874 = vdwg.mxu0
  %875 = vmatpush.msra.mxu0 %v814
  %876 = vmatpush.msra.mxu0 %v810
  %877 = vmatpush.msra.mxu0 %v806
  %878 = vmatpush.msra.mxu0 %v802
  %879 = vmatpush.msra.mxu0 %v798
  %880 = vmatpush.msra.mxu0 %v794
  %881 = vmatpush.msra.mxu0 %v790
  %882 = vmatpush.msra.mxu0 %v786
  %883 = vmatpush.msra.mxu0 %v782
  %884 = vmatpush.msra.mxu0 %v778
  %885 = vmatpush.msra.mxu0 %v774
  %886 = vmatpush.msra.mxu0 %v770
  %887 = vmatpush.msra.mxu0 %v766
  %888 = vmatpush.msra.mxu0 %v762
  %889 = vmatpush.msra.mxu0 %v758
  %890 = vmatpush.msra.mxu0 %v754
  %891 = vmatmul.f32.gmra.mxu0 %v742
  %v892 = vpop.f32.mrf.mxu0
  %v893 = vadd.f32 0.0, %v892
  %894 = vdwg.mxu0
  %v895 = vadd.f32 %v747, %v833
  %v896 = vadd.f32 %v748, %v853
  %v897 = vadd.f32 %v749, %v873
  %v898 = vadd.f32 %v750, %v893
  %v899 = vxor.u32 %v895, 2147483648
  %v900 = vmul.f32 %v899, 1.442695
  %v901 = vpow.pop %v900
  %v902 = vadd.f32 %v901, 1.0
  %v903 = vrcp.pop %v902
  %v904 = vmul.f32 %v902, %v903
  %v905 = vsub.f32 1.0, %v904
  %v906 = vmul.f32 %v903, %v905
  %v907 = vadd.f32 %v903, %v906
  %vm908 = vweird.f32 %v902
  %vm909 = vweird.f32 %v903
  %vm910 = vmor %vm908, %vm909
  %v911 = vsel %vm910, %v903, %v907
  %v912 = vand.u32 2147483647, %v902
  %vm913 = vcmp.eq.f32.partialorder %v912, 8.507059e+37
  %v914 = vand.u32 %v902, 2147483648
  %v915 = vor.u32 1.1754944e-38, %v914
  %v916 = vsel %vm913, %v915, %v911
  %v917 = vmul.f32 1.0, %v916
  %v918 = vxor.u32 %v896, 2147483648
  %v919 = vmul.f32 %v918, 1.442695
  %v920 = vpow.pop %v919
  %v921 = vadd.f32 %v920, 1.0
  %v922 = vrcp.pop %v921
  %v923 = vmul.f32 %v921, %v922
  %v924 = vsub.f32 1.0, %v923
  %v925 = vmul.f32 %v922, %v924
  %v926 = vadd.f32 %v922, %v925
  %vm927 = vweird.f32 %v921
  %vm928 = vweird.f32 %v922
  %vm929 = vmor %vm927, %vm928
  %v930 = vsel %vm929, %v922, %v926
  %v931 = vand.u32 2147483647, %v921
  %vm932 = vcmp.eq.f32.partialorder %v931, 8.507059e+37
  %v933 = vand.u32 %v921, 2147483648
  %v934 = vor.u32 1.1754944e-38, %v933
  %v935 = vsel %vm932, %v934, %v930
  %v936 = vmul.f32 1.0, %v935
  %v937 = vtanh.pop %v897
  %v938 = vxor.u32 %v898, 2147483648
  %v939 = vmul.f32 %v938, 1.442695
  %v940 = vpow.pop %v939
  %v941 = vadd.f32 %v940, 1.0
  %v942 = vrcp.pop %v941
  %v943 = vmul.f32 %v941, %v942
  %v944 = vsub.f32 1.0, %v943
  %v945 = vmul.f32 %v942, %v944
  %v946 = vadd.f32 %v942, %v945
  %vm947 = vweird.f32 %v941
  %vm948 = vweird.f32 %v942
  %vm949 = vmor %vm947, %vm948
  %v950 = vsel %vm949, %v942, %v946
  %v951 = vand.u32 2147483647, %v941
  %vm952 = vcmp.eq.f32.partialorder %v951, 8.507059e+37
  %v953 = vand.u32 %v941, 2147483648
  %v954 = vor.u32 1.1754944e-38, %v953
  %v955 = vsel %vm952, %v954, %v950
  %v956 = vmul.f32 1.0, %v955
  %v957 = vmul.f32 %v936, %v743
  %v958 = vmul.f32 %v917, %v937
  %v959 = vadd.f32 %v957, %v958
  %v960 = vtanh.pop %v959
  %v961 = vmul.f32 %v956, %v960
  %s962 = sadd.s32 %s281, 2
  %p963 = scmp.lt.s32.totalorder %s962, 8
  %s964 = scalar_select %p963, 1, 0
  %v965 = vstv %s964
  %vm966 = vcmp.eq.s32.totalorder %v965, 1
  %v967 = vsel %vm966, %v961, %v742
  %968 = vst [vmem:[#allocation2] sm:$0xff] %v967
  %v969 = vsel %vm966, %v959, %v743
  %970 = vst [vmem:[#allocation3] sm:$0xff] %v969
  %s971 = scalar_lea.vmem %s4, 16
  %972 = vst [vmem:[%s971] sm:$0xff] %v961
  %v973 = vld [vmem:[#allocation2] sm:$0xff]
  %v974 = vld [vmem:[#allocation3] sm:$0xff]
  %s975 = smul.u32 3, 4
  %s976 = smul.addr %s975, 8
  %s977 = scalar_lea.vmem [#allocation4], %s976
  %v978 = vld [vmem:[%s977] sm:$0xff]
  %v979 = vld [vmem:[%s977 + $0x8] sm:$0xff]
  %v980 = vld [vmem:[%s977 + $0x10] sm:$0xff]
  %v981 = vld [vmem:[%s977 + $0x18] sm:$0xff]
  %v982 = vld [vmem:[%s2] sm:$0xff]
  %v983 = vld [vmem:[%s2 + $0x8] sm:$0xff]
  %v984 = vld [vmem:[%s2 + $0x10] sm:$0xff]
  %v985 = vld [vmem:[%s2 + $0x18] sm:$0xff]
  %v986 = vld [vmem:[%s2 + $0x20] sm:$0xff]
  %v987 = vld [vmem:[%s2 + $0x28] sm:$0xff]
  %v988 = vld [vmem:[%s2 + $0x30] sm:$0xff]
  %v989 = vld [vmem:[%s2 + $0x38] sm:$0xff]
  %v990 = vld [vmem:[%s2 + $0x40] sm:$0xff]
  %v991 = vld [vmem:[%s2 + $0x48] sm:$0xff]
  %v992 = vld [vmem:[%s2 + $0x50] sm:$0xff]
  %v993 = vld [vmem:[%s2 + $0x58] sm:$0xff]
  %v994 = vld [vmem:[%s2 + $0x60] sm:$0xff]
  %v995 = vld [vmem:[%s2 + $0x68] sm:$0xff]
  %v996 = vld [vmem:[%s2 + $0x70] sm:$0xff]
  %v997 = vld [vmem:[%s2 + $0x78] sm:$0xff]
  %v998 = vld [vmem:[%s2 + $0x80] sm:$0xff]
  %v999 = vld [vmem:[%s2 + $0x88] sm:$0xff]
  %v1000 = vld [vmem:[%s2 + $0x90] sm:$0xff]
  %v1001 = vld [vmem:[%s2 + $0x98] sm:$0xff]
  %v1002 = vld [vmem:[%s2 + $0xa0] sm:$0xff]
  %v1003 = vld [vmem:[%s2 + $0xa8] sm:$0xff]
  %v1004 = vld [vmem:[%s2 + $0xb0] sm:$0xff]
  %v1005 = vld [vmem:[%s2 + $0xb8] sm:$0xff]
  %v1006 = vld [vmem:[%s2 + $0xc0] sm:$0xff]
  %v1007 = vld [vmem:[%s2 + $0xc8] sm:$0xff]
  %v1008 = vld [vmem:[%s2 + $0xd0] sm:$0xff]
  %v1009 = vld [vmem:[%s2 + $0xd8] sm:$0xff]
  %v1010 = vld [vmem:[%s2 + $0xe0] sm:$0xff]
  %v1011 = vld [vmem:[%s2 + $0xe8] sm:$0xff]
  %v1012 = vld [vmem:[%s2 + $0xf0] sm:$0xff]
  %v1013 = vld [vmem:[%s2 + $0xf8] sm:$0xff]
  %v1014 = vld [vmem:[%s2 + $0x100] sm:$0xff]
  %v1015 = vld [vmem:[%s2 + $0x108] sm:$0xff]
  %v1016 = vld [vmem:[%s2 + $0x110] sm:$0xff]
  %v1017 = vld [vmem:[%s2 + $0x118] sm:$0xff]
  %v1018 = vld [vmem:[%s2 + $0x120] sm:$0xff]
  %v1019 = vld [vmem:[%s2 + $0x128] sm:$0xff]
  %v1020 = vld [vmem:[%s2 + $0x130] sm:$0xff]
  %v1021 = vld [vmem:[%s2 + $0x138] sm:$0xff]
  %v1022 = vld [vmem:[%s2 + $0x140] sm:$0xff]
  %v1023 = vld [vmem:[%s2 + $0x148] sm:$0xff]
  %v1024 = vld [vmem:[%s2 + $0x150] sm:$0xff]
  %v1025 = vld [vmem:[%s2 + $0x158] sm:$0xff]
  %v1026 = vld [vmem:[%s2 + $0x160] sm:$0xff]
  %v1027 = vld [vmem:[%s2 + $0x168] sm:$0xff]
  %v1028 = vld [vmem:[%s2 + $0x170] sm:$0xff]
  %v1029 = vld [vmem:[%s2 + $0x178] sm:$0xff]
  %v1030 = vld [vmem:[%s2 + $0x180] sm:$0xff]
  %v1031 = vld [vmem:[%s2 + $0x188] sm:$0xff]
  %v1032 = vld [vmem:[%s2 + $0x190] sm:$0xff]
  %v1033 = vld [vmem:[%s2 + $0x198] sm:$0xff]
  %v1034 = vld [vmem:[%s2 + $0x1a0] sm:$0xff]
  %v1035 = vld [vmem:[%s2 + $0x1a8] sm:$0xff]
  %v1036 = vld [vmem:[%s2 + $0x1b0] sm:$0xff]
  %v1037 = vld [vmem:[%s2 + $0x1b8] sm:$0xff]
  %v1038 = vld [vmem:[%s2 + $0x1c0] sm:$0xff]
  %v1039 = vld [vmem:[%s2 + $0x1c8] sm:$0xff]
  %v1040 = vld [vmem:[%s2 + $0x1d0] sm:$0xff]
  %v1041 = vld [vmem:[%s2 + $0x1d8] sm:$0xff]
  %v1042 = vld [vmem:[%s2 + $0x1e0] sm:$0xff]
  %v1043 = vld [vmem:[%s2 + $0x1e8] sm:$0xff]
  %v1044 = vld [vmem:[%s2 + $0x1f0] sm:$0xff]
  %v1045 = vld [vmem:[%s2 + $0x1f8] sm:$0xff]
  %1046 = vmatpush.msra.mxu0 %v1042
  %1047 = vmatpush.msra.mxu0 %v1038
  %1048 = vmatpush.msra.mxu0 %v1034
  %1049 = vmatpush.msra.mxu0 %v1030
  %1050 = vmatpush.msra.mxu0 %v1026
  %1051 = vmatpush.msra.mxu0 %v1022
  %1052 = vmatpush.msra.mxu0 %v1018
  %1053 = vmatpush.msra.mxu0 %v1014
  %1054 = vmatpush.msra.mxu0 %v1010
  %1055 = vmatpush.msra.mxu0 %v1006
  %1056 = vmatpush.msra.mxu0 %v1002
  %1057 = vmatpush.msra.mxu0 %v998
  %1058 = vmatpush.msra.mxu0 %v994
  %1059 = vmatpush.msra.mxu0 %v990
  %1060 = vmatpush.msra.mxu0 %v986
  %1061 = vmatpush.msra.mxu0 %v982
  %1062 = vmatmul.f32.gmra.mxu0 %v973
  %v1063 = vpop.f32.mrf.mxu0
  %v1064 = vadd.f32 0.0, %v1063
  %1065 = vdwg.mxu0
  %1066 = vmatpush.msra.mxu0 %v1043
  %1067 = vmatpush.msra.mxu0 %v1039
  %1068 = vmatpush.msra.mxu0 %v1035
  %1069 = vmatpush.msra.mxu0 %v1031
  %1070 = vmatpush.msra.mxu0 %v1027
  %1071 = vmatpush.msra.mxu0 %v1023
  %1072 = vmatpush.msra.mxu0 %v1019
  %1073 = vmatpush.msra.mxu0 %v1015
  %1074 = vmatpush.msra.mxu0 %v1011
  %1075 = vmatpush.msra.mxu0 %v1007
  %1076 = vmatpush.msra.mxu0 %v1003
  %1077 = vmatpush.msra.mxu0 %v999
  %1078 = vmatpush.msra.mxu0 %v995
  %1079 = vmatpush.msra.mxu0 %v991
  %1080 = vmatpush.msra.mxu0 %v987
  %1081 = vmatpush.msra.mxu0 %v983
  %1082 = vmatmul.f32.gmra.mxu0 %v973
  %v1083 = vpop.f32.mrf.mxu0
  %v1084 = vadd.f32 0.0, %v1083
  %1085 = vdwg.mxu0
  %1086 = vmatpush.msra.mxu0 %v1044
  %1087 = vmatpush.msra.mxu0 %v1040
  %1088 = vmatpush.msra.mxu0 %v1036
  %1089 = vmatpush.msra.mxu0 %v1032
  %1090 = vmatpush.msra.mxu0 %v1028
  %1091 = vmatpush.msra.mxu0 %v1024
  %1092 = vmatpush.msra.mxu0 %v1020
  %1093 = vmatpush.msra.mxu0 %v1016
  %1094 = vmatpush.msra.mxu0 %v1012
  %1095 = vmatpush.msra.mxu0 %v1008
  %1096 = vmatpush.msra.mxu0 %v1004
  %1097 = vmatpush.msra.mxu0 %v1000
  %1098 = vmatpush.msra.mxu0 %v996
  %1099 = vmatpush.msra.mxu0 %v992
  %1100 = vmatpush.msra.mxu0 %v988
  %1101 = vmatpush.msra.mxu0 %v984
  %1102 = vmatmul.f32.gmra.mxu0 %v973
  %v1103 = vpop.f32.mrf.mxu0
  %v1104 = vadd.f32 0.0, %v1103
  %1105 = vdwg.mxu0
  %1106 = vmatpush.msra.mxu0 %v1045
  %1107 = vmatpush.msra.mxu0 %v1041
  %1108 = vmatpush.msra.mxu0 %v1037
  %1109 = vmatpush.msra.mxu0 %v1033
  %1110 = vmatpush.msra.mxu0 %v1029
  %1111 = vmatpush.msra.mxu0 %v1025
  %1112 = vmatpush.msra.mxu0 %v1021
  %1113 = vmatpush.msra.mxu0 %v1017
  %1114 = vmatpush.msra.mxu0 %v1013
  %1115 = vmatpush.msra.mxu0 %v1009
  %1116 = vmatpush.msra.mxu0 %v1005
  %1117 = vmatpush.msra.mxu0 %v1001
  %1118 = vmatpush.msra.mxu0 %v997
  %1119 = vmatpush.msra.mxu0 %v993
  %1120 = vmatpush.msra.mxu0 %v989
  %1121 = vmatpush.msra.mxu0 %v985
  %1122 = vmatmul.f32.gmra.mxu0 %v973
  %v1123 = vpop.f32.mrf.mxu0
  %v1124 = vadd.f32 0.0, %v1123
  %1125 = vdwg.mxu0
  %v1126 = vadd.f32 %v978, %v1064
  %v1127 = vadd.f32 %v979, %v1084
  %v1128 = vadd.f32 %v980, %v1104
  %v1129 = vadd.f32 %v981, %v1124
  %v1130 = vxor.u32 %v1126, 2147483648
  %v1131 = vmul.f32 %v1130, 1.442695
  %v1132 = vpow.pop %v1131
  %v1133 = vadd.f32 %v1132, 1.0
  %v1134 = vrcp.pop %v1133
  %v1135 = vmul.f32 %v1133, %v1134
  %v1136 = vsub.f32 1.0, %v1135
  %v1137 = vmul.f32 %v1134, %v1136
  %v1138 = vadd.f32 %v1134, %v1137
  %vm1139 = vweird.f32 %v1133
  %vm1140 = vweird.f32 %v1134
  %vm1141 = vmor %vm1139, %vm1140
  %v1142 = vsel %vm1141, %v1134, %v1138
  %v1143 = vand.u32 2147483647, %v1133
  %vm1144 = vcmp.eq.f32.partialorder %v1143, 8.507059e+37
  %v1145 = vand.u32 %v1133, 2147483648
  %v1146 = vor.u32 1.1754944e-38, %v1145
  %v1147 = vsel %vm1144, %v1146, %v1142
  %v1148 = vmul.f32 1.0, %v1147
  %v1149 = vxor.u32 %v1127, 2147483648
  %v1150 = vmul.f32 %v1149, 1.442695
  %v1151 = vpow.pop %v1150
  %v1152 = vadd.f32 %v1151, 1.0
  %v1153 = vrcp.pop %v1152
  %v1154 = vmul.f32 %v1152, %v1153
  %v1155 = vsub.f32 1.0, %v1154
  %v1156 = vmul.f32 %v1153, %v1155
  %v1157 = vadd.f32 %v1153, %v1156
  %vm1158 = vweird.f32 %v1152
  %vm1159 = vweird.f32 %v1153
  %vm1160 = vmor %vm1158, %vm1159
  %v1161 = vsel %vm1160, %v1153, %v1157
  %v1162 = vand.u32 2147483647, %v1152
  %vm1163 = vcmp.eq.f32.partialorder %v1162, 8.507059e+37
  %v1164 = vand.u32 %v1152, 2147483648
  %v1165 = vor.u32 1.1754944e-38, %v1164
  %v1166 = vsel %vm1163, %v1165, %v1161
  %v1167 = vmul.f32 1.0, %v1166
  %v1168 = vtanh.pop %v1128
  %v1169 = vxor.u32 %v1129, 2147483648
  %v1170 = vmul.f32 %v1169, 1.442695
  %v1171 = vpow.pop %v1170
  %v1172 = vadd.f32 %v1171, 1.0
  %v1173 = vrcp.pop %v1172
  %v1174 = vmul.f32 %v1172, %v1173
  %v1175 = vsub.f32 1.0, %v1174
  %v1176 = vmul.f32 %v1173, %v1175
  %v1177 = vadd.f32 %v1173, %v1176
  %vm1178 = vweird.f32 %v1172
  %vm1179 = vweird.f32 %v1173
  %vm1180 = vmor %vm1178, %vm1179
  %v1181 = vsel %vm1180, %v1173, %v1177
  %v1182 = vand.u32 2147483647, %v1172
  %vm1183 = vcmp.eq.f32.partialorder %v1182, 8.507059e+37
  %v1184 = vand.u32 %v1172, 2147483648
  %v1185 = vor.u32 1.1754944e-38, %v1184
  %v1186 = vsel %vm1183, %v1185, %v1181
  %v1187 = vmul.f32 1.0, %v1186
  %v1188 = vmul.f32 %v1167, %v974
  %v1189 = vmul.f32 %v1148, %v1168
  %v1190 = vadd.f32 %v1188, %v1189
  %v1191 = vtanh.pop %v1190
  %v1192 = vmul.f32 %v1187, %v1191
  %s1193 = sadd.s32 %s281, 3
  %p1194 = scmp.lt.s32.totalorder %s1193, 8
  %s1195 = scalar_select %p1194, 1, 0
  %v1196 = vstv %s1195
  %vm1197 = vcmp.eq.s32.totalorder %v1196, 1
  %v1198 = vsel %vm1197, %v1192, %v973
  %1199 = vst [vmem:[#allocation2] sm:$0xff] %v1198
  %v1200 = vsel %vm1197, %v1190, %v974
  %1201 = vst [vmem:[#allocation3] sm:$0xff] %v1200
  %s1202 = scalar_lea.vmem %s4, 24
  %1203 = vst [vmem:[%s1202] sm:$0xff] %v1192
  %v1204 = vld [vmem:[#allocation2] sm:$0xff]
  %v1205 = vld [vmem:[#allocation3] sm:$0xff]
  %s1206 = smul.u32 4, 4
  %s1207 = smul.addr %s1206, 8
  %s1208 = scalar_lea.vmem [#allocation4], %s1207
  %v1209 = vld [vmem:[%s1208] sm:$0xff]
  %v1210 = vld [vmem:[%s1208 + $0x8] sm:$0xff]
  %v1211 = vld [vmem:[%s1208 + $0x10] sm:$0xff]
  %v1212 = vld [vmem:[%s1208 + $0x18] sm:$0xff]
  %v1213 = vld [vmem:[%s2] sm:$0xff]
  %v1214 = vld [vmem:[%s2 + $0x8] sm:$0xff]
  %v1215 = vld [vmem:[%s2 + $0x10] sm:$0xff]
  %v1216 = vld [vmem:[%s2 + $0x18] sm:$0xff]
  %v1217 = vld [vmem:[%s2 + $0x20] sm:$0xff]
  %v1218 = vld [vmem:[%s2 + $0x28] sm:$0xff]
  %v1219 = vld [vmem:[%s2 + $0x30] sm:$0xff]
  %v1220 = vld [vmem:[%s2 + $0x38] sm:$0xff]
  %v1221 = vld [vmem:[%s2 + $0x40] sm:$0xff]
  %v1222 = vld [vmem:[%s2 + $0x48] sm:$0xff]
  %v1223 = vld [vmem:[%s2 + $0x50] sm:$0xff]
  %v1224 = vld [vmem:[%s2 + $0x58] sm:$0xff]
  %v1225 = vld [vmem:[%s2 + $0x60] sm:$0xff]
  %v1226 = vld [vmem:[%s2 + $0x68] sm:$0xff]
  %v1227 = vld [vmem:[%s2 + $0x70] sm:$0xff]
  %v1228 = vld [vmem:[%s2 + $0x78] sm:$0xff]
  %v1229 = vld [vmem:[%s2 + $0x80] sm:$0xff]
  %v1230 = vld [vmem:[%s2 + $0x88] sm:$0xff]
  %v1231 = vld [vmem:[%s2 + $0x90] sm:$0xff]
  %v1232 = vld [vmem:[%s2 + $0x98] sm:$0xff]
  %v1233 = vld [vmem:[%s2 + $0xa0] sm:$0xff]
  %v1234 = vld [vmem:[%s2 + $0xa8] sm:$0xff]
  %v1235 = vld [vmem:[%s2 + $0xb0] sm:$0xff]
  %v1236 = vld [vmem:[%s2 + $0xb8] sm:$0xff]
  %v1237 = vld [vmem:[%s2 + $0xc0] sm:$0xff]
  %v1238 = vld [vmem:[%s2 + $0xc8] sm:$0xff]
  %v1239 = vld [vmem:[%s2 + $0xd0] sm:$0xff]
  %v1240 = vld [vmem:[%s2 + $0xd8] sm:$0xff]
  %v1241 = vld [vmem:[%s2 + $0xe0] sm:$0xff]
  %v1242 = vld [vmem:[%s2 + $0xe8] sm:$0xff]
  %v1243 = vld [vmem:[%s2 + $0xf0] sm:$0xff]
  %v1244 = vld [vmem:[%s2 + $0xf8] sm:$0xff]
  %v1245 = vld [vmem:[%s2 + $0x100] sm:$0xff]
  %v1246 = vld [vmem:[%s2 + $0x108] sm:$0xff]
  %v1247 = vld [vmem:[%s2 + $0x110] sm:$0xff]
  %v1248 = vld [vmem:[%s2 + $0x118] sm:$0xff]
  %v1249 = vld [vmem:[%s2 + $0x120] sm:$0xff]
  %v1250 = vld [vmem:[%s2 + $0x128] sm:$0xff]
  %v1251 = vld [vmem:[%s2 + $0x130] sm:$0xff]
  %v1252 = vld [vmem:[%s2 + $0x138] sm:$0xff]
  %v1253 = vld [vmem:[%s2 + $0x140] sm:$0xff]
  %v1254 = vld [vmem:[%s2 + $0x148] sm:$0xff]
  %v1255 = vld [vmem:[%s2 + $0x150] sm:$0xff]
  %v1256 = vld [vmem:[%s2 + $0x158] sm:$0xff]
  %v1257 = vld [vmem:[%s2 + $0x160] sm:$0xff]
  %v1258 = vld [vmem:[%s2 + $0x168] sm:$0xff]
  %v1259 = vld [vmem:[%s2 + $0x170] sm:$0xff]
  %v1260 = vld [vmem:[%s2 + $0x178] sm:$0xff]
  %v1261 = vld [vmem:[%s2 + $0x180] sm:$0xff]
  %v1262 = vld [vmem:[%s2 + $0x188] sm:$0xff]
  %v1263 = vld [vmem:[%s2 + $0x190] sm:$0xff]
  %v1264 = vld [vmem:[%s2 + $0x198] sm:$0xff]
  %v1265 = vld [vmem:[%s2 + $0x1a0] sm:$0xff]
  %v1266 = vld [vmem:[%s2 + $0x1a8] sm:$0xff]
  %v1267 = vld [vmem:[%s2 + $0x1b0] sm:$0xff]
  %v1268 = vld [vmem:[%s2 + $0x1b8] sm:$0xff]
  %v1269 = vld [vmem:[%s2 + $0x1c0] sm:$0xff]
  %v1270 = vld [vmem:[%s2 + $0x1c8] sm:$0xff]
  %v1271 = vld [vmem:[%s2 + $0x1d0] sm:$0xff]
  %v1272 = vld [vmem:[%s2 + $0x1d8] sm:$0xff]
  %v1273 = vld [vmem:[%s2 + $0x1e0] sm:$0xff]
  %v1274 = vld [vmem:[%s2 + $0x1e8] sm:$0xff]
  %v1275 = vld [vmem:[%s2 + $0x1f0] sm:$0xff]
  %v1276 = vld [vmem:[%s2 + $0x1f8] sm:$0xff]
  %1277 = vmatpush.msra.mxu0 %v1273
  %1278 = vmatpush.msra.mxu0 %v1269
  %1279 = vmatpush.msra.mxu0 %v1265
  %1280 = vmatpush.msra.mxu0 %v1261
  %1281 = vmatpush.msra.mxu0 %v1257
  %1282 = vmatpush.msra.mxu0 %v1253
  %1283 = vmatpush.msra.mxu0 %v1249
  %1284 = vmatpush.msra.mxu0 %v1245
  %1285 = vmatpush.msra.mxu0 %v1241
  %1286 = vmatpush.msra.mxu0 %v1237
  %1287 = vmatpush.msra.mxu0 %v1233
  %1288 = vmatpush.msra.mxu0 %v1229
  %1289 = vmatpush.msra.mxu0 %v1225
  %1290 = vmatpush.msra.mxu0 %v1221
  %1291 = vmatpush.msra.mxu0 %v1217
  %1292 = vmatpush.msra.mxu0 %v1213
  %1293 = vmatmul.f32.gmra.mxu0 %v1204
  %v1294 = vpop.f32.mrf.mxu0
  %v1295 = vadd.f32 0.0, %v1294
  %1296 = vdwg.mxu0
  %1297 = vmatpush.msra.mxu0 %v1274
  %1298 = vmatpush.msra.mxu0 %v1270
  %1299 = vmatpush.msra.mxu0 %v1266
  %1300 = vmatpush.msra.mxu0 %v1262
  %1301 = vmatpush.msra.mxu0 %v1258
  %1302 = vmatpush.msra.mxu0 %v1254
  %1303 = vmatpush.msra.mxu0 %v1250
  %1304 = vmatpush.msra.mxu0 %v1246
  %1305 = vmatpush.msra.mxu0 %v1242
  %1306 = vmatpush.msra.mxu0 %v1238
  %1307 = vmatpush.msra.mxu0 %v1234
  %1308 = vmatpush.msra.mxu0 %v1230
  %1309 = vmatpush.msra.mxu0 %v1226
  %1310 = vmatpush.msra.mxu0 %v1222
  %1311 = vmatpush.msra.mxu0 %v1218
  %1312 = vmatpush.msra.mxu0 %v1214
  %1313 = vmatmul.f32.gmra.mxu0 %v1204
  %v1314 = vpop.f32.mrf.mxu0
  %v1315 = vadd.f32 0.0, %v1314
  %1316 = vdwg.mxu0
  %1317 = vmatpush.msra.mxu0 %v1275
  %1318 = vmatpush.msra.mxu0 %v1271
  %1319 = vmatpush.msra.mxu0 %v1267
  %1320 = vmatpush.msra.mxu0 %v1263
  %1321 = vmatpush.msra.mxu0 %v1259
  %1322 = vmatpush.msra.mxu0 %v1255
  %1323 = vmatpush.msra.mxu0 %v1251
  %1324 = vmatpush.msra.mxu0 %v1247
  %1325 = vmatpush.msra.mxu0 %v1243
  %1326 = vmatpush.msra.mxu0 %v1239
  %1327 = vmatpush.msra.mxu0 %v1235
  %1328 = vmatpush.msra.mxu0 %v1231
  %1329 = vmatpush.msra.mxu0 %v1227
  %1330 = vmatpush.msra.mxu0 %v1223
  %1331 = vmatpush.msra.mxu0 %v1219
  %1332 = vmatpush.msra.mxu0 %v1215
  %1333 = vmatmul.f32.gmra.mxu0 %v1204
  %v1334 = vpop.f32.mrf.mxu0
  %v1335 = vadd.f32 0.0, %v1334
  %1336 = vdwg.mxu0
  %1337 = vmatpush.msra.mxu0 %v1276
  %1338 = vmatpush.msra.mxu0 %v1272
  %1339 = vmatpush.msra.mxu0 %v1268
  %1340 = vmatpush.msra.mxu0 %v1264
  %1341 = vmatpush.msra.mxu0 %v1260
  %1342 = vmatpush.msra.mxu0 %v1256
  %1343 = vmatpush.msra.mxu0 %v1252
  %1344 = vmatpush.msra.mxu0 %v1248
  %1345 = vmatpush.msra.mxu0 %v1244
  %1346 = vmatpush.msra.mxu0 %v1240
  %1347 = vmatpush.msra.mxu0 %v1236
  %1348 = vmatpush.msra.mxu0 %v1232
  %1349 = vmatpush.msra.mxu0 %v1228
  %1350 = vmatpush.msra.mxu0 %v1224
  %1351 = vmatpush.msra.mxu0 %v1220
  %1352 = vmatpush.msra.mxu0 %v1216
  %1353 = vmatmul.f32.gmra.mxu0 %v1204
  %v1354 = vpop.f32.mrf.mxu0
  %v1355 = vadd.f32 0.0, %v1354
  %1356 = vdwg.mxu0
  %v1357 = vadd.f32 %v1209, %v1295
  %v1358 = vadd.f32 %v1210, %v1315
  %v1359 = vadd.f32 %v1211, %v1335
  %v1360 = vadd.f32 %v1212, %v1355
  %v1361 = vxor.u32 %v1357, 2147483648
  %v1362 = vmul.f32 %v1361, 1.442695
  %v1363 = vpow.pop %v1362
  %v1364 = vadd.f32 %v1363, 1.0
  %v1365 = vrcp.pop %v1364
  %v1366 = vmul.f32 %v1364, %v1365
  %v1367 = vsub.f32 1.0, %v1366
  %v1368 = vmul.f32 %v1365, %v1367
  %v1369 = vadd.f32 %v1365, %v1368
  %vm1370 = vweird.f32 %v1364
  %vm1371 = vweird.f32 %v1365
  %vm1372 = vmor %vm1370, %vm1371
  %v1373 = vsel %vm1372, %v1365, %v1369
  %v1374 = vand.u32 2147483647, %v1364
  %vm1375 = vcmp.eq.f32.partialorder %v1374, 8.507059e+37
  %v1376 = vand.u32 %v1364, 2147483648
  %v1377 = vor.u32 1.1754944e-38, %v1376
  %v1378 = vsel %vm1375, %v1377, %v1373
  %v1379 = vmul.f32 1.0, %v1378
  %v1380 = vxor.u32 %v1358, 2147483648
  %v1381 = vmul.f32 %v1380, 1.442695
  %v1382 = vpow.pop %v1381
  %v1383 = vadd.f32 %v1382, 1.0
  %v1384 = vrcp.pop %v1383
  %v1385 = vmul.f32 %v1383, %v1384
  %v1386 = vsub.f32 1.0, %v1385
  %v1387 = vmul.f32 %v1384, %v1386
  %v1388 = vadd.f32 %v1384, %v1387
  %vm1389 = vweird.f32 %v1383
  %vm1390 = vweird.f32 %v1384
  %vm1391 = vmor %vm1389, %vm1390
  %v1392 = vsel %vm1391, %v1384, %v1388
  %v1393 = vand.u32 2147483647, %v1383
  %vm1394 = vcmp.eq.f32.partialorder %v1393, 8.507059e+37
  %v1395 = vand.u32 %v1383, 2147483648
  %v1396 = vor.u32 1.1754944e-38, %v1395
  %v1397 = vsel %vm1394, %v1396, %v1392
  %v1398 = vmul.f32 1.0, %v1397
  %v1399 = vtanh.pop %v1359
  %v1400 = vxor.u32 %v1360, 2147483648
  %v1401 = vmul.f32 %v1400, 1.442695
  %v1402 = vpow.pop %v1401
  %v1403 = vadd.f32 %v1402, 1.0
  %v1404 = vrcp.pop %v1403
  %v1405 = vmul.f32 %v1403, %v1404
  %v1406 = vsub.f32 1.0, %v1405
  %v1407 = vmul.f32 %v1404, %v1406
  %v1408 = vadd.f32 %v1404, %v1407
  %vm1409 = vweird.f32 %v1403
  %vm1410 = vweird.f32 %v1404
  %vm1411 = vmor %vm1409, %vm1410
  %v1412 = vsel %vm1411, %v1404, %v1408
  %v1413 = vand.u32 2147483647, %v1403
  %vm1414 = vcmp.eq.f32.partialorder %v1413, 8.507059e+37
  %v1415 = vand.u32 %v1403, 2147483648
  %v1416 = vor.u32 1.1754944e-38, %v1415
  %v1417 = vsel %vm1414, %v1416, %v1412
  %v1418 = vmul.f32 1.0, %v1417
  %v1419 = vmul.f32 %v1398, %v1205
  %v1420 = vmul.f32 %v1379, %v1399
  %v1421 = vadd.f32 %v1419, %v1420
  %v1422 = vtanh.pop %v1421
  %v1423 = vmul.f32 %v1418, %v1422
  %s1424 = sadd.s32 %s281, 4
  %p1425 = scmp.lt.s32.totalorder %s1424, 8
  %s1426 = scalar_select %p1425, 1, 0
  %v1427 = vstv %s1426
  %vm1428 = vcmp.eq.s32.totalorder %v1427, 1
  %v1429 = vsel %vm1428, %v1423, %v1204
  %1430 = vst [vmem:[#allocation2] sm:$0xff] %v1429
  %v1431 = vsel %vm1428, %v1421, %v1205
  %1432 = vst [vmem:[#allocation3] sm:$0xff] %v1431
  %s1433 = scalar_lea.vmem %s4, 32
  %1434 = vst [vmem:[%s1433] sm:$0xff] %v1423
  %v1435 = vld [vmem:[#allocation2] sm:$0xff]
  %v1436 = vld [vmem:[#allocation3] sm:$0xff]
  %s1437 = smul.u32 5, 4
  %s1438 = smul.addr %s1437, 8
  %s1439 = scalar_lea.vmem [#allocation4], %s1438
  %v1440 = vld [vmem:[%s1439] sm:$0xff]
  %v1441 = vld [vmem:[%s1439 + $0x8] sm:$0xff]
  %v1442 = vld [vmem:[%s1439 + $0x10] sm:$0xff]
  %v1443 = vld [vmem:[%s1439 + $0x18] sm:$0xff]
  %v1444 = vld [vmem:[%s2] sm:$0xff]
  %v1445 = vld [vmem:[%s2 + $0x8] sm:$0xff]
  %v1446 = vld [vmem:[%s2 + $0x10] sm:$0xff]
  %v1447 = vld [vmem:[%s2 + $0x18] sm:$0xff]
  %v1448 = vld [vmem:[%s2 + $0x20] sm:$0xff]
  %v1449 = vld [vmem:[%s2 + $0x28] sm:$0xff]
  %v1450 = vld [vmem:[%s2 + $0x30] sm:$0xff]
  %v1451 = vld [vmem:[%s2 + $0x38] sm:$0xff]
  %v1452 = vld [vmem:[%s2 + $0x40] sm:$0xff]
  %v1453 = vld [vmem:[%s2 + $0x48] sm:$0xff]
  %v1454 = vld [vmem:[%s2 + $0x50] sm:$0xff]
  %v1455 = vld [vmem:[%s2 + $0x58] sm:$0xff]
  %v1456 = vld [vmem:[%s2 + $0x60] sm:$0xff]
  %v1457 = vld [vmem:[%s2 + $0x68] sm:$0xff]
  %v1458 = vld [vmem:[%s2 + $0x70] sm:$0xff]
  %v1459 = vld [vmem:[%s2 + $0x78] sm:$0xff]
  %v1460 = vld [vmem:[%s2 + $0x80] sm:$0xff]
  %v1461 = vld [vmem:[%s2 + $0x88] sm:$0xff]
  %v1462 = vld [vmem:[%s2 + $0x90] sm:$0xff]
  %v1463 = vld [vmem:[%s2 + $0x98] sm:$0xff]
  %v1464 = vld [vmem:[%s2 + $0xa0] sm:$0xff]
  %v1465 = vld [vmem:[%s2 + $0xa8] sm:$0xff]
  %v1466 = vld [vmem:[%s2 + $0xb0] sm:$0xff]
  %v1467 = vld [vmem:[%s2 + $0xb8] sm:$0xff]
  %v1468 = vld [vmem:[%s2 + $0xc0] sm:$0xff]
  %v1469 = vld [vmem:[%s2 + $0xc8] sm:$0xff]
  %v1470 = vld [vmem:[%s2 + $0xd0] sm:$0xff]
  %v1471 = vld [vmem:[%s2 + $0xd8] sm:$0xff]
  %v1472 = vld [vmem:[%s2 + $0xe0] sm:$0xff]
  %v1473 = vld [vmem:[%s2 + $0xe8] sm:$0xff]
  %v1474 = vld [vmem:[%s2 + $0xf0] sm:$0xff]
  %v1475 = vld [vmem:[%s2 + $0xf8] sm:$0xff]
  %v1476 = vld [vmem:[%s2 + $0x100] sm:$0xff]
  %v1477 = vld [vmem:[%s2 + $0x108] sm:$0xff]
  %v1478 = vld [vmem:[%s2 + $0x110] sm:$0xff]
  %v1479 = vld [vmem:[%s2 + $0x118] sm:$0xff]
  %v1480 = vld [vmem:[%s2 + $0x120] sm:$0xff]
  %v1481 = vld [vmem:[%s2 + $0x128] sm:$0xff]
  %v1482 = vld [vmem:[%s2 + $0x130] sm:$0xff]
  %v1483 = vld [vmem:[%s2 + $0x138] sm:$0xff]
  %v1484 = vld [vmem:[%s2 + $0x140] sm:$0xff]
  %v1485 = vld [vmem:[%s2 + $0x148] sm:$0xff]
  %v1486 = vld [vmem:[%s2 + $0x150] sm:$0xff]
  %v1487 = vld [vmem:[%s2 + $0x158] sm:$0xff]
  %v1488 = vld [vmem:[%s2 + $0x160] sm:$0xff]
  %v1489 = vld [vmem:[%s2 + $0x168] sm:$0xff]
  %v1490 = vld [vmem:[%s2 + $0x170] sm:$0xff]
  %v1491 = vld [vmem:[%s2 + $0x178] sm:$0xff]
  %v1492 = vld [vmem:[%s2 + $0x180] sm:$0xff]
  %v1493 = vld [vmem:[%s2 + $0x188] sm:$0xff]
  %v1494 = vld [vmem:[%s2 + $0x190] sm:$0xff]
  %v1495 = vld [vmem:[%s2 + $0x198] sm:$0xff]
  %v1496 = vld [vmem:[%s2 + $0x1a0] sm:$0xff]
  %v1497 = vld [vmem:[%s2 + $0x1a8] sm:$0xff]
  %v1498 = vld [vmem:[%s2 + $0x1b0] sm:$0xff]
  %v1499 = vld [vmem:[%s2 + $0x1b8] sm:$0xff]
  %v1500 = vld [vmem:[%s2 + $0x1c0] sm:$0xff]
  %v1501 = vld [vmem:[%s2 + $0x1c8] sm:$0xff]
  %v1502 = vld [vmem:[%s2 + $0x1d0] sm:$0xff]
  %v1503 = vld [vmem:[%s2 + $0x1d8] sm:$0xff]
  %v1504 = vld [vmem:[%s2 + $0x1e0] sm:$0xff]
  %v1505 = vld [vmem:[%s2 + $0x1e8] sm:$0xff]
  %v1506 = vld [vmem:[%s2 + $0x1f0] sm:$0xff]
  %v1507 = vld [vmem:[%s2 + $0x1f8] sm:$0xff]
  %1508 = vmatpush.msra.mxu0 %v1504
  %1509 = vmatpush.msra.mxu0 %v1500
  %1510 = vmatpush.msra.mxu0 %v1496
  %1511 = vmatpush.msra.mxu0 %v1492
  %1512 = vmatpush.msra.mxu0 %v1488
  %1513 = vmatpush.msra.mxu0 %v1484
  %1514 = vmatpush.msra.mxu0 %v1480
  %1515 = vmatpush.msra.mxu0 %v1476
  %1516 = vmatpush.msra.mxu0 %v1472
  %1517 = vmatpush.msra.mxu0 %v1468
  %1518 = vmatpush.msra.mxu0 %v1464
  %1519 = vmatpush.msra.mxu0 %v1460
  %1520 = vmatpush.msra.mxu0 %v1456
  %1521 = vmatpush.msra.mxu0 %v1452
  %1522 = vmatpush.msra.mxu0 %v1448
  %1523 = vmatpush.msra.mxu0 %v1444
  %1524 = vmatmul.f32.gmra.mxu0 %v1435
  %v1525 = vpop.f32.mrf.mxu0
  %v1526 = vadd.f32 0.0, %v1525
  %1527 = vdwg.mxu0
  %1528 = vmatpush.msra.mxu0 %v1505
  %1529 = vmatpush.msra.mxu0 %v1501
  %1530 = vmatpush.msra.mxu0 %v1497
  %1531 = vmatpush.msra.mxu0 %v1493
  %1532 = vmatpush.msra.mxu0 %v1489
  %1533 = vmatpush.msra.mxu0 %v1485
  %1534 = vmatpush.msra.mxu0 %v1481
  %1535 = vmatpush.msra.mxu0 %v1477
  %1536 = vmatpush.msra.mxu0 %v1473
  %1537 = vmatpush.msra.mxu0 %v1469
  %1538 = vmatpush.msra.mxu0 %v1465
  %1539 = vmatpush.msra.mxu0 %v1461
  %1540 = vmatpush.msra.mxu0 %v1457
  %1541 = vmatpush.msra.mxu0 %v1453
  %1542 = vmatpush.msra.mxu0 %v1449
  %1543 = vmatpush.msra.mxu0 %v1445
  %1544 = vmatmul.f32.gmra.mxu0 %v1435
  %v1545 = vpop.f32.mrf.mxu0
  %v1546 = vadd.f32 0.0, %v1545
  %1547 = vdwg.mxu0
  %1548 = vmatpush.msra.mxu0 %v1506
  %1549 = vmatpush.msra.mxu0 %v1502
  %1550 = vmatpush.msra.mxu0 %v1498
  %1551 = vmatpush.msra.mxu0 %v1494
  %1552 = vmatpush.msra.mxu0 %v1490
  %1553 = vmatpush.msra.mxu0 %v1486
  %1554 = vmatpush.msra.mxu0 %v1482
  %1555 = vmatpush.msra.mxu0 %v1478
  %1556 = vmatpush.msra.mxu0 %v1474
  %1557 = vmatpush.msra.mxu0 %v1470
  %1558 = vmatpush.msra.mxu0 %v1466
  %1559 = vmatpush.msra.mxu0 %v1462
  %1560 = vmatpush.msra.mxu0 %v1458
  %1561 = vmatpush.msra.mxu0 %v1454
  %1562 = vmatpush.msra.mxu0 %v1450
  %1563 = vmatpush.msra.mxu0 %v1446
  %1564 = vmatmul.f32.gmra.mxu0 %v1435
  %v1565 = vpop.f32.mrf.mxu0
  %v1566 = vadd.f32 0.0, %v1565
  %1567 = vdwg.mxu0
  %1568 = vmatpush.msra.mxu0 %v1507
  %1569 = vmatpush.msra.mxu0 %v1503
  %1570 = vmatpush.msra.mxu0 %v1499
  %1571 = vmatpush.msra.mxu0 %v1495
  %1572 = vmatpush.msra.mxu0 %v1491
  %1573 = vmatpush.msra.mxu0 %v1487
  %1574 = vmatpush.msra.mxu0 %v1483
  %1575 = vmatpush.msra.mxu0 %v1479
  %1576 = vmatpush.msra.mxu0 %v1475
  %1577 = vmatpush.msra.mxu0 %v1471
  %1578 = vmatpush.msra.mxu0 %v1467
  %1579 = vmatpush.msra.mxu0 %v1463
  %1580 = vmatpush.msra.mxu0 %v1459
  %1581 = vmatpush.msra.mxu0 %v1455
  %1582 = vmatpush.msra.mxu0 %v1451
  %1583 = vmatpush.msra.mxu0 %v1447
  %1584 = vmatmul.f32.gmra.mxu0 %v1435
  %v1585 = vpop.f32.mrf.mxu0
  %v1586 = vadd.f32 0.0, %v1585
  %1587 = vdwg.mxu0
  %v1588 = vadd.f32 %v1440, %v1526
  %v1589 = vadd.f32 %v1441, %v1546
  %v1590 = vadd.f32 %v1442, %v1566
  %v1591 = vadd.f32 %v1443, %v1586
  %v1592 = vxor.u32 %v1588, 2147483648
  %v1593 = vmul.f32 %v1592, 1.442695
  %v1594 = vpow.pop %v1593
  %v1595 = vadd.f32 %v1594, 1.0
  %v1596 = vrcp.pop %v1595
  %v1597 = vmul.f32 %v1595, %v1596
  %v1598 = vsub.f32 1.0, %v1597
  %v1599 = vmul.f32 %v1596, %v1598
  %v1600 = vadd.f32 %v1596, %v1599
  %vm1601 = vweird.f32 %v1595
  %vm1602 = vweird.f32 %v1596
  %vm1603 = vmor %vm1601, %vm1602
  %v1604 = vsel %vm1603, %v1596, %v1600
  %v1605 = vand.u32 2147483647, %v1595
  %vm1606 = vcmp.eq.f32.partialorder %v1605, 8.507059e+37
  %v1607 = vand.u32 %v1595, 2147483648
  %v1608 = vor.u32 1.1754944e-38, %v1607
  %v1609 = vsel %vm1606, %v1608, %v1604
  %v1610 = vmul.f32 1.0, %v1609
  %v1611 = vxor.u32 %v1589, 2147483648
  %v1612 = vmul.f32 %v1611, 1.442695
  %v1613 = vpow.pop %v1612
  %v1614 = vadd.f32 %v1613, 1.0
  %v1615 = vrcp.pop %v1614
  %v1616 = vmul.f32 %v1614, %v1615
  %v1617 = vsub.f32 1.0, %v1616
  %v1618 = vmul.f32 %v1615, %v1617
  %v1619 = vadd.f32 %v1615, %v1618
  %vm1620 = vweird.f32 %v1614
  %vm1621 = vweird.f32 %v1615
  %vm1622 = vmor %vm1620, %vm1621
  %v1623 = vsel %vm1622, %v1615, %v1619
  %v1624 = vand.u32 2147483647, %v1614
  %vm1625 = vcmp.eq.f32.partialorder %v1624, 8.507059e+37
  %v1626 = vand.u32 %v1614, 2147483648
  %v1627 = vor.u32 1.1754944e-38, %v1626
  %v1628 = vsel %vm1625, %v1627, %v1623
  %v1629 = vmul.f32 1.0, %v1628
  %v1630 = vtanh.pop %v1590
  %v1631 = vxor.u32 %v1591, 2147483648
  %v1632 = vmul.f32 %v1631, 1.442695
  %v1633 = vpow.pop %v1632
  %v1634 = vadd.f32 %v1633, 1.0
  %v1635 = vrcp.pop %v1634
  %v1636 = vmul.f32 %v1634, %v1635
  %v1637 = vsub.f32 1.0, %v1636
  %v1638 = vmul.f32 %v1635, %v1637
  %v1639 = vadd.f32 %v1635, %v1638
  %vm1640 = vweird.f32 %v1634
  %vm1641 = vweird.f32 %v1635
  %vm1642 = vmor %vm1640, %vm1641
  %v1643 = vsel %vm1642, %v1635, %v1639
  %v1644 = vand.u32 2147483647, %v1634
  %vm1645 = vcmp.eq.f32.partialorder %v1644, 8.507059e+37
  %v1646 = vand.u32 %v1634, 2147483648
  %v1647 = vor.u32 1.1754944e-38, %v1646
  %v1648 = vsel %vm1645, %v1647, %v1643
  %v1649 = vmul.f32 1.0, %v1648
  %v1650 = vmul.f32 %v1629, %v1436
  %v1651 = vmul.f32 %v1610, %v1630
  %v1652 = vadd.f32 %v1650, %v1651
  %v1653 = vtanh.pop %v1652
  %v1654 = vmul.f32 %v1649, %v1653
  %s1655 = sadd.s32 %s281, 5
  %p1656 = scmp.lt.s32.totalorder %s1655, 8
  %s1657 = scalar_select %p1656, 1, 0
  %v1658 = vstv %s1657
  %vm1659 = vcmp.eq.s32.totalorder %v1658, 1
  %v1660 = vsel %vm1659, %v1654, %v1435
  %1661 = vst [vmem:[#allocation2] sm:$0xff] %v1660
  %v1662 = vsel %vm1659, %v1652, %v1436
  %1663 = vst [vmem:[#allocation3] sm:$0xff] %v1662
  %s1664 = scalar_lea.vmem %s4, 40
  %1665 = vst [vmem:[%s1664] sm:$0xff] %v1654
  %v1666 = vld [vmem:[#allocation2] sm:$0xff]
  %v1667 = vld [vmem:[#allocation3] sm:$0xff]
  %s1668 = smul.u32 6, 4
  %s1669 = smul.addr %s1668, 8
  %s1670 = scalar_lea.vmem [#allocation4], %s1669
  %v1671 = vld [vmem:[%s1670] sm:$0xff]
  %v1672 = vld [vmem:[%s1670 + $0x8] sm:$0xff]
  %v1673 = vld [vmem:[%s1670 + $0x10] sm:$0xff]
  %v1674 = vld [vmem:[%s1670 + $0x18] sm:$0xff]
  %v1675 = vld [vmem:[%s2] sm:$0xff]
  %v1676 = vld [vmem:[%s2 + $0x8] sm:$0xff]
  %v1677 = vld [vmem:[%s2 + $0x10] sm:$0xff]
  %v1678 = vld [vmem:[%s2 + $0x18] sm:$0xff]
  %v1679 = vld [vmem:[%s2 + $0x20] sm:$0xff]
  %v1680 = vld [vmem:[%s2 + $0x28] sm:$0xff]
  %v1681 = vld [vmem:[%s2 + $0x30] sm:$0xff]
  %v1682 = vld [vmem:[%s2 + $0x38] sm:$0xff]
  %v1683 = vld [vmem:[%s2 + $0x40] sm:$0xff]
  %v1684 = vld [vmem:[%s2 + $0x48] sm:$0xff]
  %v1685 = vld [vmem:[%s2 + $0x50] sm:$0xff]
  %v1686 = vld [vmem:[%s2 + $0x58] sm:$0xff]
  %v1687 = vld [vmem:[%s2 + $0x60] sm:$0xff]
  %v1688 = vld [vmem:[%s2 + $0x68] sm:$0xff]
  %v1689 = vld [vmem:[%s2 + $0x70] sm:$0xff]
  %v1690 = vld [vmem:[%s2 + $0x78] sm:$0xff]
  %v1691 = vld [vmem:[%s2 + $0x80] sm:$0xff]
  %v1692 = vld [vmem:[%s2 + $0x88] sm:$0xff]
  %v1693 = vld [vmem:[%s2 + $0x90] sm:$0xff]
  %v1694 = vld [vmem:[%s2 + $0x98] sm:$0xff]
  %v1695 = vld [vmem:[%s2 + $0xa0] sm:$0xff]
  %v1696 = vld [vmem:[%s2 + $0xa8] sm:$0xff]
  %v1697 = vld [vmem:[%s2 + $0xb0] sm:$0xff]
  %v1698 = vld [vmem:[%s2 + $0xb8] sm:$0xff]
  %v1699 = vld [vmem:[%s2 + $0xc0] sm:$0xff]
  %v1700 = vld [vmem:[%s2 + $0xc8] sm:$0xff]
  %v1701 = vld [vmem:[%s2 + $0xd0] sm:$0xff]
  %v1702 = vld [vmem:[%s2 + $0xd8] sm:$0xff]
  %v1703 = vld [vmem:[%s2 + $0xe0] sm:$0xff]
  %v1704 = vld [vmem:[%s2 + $0xe8] sm:$0xff]
  %v1705 = vld [vmem:[%s2 + $0xf0] sm:$0xff]
  %v1706 = vld [vmem:[%s2 + $0xf8] sm:$0xff]
  %v1707 = vld [vmem:[%s2 + $0x100] sm:$0xff]
  %v1708 = vld [vmem:[%s2 + $0x108] sm:$0xff]
  %v1709 = vld [vmem:[%s2 + $0x110] sm:$0xff]
  %v1710 = vld [vmem:[%s2 + $0x118] sm:$0xff]
  %v1711 = vld [vmem:[%s2 + $0x120] sm:$0xff]
  %v1712 = vld [vmem:[%s2 + $0x128] sm:$0xff]
  %v1713 = vld [vmem:[%s2 + $0x130] sm:$0xff]
  %v1714 = vld [vmem:[%s2 + $0x138] sm:$0xff]
  %v1715 = vld [vmem:[%s2 + $0x140] sm:$0xff]
  %v1716 = vld [vmem:[%s2 + $0x148] sm:$0xff]
  %v1717 = vld [vmem:[%s2 + $0x150] sm:$0xff]
  %v1718 = vld [vmem:[%s2 + $0x158] sm:$0xff]
  %v1719 = vld [vmem:[%s2 + $0x160] sm:$0xff]
  %v1720 = vld [vmem:[%s2 + $0x168] sm:$0xff]
  %v1721 = vld [vmem:[%s2 + $0x170] sm:$0xff]
  %v1722 = vld [vmem:[%s2 + $0x178] sm:$0xff]
  %v1723 = vld [vmem:[%s2 + $0x180] sm:$0xff]
  %v1724 = vld [vmem:[%s2 + $0x188] sm:$0xff]
  %v1725 = vld [vmem:[%s2 + $0x190] sm:$0xff]
  %v1726 = vld [vmem:[%s2 + $0x198] sm:$0xff]
  %v1727 = vld [vmem:[%s2 + $0x1a0] sm:$0xff]
  %v1728 = vld [vmem:[%s2 + $0x1a8] sm:$0xff]
  %v1729 = vld [vmem:[%s2 + $0x1b0] sm:$0xff]
  %v1730 = vld [vmem:[%s2 + $0x1b8] sm:$0xff]
  %v1731 = vld [vmem:[%s2 + $0x1c0] sm:$0xff]
  %v1732 = vld [vmem:[%s2 + $0x1c8] sm:$0xff]
  %v1733 = vld [vmem:[%s2 + $0x1d0] sm:$0xff]
  %v1734 = vld [vmem:[%s2 + $0x1d8] sm:$0xff]
  %v1735 = vld [vmem:[%s2 + $0x1e0] sm:$0xff]
  %v1736 = vld [vmem:[%s2 + $0x1e8] sm:$0xff]
  %v1737 = vld [vmem:[%s2 + $0x1f0] sm:$0xff]
  %v1738 = vld [vmem:[%s2 + $0x1f8] sm:$0xff]
  %1739 = vmatpush.msra.mxu0 %v1735
  %1740 = vmatpush.msra.mxu0 %v1731
  %1741 = vmatpush.msra.mxu0 %v1727
  %1742 = vmatpush.msra.mxu0 %v1723
  %1743 = vmatpush.msra.mxu0 %v1719
  %1744 = vmatpush.msra.mxu0 %v1715
  %1745 = vmatpush.msra.mxu0 %v1711
  %1746 = vmatpush.msra.mxu0 %v1707
  %1747 = vmatpush.msra.mxu0 %v1703
  %1748 = vmatpush.msra.mxu0 %v1699
  %1749 = vmatpush.msra.mxu0 %v1695
  %1750 = vmatpush.msra.mxu0 %v1691
  %1751 = vmatpush.msra.mxu0 %v1687
  %1752 = vmatpush.msra.mxu0 %v1683
  %1753 = vmatpush.msra.mxu0 %v1679
  %1754 = vmatpush.msra.mxu0 %v1675
  %1755 = vmatmul.f32.gmra.mxu0 %v1666
  %v1756 = vpop.f32.mrf.mxu0
  %v1757 = vadd.f32 0.0, %v1756
  %1758 = vdwg.mxu0
  %1759 = vmatpush.msra.mxu0 %v1736
  %1760 = vmatpush.msra.mxu0 %v1732
  %1761 = vmatpush.msra.mxu0 %v1728
  %1762 = vmatpush.msra.mxu0 %v1724
  %1763 = vmatpush.msra.mxu0 %v1720
  %1764 = vmatpush.msra.mxu0 %v1716
  %1765 = vmatpush.msra.mxu0 %v1712
  %1766 = vmatpush.msra.mxu0 %v1708
  %1767 = vmatpush.msra.mxu0 %v1704
  %1768 = vmatpush.msra.mxu0 %v1700
  %1769 = vmatpush.msra.mxu0 %v1696
  %1770 = vmatpush.msra.mxu0 %v1692
  %1771 = vmatpush.msra.mxu0 %v1688
  %1772 = vmatpush.msra.mxu0 %v1684
  %1773 = vmatpush.msra.mxu0 %v1680
  %1774 = vmatpush.msra.mxu0 %v1676
  %1775 = vmatmul.f32.gmra.mxu0 %v1666
  %v1776 = vpop.f32.mrf.mxu0
  %v1777 = vadd.f32 0.0, %v1776
  %1778 = vdwg.mxu0
  %1779 = vmatpush.msra.mxu0 %v1737
  %1780 = vmatpush.msra.mxu0 %v1733
  %1781 = vmatpush.msra.mxu0 %v1729
  %1782 = vmatpush.msra.mxu0 %v1725
  %1783 = vmatpush.msra.mxu0 %v1721
  %1784 = vmatpush.msra.mxu0 %v1717
  %1785 = vmatpush.msra.mxu0 %v1713
  %1786 = vmatpush.msra.mxu0 %v1709
  %1787 = vmatpush.msra.mxu0 %v1705
  %1788 = vmatpush.msra.mxu0 %v1701
  %1789 = vmatpush.msra.mxu0 %v1697
  %1790 = vmatpush.msra.mxu0 %v1693
  %1791 = vmatpush.msra.mxu0 %v1689
  %1792 = vmatpush.msra.mxu0 %v1685
  %1793 = vmatpush.msra.mxu0 %v1681
  %1794 = vmatpush.msra.mxu0 %v1677
  %1795 = vmatmul.f32.gmra.mxu0 %v1666
  %v1796 = vpop.f32.mrf.mxu0
  %v1797 = vadd.f32 0.0, %v1796
  %1798 = vdwg.mxu0
  %1799 = vmatpush.msra.mxu0 %v1738
  %1800 = vmatpush.msra.mxu0 %v1734
  %1801 = vmatpush.msra.mxu0 %v1730
  %1802 = vmatpush.msra.mxu0 %v1726
  %1803 = vmatpush.msra.mxu0 %v1722
  %1804 = vmatpush.msra.mxu0 %v1718
  %1805 = vmatpush.msra.mxu0 %v1714
  %1806 = vmatpush.msra.mxu0 %v1710
  %1807 = vmatpush.msra.mxu0 %v1706
  %1808 = vmatpush.msra.mxu0 %v1702
  %1809 = vmatpush.msra.mxu0 %v1698
  %1810 = vmatpush.msra.mxu0 %v1694
  %1811 = vmatpush.msra.mxu0 %v1690
  %1812 = vmatpush.msra.mxu0 %v1686
  %1813 = vmatpush.msra.mxu0 %v1682
  %1814 = vmatpush.msra.mxu0 %v1678
  %1815 = vmatmul.f32.gmra.mxu0 %v1666
  %v1816 = vpop.f32.mrf.mxu0
  %v1817 = vadd.f32 0.0, %v1816
  %1818 = vdwg.mxu0
  %v1819 = vadd.f32 %v1671, %v1757
  %v1820 = vadd.f32 %v1672, %v1777
  %v1821 = vadd.f32 %v1673, %v1797
  %v1822 = vadd.f32 %v1674, %v1817
  %v1823 = vxor.u32 %v1819, 2147483648
  %v1824 = vmul.f32 %v1823, 1.442695
  %v1825 = vpow.pop %v1824
  %v1826 = vadd.f32 %v1825, 1.0
  %v1827 = vrcp.pop %v1826
  %v1828 = vmul.f32 %v1826, %v1827
  %v1829 = vsub.f32 1.0, %v1828
  %v1830 = vmul.f32 %v1827, %v1829
  %v1831 = vadd.f32 %v1827, %v1830
  %vm1832 = vweird.f32 %v1826
  %vm1833 = vweird.f32 %v1827
  %vm1834 = vmor %vm1832, %vm1833
  %v1835 = vsel %vm1834, %v1827, %v1831
  %v1836 = vand.u32 2147483647, %v1826
  %vm1837 = vcmp.eq.f32.partialorder %v1836, 8.507059e+37
  %v1838 = vand.u32 %v1826, 2147483648
  %v1839 = vor.u32 1.1754944e-38, %v1838
  %v1840 = vsel %vm1837, %v1839, %v1835
  %v1841 = vmul.f32 1.0, %v1840
  %v1842 = vxor.u32 %v1820, 2147483648
  %v1843 = vmul.f32 %v1842, 1.442695
  %v1844 = vpow.pop %v1843
  %v1845 = vadd.f32 %v1844, 1.0
  %v1846 = vrcp.pop %v1845
  %v1847 = vmul.f32 %v1845, %v1846
  %v1848 = vsub.f32 1.0, %v1847
  %v1849 = vmul.f32 %v1846, %v1848
  %v1850 = vadd.f32 %v1846, %v1849
  %vm1851 = vweird.f32 %v1845
  %vm1852 = vweird.f32 %v1846
  %vm1853 = vmor %vm1851, %vm1852
  %v1854 = vsel %vm1853, %v1846, %v1850
  %v1855 = vand.u32 2147483647, %v1845
  %vm1856 = vcmp.eq.f32.partialorder %v1855, 8.507059e+37
  %v1857 = vand.u32 %v1845, 2147483648
  %v1858 = vor.u32 1.1754944e-38, %v1857
  %v1859 = vsel %vm1856, %v1858, %v1854
  %v1860 = vmul.f32 1.0, %v1859
  %v1861 = vtanh.pop %v1821
  %v1862 = vxor.u32 %v1822, 2147483648
  %v1863 = vmul.f32 %v1862, 1.442695
  %v1864 = vpow.pop %v1863
  %v1865 = vadd.f32 %v1864, 1.0
  %v1866 = vrcp.pop %v1865
  %v1867 = vmul.f32 %v1865, %v1866
  %v1868 = vsub.f32 1.0, %v1867
  %v1869 = vmul.f32 %v1866, %v1868
  %v1870 = vadd.f32 %v1866, %v1869
  %vm1871 = vweird.f32 %v1865
  %vm1872 = vweird.f32 %v1866
  %vm1873 = vmor %vm1871, %vm1872
  %v1874 = vsel %vm1873, %v1866, %v1870
  %v1875 = vand.u32 2147483647, %v1865
  %vm1876 = vcmp.eq.f32.partialorder %v1875, 8.507059e+37
  %v1877 = vand.u32 %v1865, 2147483648
  %v1878 = vor.u32 1.1754944e-38, %v1877
  %v1879 = vsel %vm1876, %v1878, %v1874
  %v1880 = vmul.f32 1.0, %v1879
  %v1881 = vmul.f32 %v1860, %v1667
  %v1882 = vmul.f32 %v1841, %v1861
  %v1883 = vadd.f32 %v1881, %v1882
  %v1884 = vtanh.pop %v1883
  %v1885 = vmul.f32 %v1880, %v1884
  %s1886 = sadd.s32 %s281, 6
  %p1887 = scmp.lt.s32.totalorder %s1886, 8
  %s1888 = scalar_select %p1887, 1, 0
  %v1889 = vstv %s1888
  %vm1890 = vcmp.eq.s32.totalorder %v1889, 1
  %v1891 = vsel %vm1890, %v1885, %v1666
  %1892 = vst [vmem:[#allocation2] sm:$0xff] %v1891
  %v1893 = vsel %vm1890, %v1883, %v1667
  %1894 = vst [vmem:[#allocation3] sm:$0xff] %v1893
  %s1895 = scalar_lea.vmem %s4, 48
  %1896 = vst [vmem:[%s1895] sm:$0xff] %v1885
  %v1897 = vld [vmem:[#allocation2] sm:$0xff]
  %v1898 = vld [vmem:[#allocation3] sm:$0xff]
  %s1899 = smul.u32 7, 4
  %s1900 = smul.addr %s1899, 8
  %s1901 = scalar_lea.vmem [#allocation4], %s1900
  %v1902 = vld [vmem:[%s1901] sm:$0xff]
  %v1903 = vld [vmem:[%s1901 + $0x8] sm:$0xff]
  %v1904 = vld [vmem:[%s1901 + $0x10] sm:$0xff]
  %v1905 = vld [vmem:[%s1901 + $0x18] sm:$0xff]
  %v1906 = vld [vmem:[%s2] sm:$0xff]
  %v1907 = vld [vmem:[%s2 + $0x8] sm:$0xff]
  %v1908 = vld [vmem:[%s2 + $0x10] sm:$0xff]
  %v1909 = vld [vmem:[%s2 + $0x18] sm:$0xff]
  %v1910 = vld [vmem:[%s2 + $0x20] sm:$0xff]
  %v1911 = vld [vmem:[%s2 + $0x28] sm:$0xff]
  %v1912 = vld [vmem:[%s2 + $0x30] sm:$0xff]
  %v1913 = vld [vmem:[%s2 + $0x38] sm:$0xff]
  %v1914 = vld [vmem:[%s2 + $0x40] sm:$0xff]
  %v1915 = vld [vmem:[%s2 + $0x48] sm:$0xff]
  %v1916 = vld [vmem:[%s2 + $0x50] sm:$0xff]
  %v1917 = vld [vmem:[%s2 + $0x58] sm:$0xff]
  %v1918 = vld [vmem:[%s2 + $0x60] sm:$0xff]
  %v1919 = vld [vmem:[%s2 + $0x68] sm:$0xff]
  %v1920 = vld [vmem:[%s2 + $0x70] sm:$0xff]
  %v1921 = vld [vmem:[%s2 + $0x78] sm:$0xff]
  %v1922 = vld [vmem:[%s2 + $0x80] sm:$0xff]
  %v1923 = vld [vmem:[%s2 + $0x88] sm:$0xff]
  %v1924 = vld [vmem:[%s2 + $0x90] sm:$0xff]
  %v1925 = vld [vmem:[%s2 + $0x98] sm:$0xff]
  %v1926 = vld [vmem:[%s2 + $0xa0] sm:$0xff]
  %v1927 = vld [vmem:[%s2 + $0xa8] sm:$0xff]
  %v1928 = vld [vmem:[%s2 + $0xb0] sm:$0xff]
  %v1929 = vld [vmem:[%s2 + $0xb8] sm:$0xff]
  %v1930 = vld [vmem:[%s2 + $0xc0] sm:$0xff]
  %v1931 = vld [vmem:[%s2 + $0xc8] sm:$0xff]
  %v1932 = vld [vmem:[%s2 + $0xd0] sm:$0xff]
  %v1933 = vld [vmem:[%s2 + $0xd8] sm:$0xff]
  %v1934 = vld [vmem:[%s2 + $0xe0] sm:$0xff]
  %v1935 = vld [vmem:[%s2 + $0xe8] sm:$0xff]
  %v1936 = vld [vmem:[%s2 + $0xf0] sm:$0xff]
  %v1937 = vld [vmem:[%s2 + $0xf8] sm:$0xff]
  %v1938 = vld [vmem:[%s2 + $0x100] sm:$0xff]
  %v1939 = vld [vmem:[%s2 + $0x108] sm:$0xff]
  %v1940 = vld [vmem:[%s2 + $0x110] sm:$0xff]
  %v1941 = vld [vmem:[%s2 + $0x118] sm:$0xff]
  %v1942 = vld [vmem:[%s2 + $0x120] sm:$0xff]
  %v1943 = vld [vmem:[%s2 + $0x128] sm:$0xff]
  %v1944 = vld [vmem:[%s2 + $0x130] sm:$0xff]
  %v1945 = vld [vmem:[%s2 + $0x138] sm:$0xff]
  %v1946 = vld [vmem:[%s2 + $0x140] sm:$0xff]
  %v1947 = vld [vmem:[%s2 + $0x148] sm:$0xff]
  %v1948 = vld [vmem:[%s2 + $0x150] sm:$0xff]
  %v1949 = vld [vmem:[%s2 + $0x158] sm:$0xff]
  %v1950 = vld [vmem:[%s2 + $0x160] sm:$0xff]
  %v1951 = vld [vmem:[%s2 + $0x168] sm:$0xff]
  %v1952 = vld [vmem:[%s2 + $0x170] sm:$0xff]
  %v1953 = vld [vmem:[%s2 + $0x178] sm:$0xff]
  %v1954 = vld [vmem:[%s2 + $0x180] sm:$0xff]
  %v1955 = vld [vmem:[%s2 + $0x188] sm:$0xff]
  %v1956 = vld [vmem:[%s2 + $0x190] sm:$0xff]
  %v1957 = vld [vmem:[%s2 + $0x198] sm:$0xff]
  %v1958 = vld [vmem:[%s2 + $0x1a0] sm:$0xff]
  %v1959 = vld [vmem:[%s2 + $0x1a8] sm:$0xff]
  %v1960 = vld [vmem:[%s2 + $0x1b0] sm:$0xff]
  %v1961 = vld [vmem:[%s2 + $0x1b8] sm:$0xff]
  %v1962 = vld [vmem:[%s2 + $0x1c0] sm:$0xff]
  %v1963 = vld [vmem:[%s2 + $0x1c8] sm:$0xff]
  %v1964 = vld [vmem:[%s2 + $0x1d0] sm:$0xff]
  %v1965 = vld [vmem:[%s2 + $0x1d8] sm:$0xff]
  %v1966 = vld [vmem:[%s2 + $0x1e0] sm:$0xff]
  %v1967 = vld [vmem:[%s2 + $0x1e8] sm:$0xff]
  %v1968 = vld [vmem:[%s2 + $0x1f0] sm:$0xff]
  %v1969 = vld [vmem:[%s2 + $0x1f8] sm:$0xff]
  %1970 = vmatpush.msra.mxu0 %v1966
  %1971 = vmatpush.msra.mxu0 %v1962
  %1972 = vmatpush.msra.mxu0 %v1958
  %1973 = vmatpush.msra.mxu0 %v1954
  %1974 = vmatpush.msra.mxu0 %v1950
  %1975 = vmatpush.msra.mxu0 %v1946
  %1976 = vmatpush.msra.mxu0 %v1942
  %1977 = vmatpush.msra.mxu0 %v1938
  %1978 = vmatpush.msra.mxu0 %v1934
  %1979 = vmatpush.msra.mxu0 %v1930
  %1980 = vmatpush.msra.mxu0 %v1926
  %1981 = vmatpush.msra.mxu0 %v1922
  %1982 = vmatpush.msra.mxu0 %v1918
  %1983 = vmatpush.msra.mxu0 %v1914
  %1984 = vmatpush.msra.mxu0 %v1910
  %1985 = vmatpush.msra.mxu0 %v1906
  %1986 = vmatmul.f32.gmra.mxu0 %v1897
  %v1987 = vpop.f32.mrf.mxu0
  %v1988 = vadd.f32 0.0, %v1987
  %1989 = vdwg.mxu0
  %1990 = vmatpush.msra.mxu0 %v1967
  %1991 = vmatpush.msra.mxu0 %v1963
  %1992 = vmatpush.msra.mxu0 %v1959
  %1993 = vmatpush.msra.mxu0 %v1955
  %1994 = vmatpush.msra.mxu0 %v1951
  %1995 = vmatpush.msra.mxu0 %v1947
  %1996 = vmatpush.msra.mxu0 %v1943
  %1997 = vmatpush.msra.mxu0 %v1939
  %1998 = vmatpush.msra.mxu0 %v1935
  %1999 = vmatpush.msra.mxu0 %v1931
  %2000 = vmatpush.msra.mxu0 %v1927
  %2001 = vmatpush.msra.mxu0 %v1923
  %2002 = vmatpush.msra.mxu0 %v1919
  %2003 = vmatpush.msra.mxu0 %v1915
  %2004 = vmatpush.msra.mxu0 %v1911
  %2005 = vmatpush.msra.mxu0 %v1907
  %2006 = vmatmul.f32.gmra.mxu0 %v1897
  %v2007 = vpop.f32.mrf.mxu0
  %v2008 = vadd.f32 0.0, %v2007
  %2009 = vdwg.mxu0
  %2010 = vmatpush.msra.mxu0 %v1968
  %2011 = vmatpush.msra.mxu0 %v1964
  %2012 = vmatpush.msra.mxu0 %v1960
  %2013 = vmatpush.msra.mxu0 %v1956
  %2014 = vmatpush.msra.mxu0 %v1952
  %2015 = vmatpush.msra.mxu0 %v1948
  %2016 = vmatpush.msra.mxu0 %v1944
  %2017 = vmatpush.msra.mxu0 %v1940
  %2018 = vmatpush.msra.mxu0 %v1936
  %2019 = vmatpush.msra.mxu0 %v1932
  %2020 = vmatpush.msra.mxu0 %v1928
  %2021 = vmatpush.msra.mxu0 %v1924
  %2022 = vmatpush.msra.mxu0 %v1920
  %2023 = vmatpush.msra.mxu0 %v1916
  %2024 = vmatpush.msra.mxu0 %v1912
  %2025 = vmatpush.msra.mxu0 %v1908
  %2026 = vmatmul.f32.gmra.mxu0 %v1897
  %v2027 = vpop.f32.mrf.mxu0
  %v2028 = vadd.f32 0.0, %v2027
  %2029 = vdwg.mxu0
  %2030 = vmatpush.msra.mxu0 %v1969
  %2031 = vmatpush.msra.mxu0 %v1965
  %2032 = vmatpush.msra.mxu0 %v1961
  %2033 = vmatpush.msra.mxu0 %v1957
  %2034 = vmatpush.msra.mxu0 %v1953
  %2035 = vmatpush.msra.mxu0 %v1949
  %2036 = vmatpush.msra.mxu0 %v1945
  %2037 = vmatpush.msra.mxu0 %v1941
  %2038 = vmatpush.msra.mxu0 %v1937
  %2039 = vmatpush.msra.mxu0 %v1933
  %2040 = vmatpush.msra.mxu0 %v1929
  %2041 = vmatpush.msra.mxu0 %v1925
  %2042 = vmatpush.msra.mxu0 %v1921
  %2043 = vmatpush.msra.mxu0 %v1917
  %2044 = vmatpush.msra.mxu0 %v1913
  %2045 = vmatpush.msra.mxu0 %v1909
  %2046 = vmatmul.f32.gmra.mxu0 %v1897
  %v2047 = vpop.f32.mrf.mxu0
  %v2048 = vadd.f32 0.0, %v2047
  %2049 = vdwg.mxu0
  %v2050 = vadd.f32 %v1902, %v1988
  %v2051 = vadd.f32 %v1903, %v2008
  %v2052 = vadd.f32 %v1904, %v2028
  %v2053 = vadd.f32 %v1905, %v2048
  %v2054 = vxor.u32 %v2050, 2147483648
  %v2055 = vmul.f32 %v2054, 1.442695
  %v2056 = vpow.pop %v2055
  %v2057 = vadd.f32 %v2056, 1.0
  %v2058 = vrcp.pop %v2057
  %v2059 = vmul.f32 %v2057, %v2058
  %v2060 = vsub.f32 1.0, %v2059
  %v2061 = vmul.f32 %v2058, %v2060
  %v2062 = vadd.f32 %v2058, %v2061
  %vm2063 = vweird.f32 %v2057
  %vm2064 = vweird.f32 %v2058
  %vm2065 = vmor %vm2063, %vm2064
  %v2066 = vsel %vm2065, %v2058, %v2062
  %v2067 = vand.u32 2147483647, %v2057
  %vm2068 = vcmp.eq.f32.partialorder %v2067, 8.507059e+37
  %v2069 = vand.u32 %v2057, 2147483648
  %v2070 = vor.u32 1.1754944e-38, %v2069
  %v2071 = vsel %vm2068, %v2070, %v2066
  %v2072 = vmul.f32 1.0, %v2071
  %v2073 = vxor.u32 %v2051, 2147483648
  %v2074 = vmul.f32 %v2073, 1.442695
  %v2075 = vpow.pop %v2074
  %v2076 = vadd.f32 %v2075, 1.0
  %v2077 = vrcp.pop %v2076
  %v2078 = vmul.f32 %v2076, %v2077
  %v2079 = vsub.f32 1.0, %v2078
  %v2080 = vmul.f32 %v2077, %v2079
  %v2081 = vadd.f32 %v2077, %v2080
  %vm2082 = vweird.f32 %v2076
  %vm2083 = vweird.f32 %v2077
  %vm2084 = vmor %vm2082, %vm2083
  %v2085 = vsel %vm2084, %v2077, %v2081
  %v2086 = vand.u32 2147483647, %v2076
  %vm2087 = vcmp.eq.f32.partialorder %v2086, 8.507059e+37
  %v2088 = vand.u32 %v2076, 2147483648
  %v2089 = vor.u32 1.1754944e-38, %v2088
  %v2090 = vsel %vm2087, %v2089, %v2085
  %v2091 = vmul.f32 1.0, %v2090
  %v2092 = vtanh.pop %v2052
  %v2093 = vxor.u32 %v2053, 2147483648
  %v2094 = vmul.f32 %v2093, 1.442695
  %v2095 = vpow.pop %v2094
  %v2096 = vadd.f32 %v2095, 1.0
  %v2097 = vrcp.pop %v2096
  %v2098 = vmul.f32 %v2096, %v2097
  %v2099 = vsub.f32 1.0, %v2098
  %v2100 = vmul.f32 %v2097, %v2099
  %v2101 = vadd.f32 %v2097, %v2100
  %vm2102 = vweird.f32 %v2096
  %vm2103 = vweird.f32 %v2097
  %vm2104 = vmor %vm2102, %vm2103
  %v2105 = vsel %vm2104, %v2097, %v2101
  %v2106 = vand.u32 2147483647, %v2096
  %vm2107 = vcmp.eq.f32.partialorder %v2106, 8.507059e+37
  %v2108 = vand.u32 %v2096, 2147483648
  %v2109 = vor.u32 1.1754944e-38, %v2108
  %v2110 = vsel %vm2107, %v2109, %v2105
  %v2111 = vmul.f32 1.0, %v2110
  %v2112 = vmul.f32 %v2091, %v1898
  %v2113 = vmul.f32 %v2072, %v2092
  %v2114 = vadd.f32 %v2112, %v2113
  %v2115 = vtanh.pop %v2114
  %v2116 = vmul.f32 %v2111, %v2115
  %s2117 = sadd.s32 %s281, 7
  %p2118 = scmp.lt.s32.totalorder %s2117, 8
  %s2119 = scalar_select %p2118, 1, 0
  %v2120 = vstv %s2119
  %vm2121 = vcmp.eq.s32.totalorder %v2120, 1
  %v2122 = vsel %vm2121, %v2116, %v1897
  %2123 = vst [vmem:[#allocation2] sm:$0xff] %v2122
  %v2124 = vsel %vm2121, %v2114, %v1898
  %2125 = vst [vmem:[#allocation3] sm:$0xff] %v2124
  %s2126 = scalar_lea.vmem %s4, 56
  %2127 = vst [vmem:[%s2126] sm:$0xff] %v2116
  // Predicated region
  $region22: #{encoder_forward.1} parent=0 // pred_check
    %p2128 = pneg %p20
  $region23: #{encoder_forward.1} parent=0 // pred_check_branch
    %2130 = sbr.rel (%p2128) target = $region25
  $region24: #{encoder_forward.1} parent=0 // pred_region
    %v2131 = vld [vmem:[#allocation2] sm:$0xff]
    %2132 = vst [vmem:[%s5] sm:$0xff] %v2131
    %v2133 = vld [vmem:[#allocation3] sm:$0xff]
    %2134 = vst [vmem:[%s6] sm:$0xff] %v2133
  $region25: #{encoder_forward.1} parent=0 // pred_fallthru
    _
  // Predicated region
  $region26: #{encoder_forward.1} parent=0 // pred_check
    _
  $region27: #{encoder_forward.1} parent=0 // pred_check_branch
    %2136 = sbr.rel (0) target = $region29
  $region28: #{encoder_forward.1} parent=0 // pred_region
    _
  $region29: #{encoder_forward.1} parent=0 // pred_fallthru
    _
  // Predicated region
  $region30: #{encoder_forward.1} parent=0 // pred_check
    _
  $region31: #{encoder_forward.1} parent=0 // pred_check_branch
    %2138 = sbr.rel (0) target = $region33
  $region32: #{encoder_forward.1} parent=0 // pred_region
    _
  $region33: #{encoder_forward.1} parent=0 // pred_fallthru
    _
  // Predicated region
  $region34: #{encoder_forward.1} parent=0 // pred_check
    _
  $region35: #{encoder_forward.1} parent=0 // pred_check_branch
    %2140 = sbr.rel (0) target = $region37
  $region36: #{encoder_forward.1} parent=0 // pred_region
    _
  $region37: #{encoder_forward.1} parent=0 // pred_fallthru
    _
  // Predicated region
  $region38: #{encoder_forward.1} parent=0 // pred_check
    _
  $region39: #{encoder_forward.1} parent=0 // pred_check_branch
    %2142 = sbr.rel (0) target = $region41
  $region40: #{encoder_forward.1} parent=0 // pred_region
    _
  $region41: #{encoder_forward.1} parent=0 // pred_fallthru
    _
  // Predicated region
  $region42: #{encoder_forward.1} parent=0 // pred_check
    _
  $region43: #{encoder_forward.1} parent=0 // pred_check_branch
    %2144 = sbr.rel (0) target = $region45
  $region44: #{encoder_forward.1} parent=0 // pred_region
    _
  $region45: #{encoder_forward.1} parent=0 // pred_fallthru
    _
  // Predicated region
  $region46: #{encoder_forward.1} parent=0 // pred_check
    _
  $region47: #{encoder_forward.1} parent=0 // pred_check_branch
    %2146 = sbr.rel (0) target = $region49
  $region48: #{encoder_forward.1} parent=0 // pred_region
    _
  $region49: #{encoder_forward.1} parent=0 // pred_fallthru
    _

</llo_original>
